<compile_context>
chip_gen: v7x
topology: tpu7x:2x2x1
jax: 0.10.0
libtpu: 0.0.40
codegen_flags: <defaults>
</compile_context>

<pallas_src>
import functools

import jax
import jax.numpy as jnp
from jax import lax
from jax.experimental import pallas as pl
from jax.experimental.pallas import tpu as pltpu


BN_EPS = 1e-5
PH = 5    # H halo rows (11x1 band kernel -> pad 5)
WL = 8    # W offset of the slab interior (8-aligned; left zero pad >= 5)


def _gelu_tanh(x):
    # tanh-approximate GELU; plain Python constants so it stays in x.dtype
    # (bf16 here -> bf16 VALU/EUP on v6e/v7x).
    # TODO(synk): torch nn.GELU() default is the exact erf form; the tanh
    # approximation differs by ~1e-3 (covered by the test tolerance).
    c = 0.7978845608028654  # sqrt(2/pi)
    return 0.5 * x * (1.0 + jnp.tanh(c * (x + 0.044715 * x * x * x)))


def metanext_block_kernel(
    x_ref, x_hbm_ref,
    idm_ref, wsq_ref, ww_ref, wh_ref, bmix_ref,
    bnsc_ref, bnsh_ref, w1_ref, b1_ref, w2_ref, b2_ref, gamma_ref,
    o_ref,
    slab_ref, halo_ref,
    *, W, C, TILE_H, WP,
):
    f32 = jnp.float32
    n = pl.program_id(0)
    t = pl.program_id(1)
    n_t = pl.num_programs(1)
    HS = TILE_H + 2 * PH  # slab rows

    # ---- stage the halo'd activation slab in VMEM (f32) --------------------
    # The W border columns and (at the image edge) the H halo rows are
    # re-zeroed every grid step: scratch persists across (possibly megacore-
    # sharded) grid steps, so a one-time init is unsafe.
    slab_ref[:, 0:WL, :] = jnp.zeros((HS, WL, C), f32)
    slab_ref[:, WL + W:WP, :] = jnp.zeros((HS, WP - WL - W, C), f32)

    # Interior rows come straight from the auto-pipelined bf16 block.
    x_t = x_ref[...].astype(f32)                          # (TILE_H, W, C)
    slab_ref[PH:PH + TILE_H, WL:WL + W, :] = x_t

    # Top halo rows: last PH rows of the previous tile (tiny DMA) or zeros.
    @pl.when(t > 0)
    def _():
        pltpu.sync_copy(x_hbm_ref.at[n, pl.ds(t * TILE_H - PH, PH), :, :],
                        halo_ref.at[0:PH])
        slab_ref[0:PH, WL:WL + W, :] = halo_ref[0:PH, :, :].astype(f32)

    @pl.when(t == 0)
    def _():
        slab_ref[0:PH, WL:WL + W, :] = jnp.zeros((PH, W, C), f32)

    # Bottom halo rows: first PH rows of the next tile or zeros.
    @pl.when(t < n_t - 1)
    def _():
        pltpu.sync_copy(x_hbm_ref.at[n, pl.ds((t + 1) * TILE_H, PH), :, :],
                        halo_ref.at[PH:2 * PH])
        slab_ref[PH + TILE_H:HS, WL:WL + W, :] = \
            halo_ref[PH:2 * PH, :, :].astype(f32)

    @pl.when(t == n_t - 1)
    def _():
        slab_ref[PH + TILE_H:HS, WL:WL + W, :] = jnp.zeros((PH, W, C), f32)

    # ---- InceptionDWConv2d token mixer (identity mask + 31 static taps) ----
    mixed = x_t * idm_ref[...] + bmix_ref[...]
    for kh in range(3):            # 3x3 square branch, padding (1, 1)
        for kw in range(3):
            tap = slab_ref[PH - 1 + kh:PH - 1 + kh + TILE_H,
                           WL - 1 + kw:WL - 1 + kw + W, :]
            mixed += tap * wsq_ref[kh, kw]
    for kw in range(11):           # 1x11 band along W, padding (0, 5)
        tap = slab_ref[PH:PH + TILE_H, WL - 5 + kw:WL - 5 + kw + W, :]
        mixed += tap * ww_ref[kw]
    for kh in range(11):           # 11x1 band along H, padding (5, 0)
        tap = slab_ref[PH - 5 + kh:PH - 5 + kh + TILE_H, WL:WL + W, :]
        mixed += tap * wh_ref[kh]

    # BatchNorm2d folded to per-channel scale/shift.
    # TODO(synk): inference-mode running statistics only (no batch stats).
    y = mixed * bnsc_ref[...] + bnsh_ref[...]

    # ---- ConvMlp: 1x1 convs as MXU matmuls (bf16 operands, f32 acc) --------
    yb = y.reshape(TILE_H * W, C).astype(jnp.bfloat16)
    h = jnp.dot(yb, w1_ref[...], preferred_element_type=jnp.float32)
    hb = h.astype(jnp.bfloat16) + b1_ref[...]   # bias + GELU in bf16
    hb = _gelu_tanh(hb)
    out = jnp.dot(hb, w2_ref[...], preferred_element_type=jnp.float32) \
        + b2_ref[...]
    out = out.reshape(TILE_H, W, C)

    # layer scale + residual; bf16 store (lane-dense, C multiple of 128).
    o_ref[...] = (out * gamma_ref[...] + x_t).astype(o_ref.dtype)


def init_params(key, dim, mlp_ratio=4, branch_ratio=0.125, ls_init_value=1e-6):
    gc = int(dim * branch_ratio)
    hid = int(mlp_ratio * dim)
    ks = jax.random.split(key, 14)
    p = {
        "w_sq": 0.1 * jax.random.normal(ks[0], (gc, 3, 3), jnp.float32),
        "b_sq": 0.1 * jax.random.normal(ks[1], (gc,), jnp.float32),
        "w_bw": 0.1 * jax.random.normal(ks[2], (gc, 11), jnp.float32),
        "b_bw": 0.1 * jax.random.normal(ks[3], (gc,), jnp.float32),
        "w_bh": 0.1 * jax.random.normal(ks[4], (gc, 11), jnp.float32),
        "b_bh": 0.1 * jax.random.normal(ks[5], (gc,), jnp.float32),
        "bn_w": 1.0 + 0.1 * jax.random.normal(ks[6], (dim,), jnp.float32),
        "bn_b": 0.1 * jax.random.normal(ks[7], (dim,), jnp.float32),
        "bn_mean": 0.1 * jax.random.normal(ks[8], (dim,), jnp.float32),
        "bn_var": 0.5 + jax.random.uniform(ks[9], (dim,), jnp.float32),
        "fc1_w": 0.05 * jax.random.normal(ks[10], (hid, dim), jnp.float32),
        "fc1_b": 0.05 * jax.random.normal(ks[11], (hid,), jnp.float32),
        "fc2_w": 0.05 * jax.random.normal(ks[12], (dim, hid), jnp.float32),
        "fc2_b": 0.05 * jax.random.normal(ks[13], (dim,), jnp.float32),
        "gamma": ls_init_value * jnp.ones((dim,), jnp.float32),
    }
    return p, gc, hid


def _prepare_kernel_params(p, dim, gc):
    """Expand group-wise depthwise params to full-channel, fold BN, cast the
    MLP matmul operands (and fc1 bias, used in the bf16 GELU path) to bf16."""
    c_id = dim - 3 * gc
    idm = jnp.zeros((dim,), jnp.float32).at[:c_id].set(1.0)

    wsq = jnp.zeros((3, 3, dim), jnp.float32)
    wsq = wsq.at[:, :, c_id:c_id + gc].set(jnp.transpose(p["w_sq"], (1, 2, 0)))
    ww = jnp.zeros((11, dim), jnp.float32)
    ww = ww.at[:, c_id + gc:c_id + 2 * gc].set(p["w_bw"].T)
    wh = jnp.zeros((11, dim), jnp.float32)
    wh = wh.at[:, c_id + 2 * gc:c_id + 3 * gc].set(p["w_bh"].T)

    bmix = jnp.zeros((dim,), jnp.float32)
    bmix = bmix.at[c_id:c_id + gc].set(p["b_sq"])
    bmix = bmix.at[c_id + gc:c_id + 2 * gc].set(p["b_bw"])
    bmix = bmix.at[c_id + 2 * gc:].set(p["b_bh"])

    bnsc = p["bn_w"] * lax.rsqrt(p["bn_var"] + BN_EPS)
    bnsh = p["bn_b"] - p["bn_mean"] * bnsc

    w1 = p["fc1_w"].T.astype(jnp.bfloat16)   # (dim, hid)
    w2 = p["fc2_w"].T.astype(jnp.bfloat16)   # (hid, dim)

    as2d = lambda v: v.reshape(1, -1)
    return (as2d(idm), wsq, ww, wh, as2d(bmix), as2d(bnsc), as2d(bnsh),
            w1, as2d(p["fc1_b"]).astype(jnp.bfloat16),
            w2, as2d(p["fc2_b"]), as2d(p["gamma"]))


def _choose_tile_h(H, W, hid):
    """Largest divisor of H (>=8, <=H) whose MLP slab stays within a modest
    hidden-activation VMEM budget; row cap 2048 amortizes MXU weight pushes."""
    if H <= 8:
        return H
    budget_rows = max(64, min(2048, (6 << 20) // max(6 * hid, 1)))
    target = max(8, budget_rows // max(W, 1))
    divisors = [t for t in range(8, H + 1) if H % t == 0]
    if not divisors:
        return H
    fitting = [t for t in divisors if t <= target]
    return max(fitting) if fitting else min(divisors)


def metanext_block_nhwc(x_nhwc, params, dim, gc, hid, tile_h=None):
    N, H, W, C = x_nhwc.shape
    assert C == dim
    # C is the lane axis: best with C a multiple of 128 (see perf notes).
    x = x_nhwc.astype(jnp.bfloat16)

    (idm, wsq, ww, wh, bmix, bnsc, bnsh,
     w1, b1, w2, b2, gamma) = _prepare_kernel_params(params, dim, gc)

    if tile_h is None:
        tile_h = _choose_tile_h(H, W, hid)
    assert H % tile_h == 0
    assert tile_h == H or tile_h >= PH, "halo DMA needs tile_h >= 5"
    n_t = H // tile_h
    WP = WL + ((W + PH + 7) // 8) * 8     # slab W extent, multiple of 8

    kern = functools.partial(metanext_block_kernel,
                             W=W, C=C, TILE_H=tile_h, WP=WP)
    zmap2 = lambda n, t: (0, 0)
    zmap3 = lambda n, t: (0, 0, 0)

    # Explicit VMEM budget (double-buffered blocks + scratch) with headroom.
    blk_act = tile_h * W * C * 2
    wgt_b = 2 * C * hid * 2
    small_b = (9 + 22 + 6) * C * 4 + hid * 2
    slab_b = (tile_h + 2 * PH) * WP * C * 4
    halo_b = 2 * PH * W * C * 2
    need = 2 * (2 * blk_act + wgt_b + small_b) + slab_b + halo_b + (2 << 20)
    vmem_limit = int(min(max(need, 4 << 20), 96 << 20))  # clamp ~60MiB on v7x

    flops = int(N * H * W * (4 * C * hid + 70 * C))
    cost = pl.CostEstimate(
        flops=flops,
        transcendentals=int(N * H * W * hid),
        bytes_accessed=int(2 * N * H * W * C * 2 + 2 * C * hid * 2 + 64 * C))

    out = pl.pallas_call(
        kern,
        out_shape=jax.ShapeDtypeStruct((N, H, W, C), jnp.bfloat16),
        grid=(N, n_t),
        in_specs=[
            pl.BlockSpec((None, tile_h, W, C), lambda n, t: (n, t, 0, 0)),
            pl.BlockSpec(memory_space=pl.ANY),   # same activation, raw HBM (halo rows)
            pl.BlockSpec((1, C), zmap2),         # identity mask
            pl.BlockSpec((3, 3, C), zmap3),      # 3x3 depthwise weights
            pl.BlockSpec((11, C), zmap2),        # 1x11 depthwise weights
            pl.BlockSpec((11, C), zmap2),        # 11x1 depthwise weights
            pl.BlockSpec((1, C), zmap2),         # mixer biases
            pl.BlockSpec((1, C), zmap2),         # BN scale
            pl.BlockSpec((1, C), zmap2),         # BN shift
            pl.BlockSpec((C, hid), zmap2),       # fc1 weight (bf16)
            pl.BlockSpec((1, hid), zmap2),       # fc1 bias (bf16)
            pl.BlockSpec((hid, C), zmap2),       # fc2 weight (bf16)
            pl.BlockSpec((1, C), zmap2),         # fc2 bias
            pl.BlockSpec((1, C), zmap2),         # gamma
        ],
        out_specs=pl.BlockSpec((None, tile_h, W, C), lambda n, t: (n, t, 0, 0)),
        scratch_shapes=[
            pltpu.VMEM((tile_h + 2 * PH, WP, C), jnp.float32),  # halo'd slab
            pltpu.VMEM((2 * PH, W, C), jnp.bfloat16),           # halo staging
        ],
        compiler_params=pltpu.CompilerParams(
            dimension_semantics=("parallel", "parallel"),
            vmem_limit_bytes=vmem_limit),
        cost_estimate=cost,
    )(x, x, idm, wsq, ww, wh, bmix, bnsc, bnsh, w1, b1, w2, b2, gamma)
    return out


def metanext_block(x_nchw, params, dim, gc, hid, tile_h=None):
    # NCHW boundary wrapper (PyTorch convention). In a real network keep
    # activations NHWC/bf16 across blocks and call metanext_block_nhwc.
    x = jnp.transpose(x_nchw, (0, 2, 3, 1))
    out = metanext_block_nhwc(x, params, dim, gc, hid, tile_h=tile_h)
    return jnp.transpose(out, (0, 3, 1, 2)).astype(x_nchw.dtype)


# ---------------- pure-JAX reference (NCHW, mirrors the PyTorch module) ------
def reference(x, p, dim, gc):
    hi = lax.Precision.HIGHEST
    c_id = dim - 3 * gc
    shortcut = x
    x_id = x[:, :c_id]
    x_hw = x[:, c_id:c_id + gc]
    x_w = x[:, c_id + gc:c_id + 2 * gc]
    x_h = x[:, c_id + 2 * gc:]

    def dwconv(inp, w, b, pad):
        out = lax.conv_general_dilated(
            inp, w[:, None, :, :], window_strides=(1, 1),
            padding=((pad[0], pad[0]), (pad[1], pad[1])),
            dimension_numbers=("NCHW", "OIHW", "NCHW"),
            feature_group_count=gc, precision=hi)
        return out + b[None, :, None, None]

    y_hw = dwconv(x_hw, p["w_sq"], p["b_sq"], (1, 1))
    y_w = dwconv(x_w, p["w_bw"][:, None, :], p["b_bw"], (0, 5))
    y_h = dwconv(x_h, p["w_bh"][:, :, None], p["b_bh"], (5, 0))
    mixed = jnp.concatenate([x_id, y_hw, y_w, y_h], axis=1)

    sc = p["bn_w"] / jnp.sqrt(p["bn_var"] + BN_EPS)
    sh = p["bn_b"] - p["bn_mean"] * sc
    y = mixed * sc[None, :, None, None] + sh[None, :, None, None]

    h = jnp.einsum("nchw,oc->nohw", y, p["fc1_w"], precision=hi) \
        + p["fc1_b"][None, :, None, None]
    h = 0.5 * h * (1.0 + lax.erf(h / jnp.sqrt(2.0)))  # exact GELU reference
    out = jnp.einsum("nchw,oc->nohw", h, p["fc2_w"], precision=hi) \
        + p["fc2_b"][None, :, None, None]
    out = out * p["gamma"][None, :, None, None]
    return out + shortcut


if __name__ == "__main__":
    # DIM=128 keeps the lane axis dense (C multiple of 128); tile_h=8 over H=32
    # exercises edge + interior halo handling (4 row tiles per image).
    N, DIM, H, W = 2, 128, 32, 16
    LS = 1.0  # demo layer scale so the check exercises the branch, not just x
    key = jax.random.PRNGKey(0)
    kx, kp = jax.random.split(key)
    x_raw = jax.random.normal(kx, (N, DIM, H, W), jnp.float32)
    # The kernel's contract is bf16 activations at the HBM boundary; round the
    # test input once so the reference sees the same values the kernel sees.
    x = x_raw.astype(jnp.bfloat16).astype(jnp.float32)
    params, gc, hid = init_params(kp, DIM, ls_init_value=LS)

    out = metanext_block(x, params, DIM, gc, hid, tile_h=8)
    out = jax.block_until_ready(out)

    ref = reference(x, params, DIM, gc)
    max_err = float(jnp.max(jnp.abs(out - ref)))
    assert out.shape == ref.shape
    assert bool(jnp.all(jnp.isfinite(out)))
    # Tolerances cover bf16 matmul operands, bf16 tanh-approx GELU and the
    # bf16 output store vs the f32/erf reference.
    assert jnp.allclose(out, ref, rtol=5e-2, atol=1e-1), max_err
    print("KERNEL_OK")
</pallas_src>

<mosaic_0001>
module attributes {stable_mosaic.version = 11 : i64} {
  func.func @metanext_block_kernel(%arg0: i32, %arg1: i32, %arg2: memref<1x8x16x128xbf16, #tpu.memory_space<vmem>>, %arg3: memref<2x32x16x128xbf16, #tpu.memory_space<any>>, %arg4: memref<1x128xf32, #tpu.memory_space<vmem>>, %arg5: memref<3x3x128xf32, #tpu.memory_space<vmem>>, %arg6: memref<11x128xf32, #tpu.memory_space<vmem>>, %arg7: memref<11x128xf32, #tpu.memory_space<vmem>>, %arg8: memref<1x128xf32, #tpu.memory_space<vmem>>, %arg9: memref<1x128xf32, #tpu.memory_space<vmem>>, %arg10: memref<1x128xf32, #tpu.memory_space<vmem>>, %arg11: memref<128x512xbf16, #tpu.memory_space<vmem>>, %arg12: memref<1x512xbf16, #tpu.memory_space<vmem>>, %arg13: memref<512x128xbf16, #tpu.memory_space<vmem>>, %arg14: memref<1x128xf32, #tpu.memory_space<vmem>>, %arg15: memref<1x128xf32, #tpu.memory_space<vmem>>, %arg16: memref<1x8x16x128xbf16, #tpu.memory_space<vmem>>, %arg17: memref<18x32x128xf32, #tpu.memory_space<vmem>>, %arg18: memref<10x16x128xbf16, #tpu.memory_space<vmem>>) attributes {dimension_semantics = [#tpu.dimension_semantics<parallel>, #tpu.dimension_semantics<parallel>], iteration_bounds = array<i64: 2, 4>, scalar_prefetch = 0 : i64, scratch_operands = 2 : i64, tpu.core_type = #tpu.core_type<tc>, window_params = [{transform_indices = @transform_0, window_bounds = array<i64: 1, 8, 16, 128>}, {}, {pipeline_mode = #tpu.pipeline_mode<synchronous>, transform_indices = @transform_2, window_bounds = array<i64: 1, 128>}, {pipeline_mode = #tpu.pipeline_mode<synchronous>, transform_indices = @transform_3, window_bounds = array<i64: 3, 3, 128>}, {pipeline_mode = #tpu.pipeline_mode<synchronous>, transform_indices = @transform_4, window_bounds = array<i64: 11, 128>}, {pipeline_mode = #tpu.pipeline_mode<synchronous>, transform_indices = @transform_5, window_bounds = array<i64: 11, 128>}, {pipeline_mode = #tpu.pipeline_mode<synchronous>, transform_indices = @transform_6, window_bounds = array<i64: 1, 128>}, {pipeline_mode = #tpu.pipeline_mode<synchronous>, transform_indices = @transform_7, window_bounds = array<i64: 1, 128>}, {pipeline_mode = #tpu.pipeline_mode<synchronous>, transform_indices = @transform_8, window_bounds = array<i64: 1, 128>}, {pipeline_mode = #tpu.pipeline_mode<synchronous>, transform_indices = @transform_9, window_bounds = array<i64: 128, 512>}, {pipeline_mode = #tpu.pipeline_mode<synchronous>, transform_indices = @transform_10, window_bounds = array<i64: 1, 512>}, {pipeline_mode = #tpu.pipeline_mode<synchronous>, transform_indices = @transform_11, window_bounds = array<i64: 512, 128>}, {pipeline_mode = #tpu.pipeline_mode<synchronous>, transform_indices = @transform_12, window_bounds = array<i64: 1, 128>}, {pipeline_mode = #tpu.pipeline_mode<synchronous>, transform_indices = @transform_13, window_bounds = array<i64: 1, 128>}, {transform_indices = @transform_14, window_bounds = array<i64: 1, 8, 16, 128>}]} {
    %cst = arith.constant 0.000000e+00 : f32
    %0 = vector.broadcast %cst : f32 to vector<18x8x128xf32>
    %c0 = arith.constant 0 : index
    %c0_0 = arith.constant 0 : index
    %c0_1 = arith.constant 0 : index
    %1 = vector.load %arg17[%c0, %c0_0, %c0_1] : memref<18x32x128xf32, #tpu.memory_space<vmem>>, vector<18x8x128xf32>
    tpu.vector_store %arg17[%c0, %c0_0, %c0_1], %0 {strides = array<i32>} : memref<18x32x128xf32, #tpu.memory_space<vmem>>, vector<18x8x128xf32>,
    %cst_2 = arith.constant 0.000000e+00 : f32
    %2 = vector.broadcast %cst_2 : f32 to vector<18x8x128xf32>
    %c0_3 = arith.constant 0 : index
    %c24 = arith.constant 24 : index
    %c0_4 = arith.constant 0 : index
    %3 = vector.load %arg17[%c0_3, %c24, %c0_4] : memref<18x32x128xf32, #tpu.memory_space<vmem>>, vector<18x8x128xf32>
    tpu.vector_store %arg17[%c0_3, %c24, %c0_4], %2 {strides = array<i32>} : memref<18x32x128xf32, #tpu.memory_space<vmem>>, vector<18x8x128xf32>,
    %c0_5 = arith.constant 0 : index
    %c0_6 = arith.constant 0 : index
    %c0_7 = arith.constant 0 : index
    %c0_8 = arith.constant 0 : index
    %4 = vector.load %arg2[%c0_5, %c0_6, %c0_7, %c0_8] : memref<1x8x16x128xbf16, #tpu.memory_space<vmem>>, vector<1x8x16x128xbf16>
    %5 = vector.shape_cast %4 : vector<1x8x16x128xbf16> to vector<8x16x128xbf16>
    %6 = arith.extf %5 : vector<8x16x128xbf16> to vector<8x16x128xf32>
    %c5 = arith.constant 5 : index
    %c8 = arith.constant 8 : index
    %c0_9 = arith.constant 0 : index
    %7 = vector.load %arg17[%c5, %c8, %c0_9] : memref<18x32x128xf32, #tpu.memory_space<vmem>>, vector<8x16x128xf32>
    tpu.vector_store %arg17[%c5, %c8, %c0_9], %6 {strides = array<i32>} : memref<18x32x128xf32, #tpu.memory_space<vmem>>, vector<8x16x128xf32>,
    %c0_i32 = arith.constant 0 : i32
    %8 = arith.cmpi sgt, %arg1, %c0_i32 : i32
    %9 = arith.extui %8 : i1 to i32
    %c0_i32_10 = arith.constant 0 : i32
    %10 = arith.cmpi ne, %9, %c0_i32_10 : i32
    scf.if %10 {
      %c8_i32 = arith.constant 8 : i32
      %289 = arith.muli %arg1, %c8_i32 : i32
      %c5_i32 = arith.constant 5 : i32
      %290 = arith.subi %289, %c5_i32 : i32
      "tpu.region"() ({
        %294 = tpu.sem_alloc : memref<!tpu.dma_semaphore, #tpu.memory_space<semaphore_mem>>
        %c0_i32_203 = arith.constant 0 : i32
        %c0_i32_204 = arith.constant 0 : i32
        %295 = tpu.memref_slice %arg3[%arg0, %290, %c0_i32_203, %c0_i32_204] : memref<2x32x16x128xbf16, #tpu.memory_space<any>> -> memref<1x5x16x128xbf16, #tpu.memory_space<any>>
        %296 = tpu.memref_squeeze %295 : memref<1x5x16x128xbf16, #tpu.memory_space<any>> -> memref<5x16x128xbf16, #tpu.memory_space<any>>
        %c0_i32_205 = arith.constant 0 : i32
        %c0_i32_206 = arith.constant 0 : i32
        %c0_i32_207 = arith.constant 0 : i32
        %297 = tpu.memref_slice %arg18[%c0_i32_205, %c0_i32_206, %c0_i32_207] : memref<10x16x128xbf16, #tpu.memory_space<vmem>> -> memref<5x16x128xbf16, #tpu.memory_space<vmem>>
        tpu.enqueue_dma source(%296 : memref<5x16x128xbf16, #tpu.memory_space<any>>) target(%297 : memref<5x16x128xbf16, #tpu.memory_space<vmem>>) target_semaphore(%294 : memref<!tpu.dma_semaphore, #tpu.memory_space<semaphore_mem>>)
        %c0_i32_208 = arith.constant 0 : i32
        %c0_i32_209 = arith.constant 0 : i32
        %298 = tpu.memref_slice %arg3[%arg0, %290, %c0_i32_208, %c0_i32_209] : memref<2x32x16x128xbf16, #tpu.memory_space<any>> -> memref<1x5x16x128xbf16, #tpu.memory_space<any>>
        %299 = tpu.memref_squeeze %298 : memref<1x5x16x128xbf16, #tpu.memory_space<any>> -> memref<5x16x128xbf16, #tpu.memory_space<any>>
        %c0_i32_210 = arith.constant 0 : i32
        %c0_i32_211 = arith.constant 0 : i32
        %c0_i32_212 = arith.constant 0 : i32
        %300 = tpu.memref_slice %arg18[%c0_i32_210, %c0_i32_211, %c0_i32_212] : memref<10x16x128xbf16, #tpu.memory_space<vmem>> -> memref<5x16x128xbf16, #tpu.memory_space<vmem>>
        tpu.wait_dma2 semaphore(%294 : memref<!tpu.dma_semaphore, #tpu.memory_space<semaphore_mem>>) src(%299 : memref<5x16x128xbf16, #tpu.memory_space<any>>) dst(%300 : memref<5x16x128xbf16, #tpu.memory_space<vmem>>)
        tpu.yield
      }) : () -> ()
      %c0_197 = arith.constant 0 : index
      %c0_198 = arith.constant 0 : index
      %c0_199 = arith.constant 0 : index
      %291 = vector.load %arg18[%c0_197, %c0_198, %c0_199] : memref<10x16x128xbf16, #tpu.memory_space<vmem>>, vector<5x16x128xbf16>
      %292 = arith.extf %291 : vector<5x16x128xbf16> to vector<5x16x128xf32>
      %c0_200 = arith.constant 0 : index
      %c8_201 = arith.constant 8 : index
      %c0_202 = arith.constant 0 : index
      %293 = vector.load %arg17[%c0_200, %c8_201, %c0_202] : memref<18x32x128xf32, #tpu.memory_space<vmem>>, vector<5x16x128xf32>
      tpu.vector_store %arg17[%c0_200, %c8_201, %c0_202], %292 {strides = array<i32>} : memref<18x32x128xf32, #tpu.memory_space<vmem>>, vector<5x16x128xf32>,
    } else {
    }
    %c0_i32_11 = arith.constant 0 : i32
    %11 = arith.cmpi eq, %arg1, %c0_i32_11 : i32
    %12 = arith.extui %11 : i1 to i32
    %c0_i32_12 = arith.constant 0 : i32
    %13 = arith.cmpi ne, %12, %c0_i32_12 : i32
    scf.if %13 {
      %cst_197 = arith.constant 0.000000e+00 : f32
      %289 = vector.broadcast %cst_197 : f32 to vector<5x16x128xf32>
      %c0_198 = arith.constant 0 : index
      %c8_199 = arith.constant 8 : index
      %c0_200 = arith.constant 0 : index
      %290 = vector.load %arg17[%c0_198, %c8_199, %c0_200] : memref<18x32x128xf32, #tpu.memory_space<vmem>>, vector<5x16x128xf32>
      tpu.vector_store %arg17[%c0_198, %c8_199, %c0_200], %289 {strides = array<i32>} : memref<18x32x128xf32, #tpu.memory_space<vmem>>, vector<5x16x128xf32>,
    } else {
    }
    %c3_i32 = arith.constant 3 : i32
    %14 = arith.cmpi slt, %arg1, %c3_i32 : i32
    %15 = arith.extui %14 : i1 to i32
    %c0_i32_13 = arith.constant 0 : i32
    %16 = arith.cmpi ne, %15, %c0_i32_13 : i32
    scf.if %16 {
      %c1_i32 = arith.constant 1 : i32
      %289 = arith.addi %arg1, %c1_i32 : i32
      %c8_i32 = arith.constant 8 : i32
      %290 = arith.muli %289, %c8_i32 : i32
      "tpu.region"() ({
        %294 = tpu.sem_alloc : memref<!tpu.dma_semaphore, #tpu.memory_space<semaphore_mem>>
        %c0_i32_203 = arith.constant 0 : i32
        %c0_i32_204 = arith.constant 0 : i32
        %295 = tpu.memref_slice %arg3[%arg0, %290, %c0_i32_203, %c0_i32_204] : memref<2x32x16x128xbf16, #tpu.memory_space<any>> -> memref<1x5x16x128xbf16, #tpu.memory_space<any>>
        %296 = tpu.memref_squeeze %295 : memref<1x5x16x128xbf16, #tpu.memory_space<any>> -> memref<5x16x128xbf16, #tpu.memory_space<any>>
        %c5_i32 = arith.constant 5 : i32
        %c0_i32_205 = arith.constant 0 : i32
        %c0_i32_206 = arith.constant 0 : i32
        %297 = tpu.memref_slice %arg18[%c5_i32, %c0_i32_205, %c0_i32_206] : memref<10x16x128xbf16, #tpu.memory_space<vmem>> -> memref<5x16x128xbf16, #tpu.memory_space<vmem>>
        tpu.enqueue_dma source(%296 : memref<5x16x128xbf16, #tpu.memory_space<any>>) target(%297 : memref<5x16x128xbf16, #tpu.memory_space<vmem>>) target_semaphore(%294 : memref<!tpu.dma_semaphore, #tpu.memory_space<semaphore_mem>>)
        %c0_i32_207 = arith.constant 0 : i32
        %c0_i32_208 = arith.constant 0 : i32
        %298 = tpu.memref_slice %arg3[%arg0, %290, %c0_i32_207, %c0_i32_208] : memref<2x32x16x128xbf16, #tpu.memory_space<any>> -> memref<1x5x16x128xbf16, #tpu.memory_space<any>>
        %299 = tpu.memref_squeeze %298 : memref<1x5x16x128xbf16, #tpu.memory_space<any>> -> memref<5x16x128xbf16, #tpu.memory_space<any>>
        %c5_i32_209 = arith.constant 5 : i32
        %c0_i32_210 = arith.constant 0 : i32
        %c0_i32_211 = arith.constant 0 : i32
        %300 = tpu.memref_slice %arg18[%c5_i32_209, %c0_i32_210, %c0_i32_211] : memref<10x16x128xbf16, #tpu.memory_space<vmem>> -> memref<5x16x128xbf16, #tpu.memory_space<vmem>>
        tpu.wait_dma2 semaphore(%294 : memref<!tpu.dma_semaphore, #tpu.memory_space<semaphore_mem>>) src(%299 : memref<5x16x128xbf16, #tpu.memory_space<any>>) dst(%300 : memref<5x16x128xbf16, #tpu.memory_space<vmem>>)
        tpu.yield
      }) : () -> ()
      %c5_197 = arith.constant 5 : index
      %c0_198 = arith.constant 0 : index
      %c0_199 = arith.constant 0 : index
      %291 = vector.load %arg18[%c5_197, %c0_198, %c0_199] : memref<10x16x128xbf16, #tpu.memory_space<vmem>>, vector<5x16x128xbf16>
      %292 = arith.extf %291 : vector<5x16x128xbf16> to vector<5x16x128xf32>
      %c13_200 = arith.constant 13 : index
      %c8_201 = arith.constant 8 : index
      %c0_202 = arith.constant 0 : index
      %293 = vector.load %arg17[%c13_200, %c8_201, %c0_202] : memref<18x32x128xf32, #tpu.memory_space<vmem>>, vector<5x16x128xf32>
      tpu.vector_store %arg17[%c13_200, %c8_201, %c0_202], %292 {strides = array<i32>} : memref<18x32x128xf32, #tpu.memory_space<vmem>>, vector<5x16x128xf32>,
    } else {
    }
    %c3_i32_14 = arith.constant 3 : i32
    %17 = arith.cmpi eq, %arg1, %c3_i32_14 : i32
    %18 = arith.extui %17 : i1 to i32
    %c0_i32_15 = arith.constant 0 : i32
    %19 = arith.cmpi ne, %18, %c0_i32_15 : i32
    scf.if %19 {
      %cst_197 = arith.constant 0.000000e+00 : f32
      %289 = vector.broadcast %cst_197 : f32 to vector<5x16x128xf32>
      %c13_198 = arith.constant 13 : index
      %c8_199 = arith.constant 8 : index
      %c0_200 = arith.constant 0 : index
      %290 = vector.load %arg17[%c13_198, %c8_199, %c0_200] : memref<18x32x128xf32, #tpu.memory_space<vmem>>, vector<5x16x128xf32>
      tpu.vector_store %arg17[%c13_198, %c8_199, %c0_200], %289 {strides = array<i32>} : memref<18x32x128xf32, #tpu.memory_space<vmem>>, vector<5x16x128xf32>,
    } else {
    }
    %c0_16 = arith.constant 0 : index
    %c0_17 = arith.constant 0 : index
    %20 = vector.load %arg4[%c0_16, %c0_17] : memref<1x128xf32, #tpu.memory_space<vmem>>, vector<1x128xf32>
    %21 = vector.shape_cast %20 : vector<1x128xf32> to vector<1x1x128xf32>
    %22 = vector.broadcast %21 : vector<1x1x128xf32> to vector<8x16x128xf32>
    %23 = arith.mulf %6, %22 : vector<8x16x128xf32>
    %c0_18 = arith.constant 0 : index
    %c0_19 = arith.constant 0 : index
    %24 = vector.load %arg8[%c0_18, %c0_19] : memref<1x128xf32, #tpu.memory_space<vmem>>, vector<1x128xf32>
    %25 = vector.shape_cast %24 : vector<1x128xf32> to vector<1x1x128xf32>
    %26 = vector.broadcast %25 : vector<1x1x128xf32> to vector<8x16x128xf32>
    %27 = arith.addf %23, %26 : vector<8x16x128xf32>
    %c4 = arith.constant 4 : index
    %c7 = arith.constant 7 : index
    %c0_20 = arith.constant 0 : index
    %28 = vector.load %arg17[%c4, %c7, %c0_20] : memref<18x32x128xf32, #tpu.memory_space<vmem>>, vector<8x16x128xf32>
    %c0_21 = arith.constant 0 : index
    %c0_22 = arith.constant 0 : index
    %c0_23 = arith.constant 0 : index
    %29 = vector.load %arg5[%c0_21, %c0_22, %c0_23] : memref<3x3x128xf32, #tpu.memory_space<vmem>>, vector<1x1x128xf32>
    %30 = vector.shape_cast %29 : vector<1x1x128xf32> to vector<128xf32>
    %31 = vector.shape_cast %30 : vector<128xf32> to vector<1x1x128xf32>
    %32 = vector.broadcast %31 : vector<1x1x128xf32> to vector<8x16x128xf32>
    %33 = arith.mulf %28, %32 : vector<8x16x128xf32>
    %34 = arith.addf %27, %33 : vector<8x16x128xf32>
    %c4_24 = arith.constant 4 : index
    %c8_25 = arith.constant 8 : index
    %c0_26 = arith.constant 0 : index
    %35 = vector.load %arg17[%c4_24, %c8_25, %c0_26] : memref<18x32x128xf32, #tpu.memory_space<vmem>>, vector<8x16x128xf32>
    %c0_27 = arith.constant 0 : index
    %c1 = arith.constant 1 : index
    %c0_28 = arith.constant 0 : index
    %36 = vector.load %arg5[%c0_27, %c1, %c0_28] : memref<3x3x128xf32, #tpu.memory_space<vmem>>, vector<1x1x128xf32>
    %37 = vector.shape_cast %36 : vector<1x1x128xf32> to vector<128xf32>
    %38 = vector.shape_cast %37 : vector<128xf32> to vector<1x1x128xf32>
    %39 = vector.broadcast %38 : vector<1x1x128xf32> to vector<8x16x128xf32>
    %40 = arith.mulf %35, %39 : vector<8x16x128xf32>
    %41 = arith.addf %34, %40 : vector<8x16x128xf32>
    %c4_29 = arith.constant 4 : index
    %c9 = arith.constant 9 : index
    %c0_30 = arith.constant 0 : index
    %42 = vector.load %arg17[%c4_29, %c9, %c0_30] : memref<18x32x128xf32, #tpu.memory_space<vmem>>, vector<8x16x128xf32>
    %c0_31 = arith.constant 0 : index
    %c2 = arith.constant 2 : index
    %c0_32 = arith.constant 0 : index
    %43 = vector.load %arg5[%c0_31, %c2, %c0_32] : memref<3x3x128xf32, #tpu.memory_space<vmem>>, vector<1x1x128xf32>
    %44 = vector.shape_cast %43 : vector<1x1x128xf32> to vector<128xf32>
    %45 = vector.shape_cast %44 : vector<128xf32> to vector<1x1x128xf32>
    %46 = vector.broadcast %45 : vector<1x1x128xf32> to vector<8x16x128xf32>
    %47 = arith.mulf %42, %46 : vector<8x16x128xf32>
    %48 = arith.addf %41, %47 : vector<8x16x128xf32>
    %c5_33 = arith.constant 5 : index
    %c7_34 = arith.constant 7 : index
    %c0_35 = arith.constant 0 : index
    %49 = vector.load %arg17[%c5_33, %c7_34, %c0_35] : memref<18x32x128xf32, #tpu.memory_space<vmem>>, vector<8x16x128xf32>
    %c1_36 = arith.constant 1 : index
    %c0_37 = arith.constant 0 : index
    %c0_38 = arith.constant 0 : index
    %50 = vector.load %arg5[%c1_36, %c0_37, %c0_38] : memref<3x3x128xf32, #tpu.memory_space<vmem>>, vector<1x1x128xf32>
    %51 = vector.shape_cast %50 : vector<1x1x128xf32> to vector<128xf32>
    %52 = vector.shape_cast %51 : vector<128xf32> to vector<1x1x128xf32>
    %53 = vector.broadcast %52 : vector<1x1x128xf32> to vector<8x16x128xf32>
    %54 = arith.mulf %49, %53 : vector<8x16x128xf32>
    %55 = arith.addf %48, %54 : vector<8x16x128xf32>
    %c5_39 = arith.constant 5 : index
    %c8_40 = arith.constant 8 : index
    %c0_41 = arith.constant 0 : index
    %56 = vector.load %arg17[%c5_39, %c8_40, %c0_41] : memref<18x32x128xf32, #tpu.memory_space<vmem>>, vector<8x16x128xf32>
    %c1_42 = arith.constant 1 : index
    %c1_43 = arith.constant 1 : index
    %c0_44 = arith.constant 0 : index
    %57 = vector.load %arg5[%c1_42, %c1_43, %c0_44] : memref<3x3x128xf32, #tpu.memory_space<vmem>>, vector<1x1x128xf32>
    %58 = vector.shape_cast %57 : vector<1x1x128xf32> to vector<128xf32>
    %59 = vector.shape_cast %58 : vector<128xf32> to vector<1x1x128xf32>
    %60 = vector.broadcast %59 : vector<1x1x128xf32> to vector<8x16x128xf32>
    %61 = arith.mulf %56, %60 : vector<8x16x128xf32>
    %62 = arith.addf %55, %61 : vector<8x16x128xf32>
    %c5_45 = arith.constant 5 : index
    %c9_46 = arith.constant 9 : index
    %c0_47 = arith.constant 0 : index
    %63 = vector.load %arg17[%c5_45, %c9_46, %c0_47] : memref<18x32x128xf32, #tpu.memory_space<vmem>>, vector<8x16x128xf32>
    %c1_48 = arith.constant 1 : index
    %c2_49 = arith.constant 2 : index
    %c0_50 = arith.constant 0 : index
    %64 = vector.load %arg5[%c1_48, %c2_49, %c0_50] : memref<3x3x128xf32, #tpu.memory_space<vmem>>, vector<1x1x128xf32>
    %65 = vector.shape_cast %64 : vector<1x1x128xf32> to vector<128xf32>
    %66 = vector.shape_cast %65 : vector<128xf32> to vector<1x1x128xf32>
    %67 = vector.broadcast %66 : vector<1x1x128xf32> to vector<8x16x128xf32>
    %68 = arith.mulf %63, %67 : vector<8x16x128xf32>
    %69 = arith.addf %62, %68 : vector<8x16x128xf32>
    %c6 = arith.constant 6 : index
    %c7_51 = arith.constant 7 : index
    %c0_52 = arith.constant 0 : index
    %70 = vector.load %arg17[%c6, %c7_51, %c0_52] : memref<18x32x128xf32, #tpu.memory_space<vmem>>, vector<8x16x128xf32>
    %c2_53 = arith.constant 2 : index
    %c0_54 = arith.constant 0 : index
    %c0_55 = arith.constant 0 : index
    %71 = vector.load %arg5[%c2_53, %c0_54, %c0_55] : memref<3x3x128xf32, #tpu.memory_space<vmem>>, vector<1x1x128xf32>
    %72 = vector.shape_cast %71 : vector<1x1x128xf32> to vector<128xf32>
    %73 = vector.shape_cast %72 : vector<128xf32> to vector<1x1x128xf32>
    %74 = vector.broadcast %73 : vector<1x1x128xf32> to vector<8x16x128xf32>
    %75 = arith.mulf %70, %74 : vector<8x16x128xf32>
    %76 = arith.addf %69, %75 : vector<8x16x128xf32>
    %c6_56 = arith.constant 6 : index
    %c8_57 = arith.constant 8 : index
    %c0_58 = arith.constant 0 : index
    %77 = vector.load %arg17[%c6_56, %c8_57, %c0_58] : memref<18x32x128xf32, #tpu.memory_space<vmem>>, vector<8x16x128xf32>
    %c2_59 = arith.constant 2 : index
    %c1_60 = arith.constant 1 : index
    %c0_61 = arith.constant 0 : index
    %78 = vector.load %arg5[%c2_59, %c1_60, %c0_61] : memref<3x3x128xf32, #tpu.memory_space<vmem>>, vector<1x1x128xf32>
    %79 = vector.shape_cast %78 : vector<1x1x128xf32> to vector<128xf32>
    %80 = vector.shape_cast %79 : vector<128xf32> to vector<1x1x128xf32>
    %81 = vector.broadcast %80 : vector<1x1x128xf32> to vector<8x16x128xf32>
    %82 = arith.mulf %77, %81 : vector<8x16x128xf32>
    %83 = arith.addf %76, %82 : vector<8x16x128xf32>
    %c6_62 = arith.constant 6 : index
    %c9_63 = arith.constant 9 : index
    %c0_64 = arith.constant 0 : index
    %84 = vector.load %arg17[%c6_62, %c9_63, %c0_64] : memref<18x32x128xf32, #tpu.memory_space<vmem>>, vector<8x16x128xf32>
    %c2_65 = arith.constant 2 : index
    %c2_66 = arith.constant 2 : index
    %c0_67 = arith.constant 0 : index
    %85 = vector.load %arg5[%c2_65, %c2_66, %c0_67] : memref<3x3x128xf32, #tpu.memory_space<vmem>>, vector<1x1x128xf32>
    %86 = vector.shape_cast %85 : vector<1x1x128xf32> to vector<128xf32>
    %87 = vector.shape_cast %86 : vector<128xf32> to vector<1x1x128xf32>
    %88 = vector.broadcast %87 : vector<1x1x128xf32> to vector<8x16x128xf32>
    %89 = arith.mulf %84, %88 : vector<8x16x128xf32>
    %90 = arith.addf %83, %89 : vector<8x16x128xf32>
    %c5_68 = arith.constant 5 : index
    %c3 = arith.constant 3 : index
    %c0_69 = arith.constant 0 : index
    %91 = vector.load %arg17[%c5_68, %c3, %c0_69] : memref<18x32x128xf32, #tpu.memory_space<vmem>>, vector<8x16x128xf32>
    %c0_70 = arith.constant 0 : index
    %c0_71 = arith.constant 0 : index
    %92 = vector.load %arg6[%c0_70, %c0_71] : memref<11x128xf32, #tpu.memory_space<vmem>>, vector<1x128xf32>
    %93 = vector.shape_cast %92 : vector<1x128xf32> to vector<128xf32>
    %94 = vector.shape_cast %93 : vector<128xf32> to vector<1x1x128xf32>
    %95 = vector.broadcast %94 : vector<1x1x128xf32> to vector<8x16x128xf32>
    %96 = arith.mulf %91, %95 : vector<8x16x128xf32>
    %97 = arith.addf %90, %96 : vector<8x16x128xf32>
    %c5_72 = arith.constant 5 : index
    %c4_73 = arith.constant 4 : index
    %c0_74 = arith.constant 0 : index
    %98 = vector.load %arg17[%c5_72, %c4_73, %c0_74] : memref<18x32x128xf32, #tpu.memory_space<vmem>>, vector<8x16x128xf32>
    %c1_75 = arith.constant 1 : index
    %c0_76 = arith.constant 0 : index
    %99 = vector.load %arg6[%c1_75, %c0_76] : memref<11x128xf32, #tpu.memory_space<vmem>>, vector<1x128xf32>
    %100 = vector.shape_cast %99 : vector<1x128xf32> to vector<128xf32>
    %101 = vector.shape_cast %100 : vector<128xf32> to vector<1x1x128xf32>
    %102 = vector.broadcast %101 : vector<1x1x128xf32> to vector<8x16x128xf32>
    %103 = arith.mulf %98, %102 : vector<8x16x128xf32>
    %104 = arith.addf %97, %103 : vector<8x16x128xf32>
    %c5_77 = arith.constant 5 : index
    %c5_78 = arith.constant 5 : index
    %c0_79 = arith.constant 0 : index
    %105 = vector.load %arg17[%c5_77, %c5_78, %c0_79] : memref<18x32x128xf32, #tpu.memory_space<vmem>>, vector<8x16x128xf32>
    %c2_80 = arith.constant 2 : index
    %c0_81 = arith.constant 0 : index
    %106 = vector.load %arg6[%c2_80, %c0_81] : memref<11x128xf32, #tpu.memory_space<vmem>>, vector<1x128xf32>
    %107 = vector.shape_cast %106 : vector<1x128xf32> to vector<128xf32>
    %108 = vector.shape_cast %107 : vector<128xf32> to vector<1x1x128xf32>
    %109 = vector.broadcast %108 : vector<1x1x128xf32> to vector<8x16x128xf32>
    %110 = arith.mulf %105, %109 : vector<8x16x128xf32>
    %111 = arith.addf %104, %110 : vector<8x16x128xf32>
    %c5_82 = arith.constant 5 : index
    %c6_83 = arith.constant 6 : index
    %c0_84 = arith.constant 0 : index
    %112 = vector.load %arg17[%c5_82, %c6_83, %c0_84] : memref<18x32x128xf32, #tpu.memory_space<vmem>>, vector<8x16x128xf32>
    %c3_85 = arith.constant 3 : index
    %c0_86 = arith.constant 0 : index
    %113 = vector.load %arg6[%c3_85, %c0_86] : memref<11x128xf32, #tpu.memory_space<vmem>>, vector<1x128xf32>
    %114 = vector.shape_cast %113 : vector<1x128xf32> to vector<128xf32>
    %115 = vector.shape_cast %114 : vector<128xf32> to vector<1x1x128xf32>
    %116 = vector.broadcast %115 : vector<1x1x128xf32> to vector<8x16x128xf32>
    %117 = arith.mulf %112, %116 : vector<8x16x128xf32>
    %118 = arith.addf %111, %117 : vector<8x16x128xf32>
    %c5_87 = arith.constant 5 : index
    %c7_88 = arith.constant 7 : index
    %c0_89 = arith.constant 0 : index
    %119 = vector.load %arg17[%c5_87, %c7_88, %c0_89] : memref<18x32x128xf32, #tpu.memory_space<vmem>>, vector<8x16x128xf32>
    %c4_90 = arith.constant 4 : index
    %c0_91 = arith.constant 0 : index
    %120 = vector.load %arg6[%c4_90, %c0_91] : memref<11x128xf32, #tpu.memory_space<vmem>>, vector<1x128xf32>
    %121 = vector.shape_cast %120 : vector<1x128xf32> to vector<128xf32>
    %122 = vector.shape_cast %121 : vector<128xf32> to vector<1x1x128xf32>
    %123 = vector.broadcast %122 : vector<1x1x128xf32> to vector<8x16x128xf32>
    %124 = arith.mulf %119, %123 : vector<8x16x128xf32>
    %125 = arith.addf %118, %124 : vector<8x16x128xf32>
    %c5_92 = arith.constant 5 : index
    %c8_93 = arith.constant 8 : index
    %c0_94 = arith.constant 0 : index
    %126 = vector.load %arg17[%c5_92, %c8_93, %c0_94] : memref<18x32x128xf32, #tpu.memory_space<vmem>>, vector<8x16x128xf32>
    %c5_95 = arith.constant 5 : index
    %c0_96 = arith.constant 0 : index
    %127 = vector.load %arg6[%c5_95, %c0_96] : memref<11x128xf32, #tpu.memory_space<vmem>>, vector<1x128xf32>
    %128 = vector.shape_cast %127 : vector<1x128xf32> to vector<128xf32>
    %129 = vector.shape_cast %128 : vector<128xf32> to vector<1x1x128xf32>
    %130 = vector.broadcast %129 : vector<1x1x128xf32> to vector<8x16x128xf32>
    %131 = arith.mulf %126, %130 : vector<8x16x128xf32>
    %132 = arith.addf %125, %131 : vector<8x16x128xf32>
    %c5_97 = arith.constant 5 : index
    %c9_98 = arith.constant 9 : index
    %c0_99 = arith.constant 0 : index
    %133 = vector.load %arg17[%c5_97, %c9_98, %c0_99] : memref<18x32x128xf32, #tpu.memory_space<vmem>>, vector<8x16x128xf32>
    %c6_100 = arith.constant 6 : index
    %c0_101 = arith.constant 0 : index
    %134 = vector.load %arg6[%c6_100, %c0_101] : memref<11x128xf32, #tpu.memory_space<vmem>>, vector<1x128xf32>
    %135 = vector.shape_cast %134 : vector<1x128xf32> to vector<128xf32>
    %136 = vector.shape_cast %135 : vector<128xf32> to vector<1x1x128xf32>
    %137 = vector.broadcast %136 : vector<1x1x128xf32> to vector<8x16x128xf32>
    %138 = arith.mulf %133, %137 : vector<8x16x128xf32>
    %139 = arith.addf %132, %138 : vector<8x16x128xf32>
    %c5_102 = arith.constant 5 : index
    %c10 = arith.constant 10 : index
    %c0_103 = arith.constant 0 : index
    %140 = vector.load %arg17[%c5_102, %c10, %c0_103] : memref<18x32x128xf32, #tpu.memory_space<vmem>>, vector<8x16x128xf32>
    %c7_104 = arith.constant 7 : index
    %c0_105 = arith.constant 0 : index
    %141 = vector.load %arg6[%c7_104, %c0_105] : memref<11x128xf32, #tpu.memory_space<vmem>>, vector<1x128xf32>
    %142 = vector.shape_cast %141 : vector<1x128xf32> to vector<128xf32>
    %143 = vector.shape_cast %142 : vector<128xf32> to vector<1x1x128xf32>
    %144 = vector.broadcast %143 : vector<1x1x128xf32> to vector<8x16x128xf32>
    %145 = arith.mulf %140, %144 : vector<8x16x128xf32>
    %146 = arith.addf %139, %145 : vector<8x16x128xf32>
    %c5_106 = arith.constant 5 : index
    %c11 = arith.constant 11 : index
    %c0_107 = arith.constant 0 : index
    %147 = vector.load %arg17[%c5_106, %c11, %c0_107] : memref<18x32x128xf32, #tpu.memory_space<vmem>>, vector<8x16x128xf32>
    %c8_108 = arith.constant 8 : index
    %c0_109 = arith.constant 0 : index
    %148 = vector.load %arg6[%c8_108, %c0_109] : memref<11x128xf32, #tpu.memory_space<vmem>>, vector<1x128xf32>
    %149 = vector.shape_cast %148 : vector<1x128xf32> to vector<128xf32>
    %150 = vector.shape_cast %149 : vector<128xf32> to vector<1x1x128xf32>
    %151 = vector.broadcast %150 : vector<1x1x128xf32> to vector<8x16x128xf32>
    %152 = arith.mulf %147, %151 : vector<8x16x128xf32>
    %153 = arith.addf %146, %152 : vector<8x16x128xf32>
    %c5_110 = arith.constant 5 : index
    %c12 = arith.constant 12 : index
    %c0_111 = arith.constant 0 : index
    %154 = vector.load %arg17[%c5_110, %c12, %c0_111] : memref<18x32x128xf32, #tpu.memory_space<vmem>>, vector<8x16x128xf32>
    %c9_112 = arith.constant 9 : index
    %c0_113 = arith.constant 0 : index
    %155 = vector.load %arg6[%c9_112, %c0_113] : memref<11x128xf32, #tpu.memory_space<vmem>>, vector<1x128xf32>
    %156 = vector.shape_cast %155 : vector<1x128xf32> to vector<128xf32>
    %157 = vector.shape_cast %156 : vector<128xf32> to vector<1x1x128xf32>
    %158 = vector.broadcast %157 : vector<1x1x128xf32> to vector<8x16x128xf32>
    %159 = arith.mulf %154, %158 : vector<8x16x128xf32>
    %160 = arith.addf %153, %159 : vector<8x16x128xf32>
    %c5_114 = arith.constant 5 : index
    %c13 = arith.constant 13 : index
    %c0_115 = arith.constant 0 : index
    %161 = vector.load %arg17[%c5_114, %c13, %c0_115] : memref<18x32x128xf32, #tpu.memory_space<vmem>>, vector<8x16x128xf32>
    %c10_116 = arith.constant 10 : index
    %c0_117 = arith.constant 0 : index
    %162 = vector.load %arg6[%c10_116, %c0_117] : memref<11x128xf32, #tpu.memory_space<vmem>>, vector<1x128xf32>
    %163 = vector.shape_cast %162 : vector<1x128xf32> to vector<128xf32>
    %164 = vector.shape_cast %163 : vector<128xf32> to vector<1x1x128xf32>
    %165 = vector.broadcast %164 : vector<1x1x128xf32> to vector<8x16x128xf32>
    %166 = arith.mulf %161, %165 : vector<8x16x128xf32>
    %167 = arith.addf %160, %166 : vector<8x16x128xf32>
    %c0_118 = arith.constant 0 : index
    %c8_119 = arith.constant 8 : index
    %c0_120 = arith.constant 0 : index
    %168 = vector.load %arg17[%c0_118, %c8_119, %c0_120] : memref<18x32x128xf32, #tpu.memory_space<vmem>>, vector<8x16x128xf32>
    %c0_121 = arith.constant 0 : index
    %c0_122 = arith.constant 0 : index
    %169 = vector.load %arg7[%c0_121, %c0_122] : memref<11x128xf32, #tpu.memory_space<vmem>>, vector<1x128xf32>
    %170 = vector.shape_cast %169 : vector<1x128xf32> to vector<128xf32>
    %171 = vector.shape_cast %170 : vector<128xf32> to vector<1x1x128xf32>
    %172 = vector.broadcast %171 : vector<1x1x128xf32> to vector<8x16x128xf32>
    %173 = arith.mulf %168, %172 : vector<8x16x128xf32>
    %174 = arith.addf %167, %173 : vector<8x16x128xf32>
    %c1_123 = arith.constant 1 : index
    %c8_124 = arith.constant 8 : index
    %c0_125 = arith.constant 0 : index
    %175 = vector.load %arg17[%c1_123, %c8_124, %c0_125] : memref<18x32x128xf32, #tpu.memory_space<vmem>>, vector<8x16x128xf32>
    %c1_126 = arith.constant 1 : index
    %c0_127 = arith.constant 0 : index
    %176 = vector.load %arg7[%c1_126, %c0_127] : memref<11x128xf32, #tpu.memory_space<vmem>>, vector<1x128xf32>
    %177 = vector.shape_cast %176 : vector<1x128xf32> to vector<128xf32>
    %178 = vector.shape_cast %177 : vector<128xf32> to vector<1x1x128xf32>
    %179 = vector.broadcast %178 : vector<1x1x128xf32> to vector<8x16x128xf32>
    %180 = arith.mulf %175, %179 : vector<8x16x128xf32>
    %181 = arith.addf %174, %180 : vector<8x16x128xf32>
    %c2_128 = arith.constant 2 : index
    %c8_129 = arith.constant 8 : index
    %c0_130 = arith.constant 0 : index
    %182 = vector.load %arg17[%c2_128, %c8_129, %c0_130] : memref<18x32x128xf32, #tpu.memory_space<vmem>>, vector<8x16x128xf32>
    %c2_131 = arith.constant 2 : index
    %c0_132 = arith.constant 0 : index
    %183 = vector.load %arg7[%c2_131, %c0_132] : memref<11x128xf32, #tpu.memory_space<vmem>>, vector<1x128xf32>
    %184 = vector.shape_cast %183 : vector<1x128xf32> to vector<128xf32>
    %185 = vector.shape_cast %184 : vector<128xf32> to vector<1x1x128xf32>
    %186 = vector.broadcast %185 : vector<1x1x128xf32> to vector<8x16x128xf32>
    %187 = arith.mulf %182, %186 : vector<8x16x128xf32>
    %188 = arith.addf %181, %187 : vector<8x16x128xf32>
    %c3_133 = arith.constant 3 : index
    %c8_134 = arith.constant 8 : index
    %c0_135 = arith.constant 0 : index
    %189 = vector.load %arg17[%c3_133, %c8_134, %c0_135] : memref<18x32x128xf32, #tpu.memory_space<vmem>>, vector<8x16x128xf32>
    %c3_136 = arith.constant 3 : index
    %c0_137 = arith.constant 0 : index
    %190 = vector.load %arg7[%c3_136, %c0_137] : memref<11x128xf32, #tpu.memory_space<vmem>>, vector<1x128xf32>
    %191 = vector.shape_cast %190 : vector<1x128xf32> to vector<128xf32>
    %192 = vector.shape_cast %191 : vector<128xf32> to vector<1x1x128xf32>
    %193 = vector.broadcast %192 : vector<1x1x128xf32> to vector<8x16x128xf32>
    %194 = arith.mulf %189, %193 : vector<8x16x128xf32>
    %195 = arith.addf %188, %194 : vector<8x16x128xf32>
    %c4_138 = arith.constant 4 : index
    %c8_139 = arith.constant 8 : index
    %c0_140 = arith.constant 0 : index
    %196 = vector.load %arg17[%c4_138, %c8_139, %c0_140] : memref<18x32x128xf32, #tpu.memory_space<vmem>>, vector<8x16x128xf32>
    %c4_141 = arith.constant 4 : index
    %c0_142 = arith.constant 0 : index
    %197 = vector.load %arg7[%c4_141, %c0_142] : memref<11x128xf32, #tpu.memory_space<vmem>>, vector<1x128xf32>
    %198 = vector.shape_cast %197 : vector<1x128xf32> to vector<128xf32>
    %199 = vector.shape_cast %198 : vector<128xf32> to vector<1x1x128xf32>
    %200 = vector.broadcast %199 : vector<1x1x128xf32> to vector<8x16x128xf32>
    %201 = arith.mulf %196, %200 : vector<8x16x128xf32>
    %202 = arith.addf %195, %201 : vector<8x16x128xf32>
    %c5_143 = arith.constant 5 : index
    %c8_144 = arith.constant 8 : index
    %c0_145 = arith.constant 0 : index
    %203 = vector.load %arg17[%c5_143, %c8_144, %c0_145] : memref<18x32x128xf32, #tpu.memory_space<vmem>>, vector<8x16x128xf32>
    %c5_146 = arith.constant 5 : index
    %c0_147 = arith.constant 0 : index
    %204 = vector.load %arg7[%c5_146, %c0_147] : memref<11x128xf32, #tpu.memory_space<vmem>>, vector<1x128xf32>
    %205 = vector.shape_cast %204 : vector<1x128xf32> to vector<128xf32>
    %206 = vector.shape_cast %205 : vector<128xf32> to vector<1x1x128xf32>
    %207 = vector.broadcast %206 : vector<1x1x128xf32> to vector<8x16x128xf32>
    %208 = arith.mulf %203, %207 : vector<8x16x128xf32>
    %209 = arith.addf %202, %208 : vector<8x16x128xf32>
    %c6_148 = arith.constant 6 : index
    %c8_149 = arith.constant 8 : index
    %c0_150 = arith.constant 0 : index
    %210 = vector.load %arg17[%c6_148, %c8_149, %c0_150] : memref<18x32x128xf32, #tpu.memory_space<vmem>>, vector<8x16x128xf32>
    %c6_151 = arith.constant 6 : index
    %c0_152 = arith.constant 0 : index
    %211 = vector.load %arg7[%c6_151, %c0_152] : memref<11x128xf32, #tpu.memory_space<vmem>>, vector<1x128xf32>
    %212 = vector.shape_cast %211 : vector<1x128xf32> to vector<128xf32>
    %213 = vector.shape_cast %212 : vector<128xf32> to vector<1x1x128xf32>
    %214 = vector.broadcast %213 : vector<1x1x128xf32> to vector<8x16x128xf32>
    %215 = arith.mulf %210, %214 : vector<8x16x128xf32>
    %216 = arith.addf %209, %215 : vector<8x16x128xf32>
    %c7_153 = arith.constant 7 : index
    %c8_154 = arith.constant 8 : index
    %c0_155 = arith.constant 0 : index
    %217 = vector.load %arg17[%c7_153, %c8_154, %c0_155] : memref<18x32x128xf32, #tpu.memory_space<vmem>>, vector<8x16x128xf32>
    %c7_156 = arith.constant 7 : index
    %c0_157 = arith.constant 0 : index
    %218 = vector.load %arg7[%c7_156, %c0_157] : memref<11x128xf32, #tpu.memory_space<vmem>>, vector<1x128xf32>
    %219 = vector.shape_cast %218 : vector<1x128xf32> to vector<128xf32>
    %220 = vector.shape_cast %219 : vector<128xf32> to vector<1x1x128xf32>
    %221 = vector.broadcast %220 : vector<1x1x128xf32> to vector<8x16x128xf32>
    %222 = arith.mulf %217, %221 : vector<8x16x128xf32>
    %223 = arith.addf %216, %222 : vector<8x16x128xf32>
    %c8_158 = arith.constant 8 : index
    %c8_159 = arith.constant 8 : index
    %c0_160 = arith.constant 0 : index
    %224 = vector.load %arg17[%c8_158, %c8_159, %c0_160] : memref<18x32x128xf32, #tpu.memory_space<vmem>>, vector<8x16x128xf32>
    %c8_161 = arith.constant 8 : index
    %c0_162 = arith.constant 0 : index
    %225 = vector.load %arg7[%c8_161, %c0_162] : memref<11x128xf32, #tpu.memory_space<vmem>>, vector<1x128xf32>
    %226 = vector.shape_cast %225 : vector<1x128xf32> to vector<128xf32>
    %227 = vector.shape_cast %226 : vector<128xf32> to vector<1x1x128xf32>
    %228 = vector.broadcast %227 : vector<1x1x128xf32> to vector<8x16x128xf32>
    %229 = arith.mulf %224, %228 : vector<8x16x128xf32>
    %230 = arith.addf %223, %229 : vector<8x16x128xf32>
    %c9_163 = arith.constant 9 : index
    %c8_164 = arith.constant 8 : index
    %c0_165 = arith.constant 0 : index
    %231 = vector.load %arg17[%c9_163, %c8_164, %c0_165] : memref<18x32x128xf32, #tpu.memory_space<vmem>>, vector<8x16x128xf32>
    %c9_166 = arith.constant 9 : index
    %c0_167 = arith.constant 0 : index
    %232 = vector.load %arg7[%c9_166, %c0_167] : memref<11x128xf32, #tpu.memory_space<vmem>>, vector<1x128xf32>
    %233 = vector.shape_cast %232 : vector<1x128xf32> to vector<128xf32>
    %234 = vector.shape_cast %233 : vector<128xf32> to vector<1x1x128xf32>
    %235 = vector.broadcast %234 : vector<1x1x128xf32> to vector<8x16x128xf32>
    %236 = arith.mulf %231, %235 : vector<8x16x128xf32>
    %237 = arith.addf %230, %236 : vector<8x16x128xf32>
    %c10_168 = arith.constant 10 : index
    %c8_169 = arith.constant 8 : index
    %c0_170 = arith.constant 0 : index
    %238 = vector.load %arg17[%c10_168, %c8_169, %c0_170] : memref<18x32x128xf32, #tpu.memory_space<vmem>>, vector<8x16x128xf32>
    %c10_171 = arith.constant 10 : index
    %c0_172 = arith.constant 0 : index
    %239 = vector.load %arg7[%c10_171, %c0_172] : memref<11x128xf32, #tpu.memory_space<vmem>>, vector<1x128xf32>
    %240 = vector.shape_cast %239 : vector<1x128xf32> to vector<128xf32>
    %241 = vector.shape_cast %240 : vector<128xf32> to vector<1x1x128xf32>
    %242 = vector.broadcast %241 : vector<1x1x128xf32> to vector<8x16x128xf32>
    %243 = arith.mulf %238, %242 : vector<8x16x128xf32>
    %244 = arith.addf %237, %243 : vector<8x16x128xf32>
    %c0_173 = arith.constant 0 : index
    %c0_174 = arith.constant 0 : index
    %245 = vector.load %arg9[%c0_173, %c0_174] : memref<1x128xf32, #tpu.memory_space<vmem>>, vector<1x128xf32>
    %246 = vector.shape_cast %245 : vector<1x128xf32> to vector<1x1x128xf32>
    %247 = vector.broadcast %246 : vector<1x1x128xf32> to vector<8x16x128xf32>
    %248 = arith.mulf %244, %247 : vector<8x16x128xf32>
    %c0_175 = arith.constant 0 : index
    %c0_176 = arith.constant 0 : index
    %249 = vector.load %arg10[%c0_175, %c0_176] : memref<1x128xf32, #tpu.memory_space<vmem>>, vector<1x128xf32>
    %250 = vector.shape_cast %249 : vector<1x128xf32> to vector<1x1x128xf32>
    %251 = vector.broadcast %250 : vector<1x1x128xf32> to vector<8x16x128xf32>
    %252 = arith.addf %248, %251 : vector<8x16x128xf32>
    %253 = vector.shape_cast %252 : vector<8x16x128xf32> to vector<128x128xf32>
    %254 = arith.truncf %253 : vector<128x128xf32> to vector<128x128xbf16>
    %c0_177 = arith.constant 0 : index
    %c0_178 = arith.constant 0 : index
    %255 = vector.load %arg11[%c0_177, %c0_178] : memref<128x512xbf16, #tpu.memory_space<vmem>>, vector<128x512xbf16>
    %cst_179 = arith.constant dense<0.000000e+00> : vector<128x512xf32>
    %256 = tpu.matmul %254, %255, %cst_179 {dimension_numbers = #tpu.dot_dimension_numbers<[1], [0], [0], [1], [0, 0, 1, 1], [], []>} : vector<128x128xbf16>, vector<128x512xbf16>, vector<128x512xf32> -> vector<128x512xf32>
    %257 = arith.truncf %256 : vector<128x512xf32> to vector<128x512xbf16>
    %c0_180 = arith.constant 0 : index
    %c0_181 = arith.constant 0 : index
    %258 = vector.load %arg12[%c0_180, %c0_181] : memref<1x512xbf16, #tpu.memory_space<vmem>>, vector<1x512xbf16>
    %259 = vector.broadcast %258 : vector<1x512xbf16> to vector<128x512xbf16>
    %260 = arith.addf %257, %259 : vector<128x512xbf16>
    %cst_182 = arith.constant 5.000000e-01 : bf16
    %261 = vector.broadcast %cst_182 : bf16 to vector<128x512xbf16>
    %262 = arith.mulf %261, %260 : vector<128x512xbf16>
    %cst_183 = arith.constant 4.467770e-02 : bf16
    %263 = vector.broadcast %cst_183 : bf16 to vector<128x512xbf16>
    %264 = arith.mulf %263, %260 : vector<128x512xbf16>
    %265 = arith.mulf %264, %260 : vector<128x512xbf16>
    %266 = arith.mulf %265, %260 : vector<128x512xbf16>
    %267 = arith.addf %260, %266 : vector<128x512xbf16>
    %cst_184 = arith.constant 7.968750e-01 : bf16
    %268 = vector.broadcast %cst_184 : bf16 to vector<128x512xbf16>
    %269 = arith.mulf %268, %267 : vector<128x512xbf16>
    %270 = math.tanh %269 : vector<128x512xbf16>
    %cst_185 = arith.constant 1.000000e+00 : bf16
    %271 = vector.broadcast %cst_185 : bf16 to vector<128x512xbf16>
    %272 = arith.addf %271, %270 : vector<128x512xbf16>
    %273 = arith.mulf %262, %272 : vector<128x512xbf16>
    %c0_186 = arith.constant 0 : index
    %c0_187 = arith.constant 0 : index
    %274 = vector.load %arg13[%c0_186, %c0_187] : memref<512x128xbf16, #tpu.memory_space<vmem>>, vector<512x128xbf16>
    %cst_188 = arith.constant dense<0.000000e+00> : vector<128x128xf32>
    %275 = tpu.matmul %273, %274, %cst_188 {dimension_numbers = #tpu.dot_dimension_numbers<[1], [0], [0], [1], [0, 0, 1, 1], [], []>} : vector<128x512xbf16>, vector<512x128xbf16>, vector<128x128xf32> -> vector<128x128xf32>
    %c0_189 = arith.constant 0 : index
    %c0_190 = arith.constant 0 : index
    %276 = vector.load %arg14[%c0_189, %c0_190] : memref<1x128xf32, #tpu.memory_space<vmem>>, vector<1x128xf32>
    %277 = vector.broadcast %276 : vector<1x128xf32> to vector<128x128xf32>
    %278 = arith.addf %275, %277 : vector<128x128xf32>
    %279 = vector.shape_cast %278 : vector<128x128xf32> to vector<8x16x128xf32>
    %c0_191 = arith.constant 0 : index
    %c0_192 = arith.constant 0 : index
    %280 = vector.load %arg15[%c0_191, %c0_192] : memref<1x128xf32, #tpu.memory_space<vmem>>, vector<1x128xf32>
    %281 = vector.shape_cast %280 : vector<1x128xf32> to vector<1x1x128xf32>
    %282 = vector.broadcast %281 : vector<1x1x128xf32> to vector<8x16x128xf32>
    %283 = arith.mulf %279, %282 : vector<8x16x128xf32>
    %284 = arith.addf %283, %6 : vector<8x16x128xf32>
    %285 = arith.truncf %284 : vector<8x16x128xf32> to vector<8x16x128xbf16>
    %c0_193 = arith.constant 0 : index
    %c0_194 = arith.constant 0 : index
    %c0_195 = arith.constant 0 : index
    %c0_196 = arith.constant 0 : index
    %286 = vector.load %arg16[%c0_193, %c0_194, %c0_195, %c0_196] : memref<1x8x16x128xbf16, #tpu.memory_space<vmem>>, vector<1x8x16x128xbf16>
    %287 = vector.shape_cast %286 : vector<1x8x16x128xbf16> to vector<8x16x128xbf16>
    %288 = vector.shape_cast %285 : vector<8x16x128xbf16> to vector<1x8x16x128xbf16>
    tpu.vector_store %arg16[%c0_193, %c0_194, %c0_195, %c0_196], %288 {strides = array<i32>} : memref<1x8x16x128xbf16, #tpu.memory_space<vmem>>, vector<1x8x16x128xbf16>,
    return
  }
  func.func @transform_0(%arg0: i32, %arg1: i32) -> (i32, i32, i32, i32) {
    %c0_i32 = arith.constant 0 : i32
    %c0_i32_0 = arith.constant 0 : i32
    %c0_i32_1 = arith.constant 0 : i32
    return %arg0, %arg1, %c0_i32, %c0_i32_0 : i32, i32, i32, i32
  }
  func.func @transform_2(%arg0: i32, %arg1: i32) -> (i32, i32) {
    %c0_i32 = arith.constant 0 : i32
    %c0_i32_0 = arith.constant 0 : i32
    %c0_i32_1 = arith.constant 0 : i32
    return %c0_i32, %c0_i32_0 : i32, i32
  }
  func.func @transform_3(%arg0: i32, %arg1: i32) -> (i32, i32, i32) {
    %c0_i32 = arith.constant 0 : i32
    %c0_i32_0 = arith.constant 0 : i32
    %c0_i32_1 = arith.constant 0 : i32
    %c0_i32_2 = arith.constant 0 : i32
    return %c0_i32, %c0_i32_0, %c0_i32_1 : i32, i32, i32
  }
  func.func @transform_4(%arg0: i32, %arg1: i32) -> (i32, i32) {
    %c0_i32 = arith.constant 0 : i32
    %c0_i32_0 = arith.constant 0 : i32
    %c0_i32_1 = arith.constant 0 : i32
    return %c0_i32, %c0_i32_0 : i32, i32
  }
  func.func @transform_5(%arg0: i32, %arg1: i32) -> (i32, i32) {
    %c0_i32 = arith.constant 0 : i32
    %c0_i32_0 = arith.constant 0 : i32
    %c0_i32_1 = arith.constant 0 : i32
    return %c0_i32, %c0_i32_0 : i32, i32
  }
  func.func @transform_6(%arg0: i32, %arg1: i32) -> (i32, i32) {
    %c0_i32 = arith.constant 0 : i32
    %c0_i32_0 = arith.constant 0 : i32
    %c0_i32_1 = arith.constant 0 : i32
    return %c0_i32, %c0_i32_0 : i32, i32
  }
  func.func @transform_7(%arg0: i32, %arg1: i32) -> (i32, i32) {
    %c0_i32 = arith.constant 0 : i32
    %c0_i32_0 = arith.constant 0 : i32
    %c0_i32_1 = arith.constant 0 : i32
    return %c0_i32, %c0_i32_0 : i32, i32
  }
  func.func @transform_8(%arg0: i32, %arg1: i32) -> (i32, i32) {
    %c0_i32 = arith.constant 0 : i32
    %c0_i32_0 = arith.constant 0 : i32
    %c0_i32_1 = arith.constant 0 : i32
    return %c0_i32, %c0_i32_0 : i32, i32
  }
  func.func @transform_9(%arg0: i32, %arg1: i32) -> (i32, i32) {
    %c0_i32 = arith.constant 0 : i32
    %c0_i32_0 = arith.constant 0 : i32
    %c0_i32_1 = arith.constant 0 : i32
    return %c0_i32, %c0_i32_0 : i32, i32
  }
  func.func @transform_10(%arg0: i32, %arg1: i32) -> (i32, i32) {
    %c0_i32 = arith.constant 0 : i32
    %c0_i32_0 = arith.constant 0 : i32
    %c0_i32_1 = arith.constant 0 : i32
    return %c0_i32, %c0_i32_0 : i32, i32
  }
  func.func @transform_11(%arg0: i32, %arg1: i32) -> (i32, i32) {
    %c0_i32 = arith.constant 0 : i32
    %c0_i32_0 = arith.constant 0 : i32
    %c0_i32_1 = arith.constant 0 : i32
    return %c0_i32, %c0_i32_0 : i32, i32
  }
  func.func @transform_12(%arg0: i32, %arg1: i32) -> (i32, i32) {
    %c0_i32 = arith.constant 0 : i32
    %c0_i32_0 = arith.constant 0 : i32
    %c0_i32_1 = arith.constant 0 : i32
    return %c0_i32, %c0_i32_0 : i32, i32
  }
  func.func @transform_13(%arg0: i32, %arg1: i32) -> (i32, i32) {
    %c0_i32 = arith.constant 0 : i32
    %c0_i32_0 = arith.constant 0 : i32
    %c0_i32_1 = arith.constant 0 : i32
    return %c0_i32, %c0_i32_0 : i32, i32
  }
  func.func @transform_14(%arg0: i32, %arg1: i32) -> (i32, i32, i32, i32) {
    %c0_i32 = arith.constant 0 : i32
    %c0_i32_0 = arith.constant 0 : i32
    %c0_i32_1 = arith.constant 0 : i32
    return %arg0, %arg1, %c0_i32, %c0_i32_0 : i32, i32, i32, i32
  }
}

</mosaic_0001>

<llo_original>
// kernel: tpu_custom_call.1
$region0: #{tpu_custom_call.1}
  #allocation0 [shape = 'u32[]', space=smem, size = 0x4, offset = 0x4, fixed_abs, tag = 'smem constant byte address 0x4 - core index']
  #allocation1 [shape = 'u32[144,128]{1,0:T(1,128)}', space=vmem, size = 0x12000, scoped, tag = 'internal scratch']
  #allocation2 [shape = 'f32[18,32,128]{2,1,0:T(8,128)}', space=vmem, size = 0x48000, scoped, tag = 'scratch operand']
  #allocation3 [shape = 'bf16[10,16,128]{2,1,0:T(16,128)(2,1)}', space=vmem, size = 0xa000, scoped, tag = 'scratch operand']
  #allocation15 [shape = 's32[]', space=sflag, size = 0x4, offset = 0, fixed_abs, tag = 'sflag constant byte address 0x0 - dummy sync flag']
  #allocation16 [shape = 's32[]', space=sflag, size = 0x4, offset = 0, fixed_abs, tag = 'sflag constant byte address 0x0 - dummy sync flag']
  #allocation17 [shape = 'u32[]', space=smem, size = 0x4, offset = 0x44, fixed_abs, tag = 'smem constant byte address 0x44 - assertion arg 0']
  #allocation18 [shape = 'u32[]', space=smem, size = 0x4, offset = 0x48, fixed_abs, tag = 'smem constant byte address 0x48 - assertion arg 1']
  #allocation20 [shape = 's32[]', space=sflag, size = 0x4, offset = 0, fixed_abs, tag = 'sflag constant byte address 0x0 - dummy sync flag']
  #allocation21 [shape = 's32[]', space=sflag, size = 0x4, offset = 0, fixed_abs, tag = 'sflag constant byte address 0x0 - dummy sync flag']
  %s0 = inlined_call_operand.hbm [shape: bf16[2,32,16,128], index: 0, kind: input, shape index: {}]
  %s1 = inlined_call_operand.hbm [shape: bf16[2,32,16,128], index: 1, kind: input, shape index: {}]
  %s2 = inlined_call_operand.vmem [shape: f32[1,128], index: 2, kind: input, shape index: {}]
  %s3 = inlined_call_operand.hbm [shape: f32[3,3,128], index: 3, kind: input, shape index: {}]
  %s4 = inlined_call_operand.hbm [shape: f32[11,128], index: 4, kind: input, shape index: {}]
  %s5 = inlined_call_operand.vmem [shape: f32[11,128], index: 5, kind: input, shape index: {}]
  %s6 = inlined_call_operand.vmem [shape: f32[1,128], index: 6, kind: input, shape index: {}]
  %s7 = inlined_call_operand.vmem [shape: f32[1,128], index: 7, kind: input, shape index: {}]
  %s8 = inlined_call_operand.vmem [shape: f32[1,128], index: 8, kind: input, shape index: {}]
  %s9 = inlined_call_operand.hbm [shape: bf16[128,512], index: 9, kind: input, shape index: {}]
  %s10 = inlined_call_operand.vmem [shape: bf16[1,512], index: 10, kind: input, shape index: {}]
  %s11 = inlined_call_operand.hbm [shape: bf16[512,128], index: 11, kind: input, shape index: {}]
  %s12 = inlined_call_operand.vmem [shape: f32[1,128], index: 12, kind: input, shape index: {}]
  %s13 = inlined_call_operand.vmem [shape: f32[1,128], index: 13, kind: input, shape index: {}]
  %s14 = inlined_call_operand.hbm [shape: bf16[2,32,16,128], index: 14, kind: output, shape index: {}]
  %s15 = sld [smem:[#allocation0]]
  $region131: #{tpu_custom_call.1} parent=0
    _
  %s17 = ssub.s32 1, %s15
  %s18 = scalar_select 0, %s17, %s15
  $region1: #{tpu_custom_call.1} parent=0
    #allocation4 [shape = 'u8[65536]{0}', space=vmem, size = 0x10000, scoped, tag = 'input window, operand 0']
    #allocation5 [shape = 's32[2]{0}', space=sflag, size = 0x8, scoped, tag = 'scoped memory for tpu_custom_call.1']
    #allocation6 [shape = 's32[2]{0}', space=sflag, size = 0x8, scoped, tag = 'scoped memory for tpu_custom_call.1']
    #allocation7 [shape = 'u8[6144]{0}', space=vmem, size = 0x1800, scoped, tag = 'input window, operand 3, single buffered']
    #allocation8 [shape = 's32[1]{0}', space=sflag, size = 0x4, scoped, tag = 'scoped memory for tpu_custom_call.1']
    #allocation9 [shape = 'u8[8192]{0}', space=vmem, size = 0x2000, scoped, tag = 'input window, operand 4, single buffered']
    #allocation10 [shape = 'u8[131072]{0}', space=vmem, size = 0x20000, scoped, tag = 'input window, operand 9, single buffered']
    #allocation11 [shape = 's32[1]{0}', space=sflag, size = 0x4, scoped, tag = 'scoped memory for tpu_custom_call.1']
    #allocation12 [shape = 'u8[131072]{0}', space=vmem, size = 0x20000, scoped, tag = 'input window, operand 11, single buffered']
    #allocation13 [shape = 'u8[65536]{0}', space=vmem, size = 0x10000, scoped, tag = 'output window, operand 0']
    %19 = vsyncpa [#allocation5], 0
    %s20 = scalar_lea.sflag [#allocation5], 1
    %21 = vsyncpa %s20, 0
    %22 = vsyncpa [#allocation8], 0
    %23 = vsyncpa [#allocation11], 0
    %24 = vsyncpa [#allocation6], 0
    %s25 = scalar_lea.sflag [#allocation6], 1
    %26 = vsyncpa %s25, 0
    loop: start=0, step=1, limit=10
    $region2: #{tpu_custom_call.1} parent=1 // loop_pre_header
      _
    $region3: #{tpu_custom_call.1} parent=1 // loop_header
      %s28 = sphi 0, %s32
      %p29 = scmp.ge.s32.totalorder %s28, 10
      %s35 = sphi 0, %s47
      %s36 = sphi 0, %s43
      %s37 = sphi 0, %s35
      %s38 = sphi 0, %s36
      %s39 = sphi 0, %s37
      %s40 = sphi 0, %s38
      %s52 = sphi 0, %s54
      %s55 = sphi 0, %s52
      %s56 = sphi 0, %s55
      %s72 = sphi 0, %s56
      %s76 = sphi 0, %s76
      %s78 = sphi 0, %s76
      %s79 = sphi 0, %s78
      %s93 = sphi 0, %s79
      %s97 = sphi 0, %s97
      %s99 = sphi 0, %s97
      %s100 = sphi 0, %s99
      %s114 = sphi 0, %s100
      %s118 = sphi 0, %s118
      %s120 = sphi 0, %s118
      %s121 = sphi 0, %s120
      %s135 = sphi 0, %s121
      %s139 = sphi 0, %s139
      %s141 = sphi 0, %s139
      %s142 = sphi 0, %s141
      %s156 = sphi 0, %s142
      %s160 = sphi 0, %s160
      %s162 = sphi 0, %s160
      %s163 = sphi 0, %s162
      %s177 = sphi 0, %s163
      %s181 = sphi 0, %s181
      %s183 = sphi 0, %s181
      %s184 = sphi 0, %s183
      %s198 = sphi 0, %s184
      %s202 = sphi 0, %s202
      %s204 = sphi 0, %s202
      %s205 = sphi 0, %s204
      %s219 = sphi 0, %s205
      %s223 = sphi 0, %s223
      %s225 = sphi 0, %s223
      %s226 = sphi 0, %s225
      %s240 = sphi 0, %s226
      %s244 = sphi 0, %s244
      %s246 = sphi 0, %s244
      %s247 = sphi 0, %s246
      %s261 = sphi 0, %s247
      %s265 = sphi 0, %s265
      %s267 = sphi 0, %s265
      %s268 = sphi 0, %s267
      %s282 = sphi 0, %s268
      %s286 = sphi 0, %s286
      %s288 = sphi 0, %s286
      %s289 = sphi 0, %s288
      %s303 = sphi 0, %s289
      %s307 = sphi 0, %s307
      %s309 = sphi 0, %s307
      %s310 = sphi 0, %s309
      %s324 = sphi 0, %s310
      %s332 = sphi 0, %s334
      %s335 = sphi 0, %s332
      %s336 = sphi 0, %s335
      %s352 = sphi 0, %s336
    $region4: #{tpu_custom_call.1} parent=1 // loop_header_branch
      %31 = sbr.rel (%p29) target = $region8
    $region5: #{tpu_custom_call.1} parent=1 // loop_body
      %s33 = ssub.s32 %s28, 1
      %s34 = ssub.s32 %s28, 2
      %s41 = sadd.s32 1, %s36
      %p42 = scmp.ge.s32.totalorder %s41, 4
      %s43 = scalar_select %p42, 0, %s41
      %s44 = sadd.s32 1, %s35
      %s45 = scalar_select %p42, %s44, %s35
      %p46 = scmp.ge.s32.totalorder %s45, 2
      %s47 = scalar_select %p46, 0, %s45
      %s48 = ssub.s32 %s35, %s47
      %s49 = ssub.s32 %s36, %s43
      %s50 = sor.u32 %s48, %s49
      %p51 = scmp.eq.s32.totalorder %s50, 0
      %s53 = sadd.s32 %s52, 1
      %s54 = scalar_select %p51, %s52, %s53
      %p57 = pneg %p51
      %p58 = scmp.eq.s32.totalorder %s28, 7
      %p59 = por %p57, %p58
      %p60 = scmp.ne.s32.totalorder %s52, %s55
      %p61 = scmp.eq.s32.totalorder %s28, 0
      %p62 = por %p60, %p61
      %p63 = scmp.ne.s32.totalorder %s52, %s55
      %p64 = scmp.eq.s32.totalorder %s33, 7
      %p65 = por %p63, %p64
      %p66 = scmp.ne.s32.totalorder %s55, %s56
      %p67 = scmp.eq.s32.totalorder %s33, 0
      %p68 = por %p66, %p67
      %p69 = scmp.ne.s32.totalorder %s55, %s56
      %p70 = scmp.eq.s32.totalorder %s34, 7
      %p71 = por %p69, %p70
      %p73 = scmp.ne.s32.totalorder %s56, %s72
      %p74 = scmp.eq.s32.totalorder %s34, 0
      %p75 = por %p73, %p74
      %s77 = sadd.s32 %s76, 1
      %p80 = scmp.eq.s32.totalorder %s28, 7
      %p81 = scmp.ne.s32.totalorder %s76, %s78
      %p82 = scmp.eq.s32.totalorder %s28, 0
      %p83 = por %p81, %p82
      %p84 = scmp.ne.s32.totalorder %s76, %s78
      %p85 = scmp.eq.s32.totalorder %s33, 7
      %p86 = por %p84, %p85
      %p87 = scmp.ne.s32.totalorder %s78, %s79
      %p88 = scmp.eq.s32.totalorder %s33, 0
      %p89 = por %p87, %p88
      %p90 = scmp.ne.s32.totalorder %s78, %s79
      %p91 = scmp.eq.s32.totalorder %s34, 7
      %p92 = por %p90, %p91
      %p94 = scmp.ne.s32.totalorder %s79, %s93
      %p95 = scmp.eq.s32.totalorder %s34, 0
      %p96 = por %p94, %p95
      %s98 = sadd.s32 %s97, 1
      %p101 = scmp.eq.s32.totalorder %s28, 7
      %p102 = scmp.ne.s32.totalorder %s97, %s99
      %p103 = scmp.eq.s32.totalorder %s28, 0
      %p104 = por %p102, %p103
      %p105 = scmp.ne.s32.totalorder %s97, %s99
      %p106 = scmp.eq.s32.totalorder %s33, 7
      %p107 = por %p105, %p106
      %p108 = scmp.ne.s32.totalorder %s99, %s100
      %p109 = scmp.eq.s32.totalorder %s33, 0
      %p110 = por %p108, %p109
      %p111 = scmp.ne.s32.totalorder %s99, %s100
      %p112 = scmp.eq.s32.totalorder %s34, 7
      %p113 = por %p111, %p112
      %p115 = scmp.ne.s32.totalorder %s100, %s114
      %p116 = scmp.eq.s32.totalorder %s34, 0
      %p117 = por %p115, %p116
      %s119 = sadd.s32 %s118, 1
      %p122 = scmp.eq.s32.totalorder %s28, 7
      %p123 = scmp.ne.s32.totalorder %s118, %s120
      %p124 = scmp.eq.s32.totalorder %s28, 0
      %p125 = por %p123, %p124
      %p126 = scmp.ne.s32.totalorder %s118, %s120
      %p127 = scmp.eq.s32.totalorder %s33, 7
      %p128 = por %p126, %p127
      %p129 = scmp.ne.s32.totalorder %s120, %s121
      %p130 = scmp.eq.s32.totalorder %s33, 0
      %p131 = por %p129, %p130
      %p132 = scmp.ne.s32.totalorder %s120, %s121
      %p133 = scmp.eq.s32.totalorder %s34, 7
      %p134 = por %p132, %p133
      %p136 = scmp.ne.s32.totalorder %s121, %s135
      %p137 = scmp.eq.s32.totalorder %s34, 0
      %p138 = por %p136, %p137
      %s140 = sadd.s32 %s139, 1
      %p143 = scmp.eq.s32.totalorder %s28, 7
      %p144 = scmp.ne.s32.totalorder %s139, %s141
      %p145 = scmp.eq.s32.totalorder %s28, 0
      %p146 = por %p144, %p145
      %p147 = scmp.ne.s32.totalorder %s139, %s141
      %p148 = scmp.eq.s32.totalorder %s33, 7
      %p149 = por %p147, %p148
      %p150 = scmp.ne.s32.totalorder %s141, %s142
      %p151 = scmp.eq.s32.totalorder %s33, 0
      %p152 = por %p150, %p151
      %p153 = scmp.ne.s32.totalorder %s141, %s142
      %p154 = scmp.eq.s32.totalorder %s34, 7
      %p155 = por %p153, %p154
      %p157 = scmp.ne.s32.totalorder %s142, %s156
      %p158 = scmp.eq.s32.totalorder %s34, 0
      %p159 = por %p157, %p158
      %s161 = sadd.s32 %s160, 1
      %p164 = scmp.eq.s32.totalorder %s28, 7
      %p165 = scmp.ne.s32.totalorder %s160, %s162
      %p166 = scmp.eq.s32.totalorder %s28, 0
      %p167 = por %p165, %p166
      %p168 = scmp.ne.s32.totalorder %s160, %s162
      %p169 = scmp.eq.s32.totalorder %s33, 7
      %p170 = por %p168, %p169
      %p171 = scmp.ne.s32.totalorder %s162, %s163
      %p172 = scmp.eq.s32.totalorder %s33, 0
      %p173 = por %p171, %p172
      %p174 = scmp.ne.s32.totalorder %s162, %s163
      %p175 = scmp.eq.s32.totalorder %s34, 7
      %p176 = por %p174, %p175
      %p178 = scmp.ne.s32.totalorder %s163, %s177
      %p179 = scmp.eq.s32.totalorder %s34, 0
      %p180 = por %p178, %p179
      %s182 = sadd.s32 %s181, 1
      %p185 = scmp.eq.s32.totalorder %s28, 7
      %p186 = scmp.ne.s32.totalorder %s181, %s183
      %p187 = scmp.eq.s32.totalorder %s28, 0
      %p188 = por %p186, %p187
      %p189 = scmp.ne.s32.totalorder %s181, %s183
      %p190 = scmp.eq.s32.totalorder %s33, 7
      %p191 = por %p189, %p190
      %p192 = scmp.ne.s32.totalorder %s183, %s184
      %p193 = scmp.eq.s32.totalorder %s33, 0
      %p194 = por %p192, %p193
      %p195 = scmp.ne.s32.totalorder %s183, %s184
      %p196 = scmp.eq.s32.totalorder %s34, 7
      %p197 = por %p195, %p196
      %p199 = scmp.ne.s32.totalorder %s184, %s198
      %p200 = scmp.eq.s32.totalorder %s34, 0
      %p201 = por %p199, %p200
      %s203 = sadd.s32 %s202, 1
      %p206 = scmp.eq.s32.totalorder %s28, 7
      %p207 = scmp.ne.s32.totalorder %s202, %s204
      %p208 = scmp.eq.s32.totalorder %s28, 0
      %p209 = por %p207, %p208
      %p210 = scmp.ne.s32.totalorder %s202, %s204
      %p211 = scmp.eq.s32.totalorder %s33, 7
      %p212 = por %p210, %p211
      %p213 = scmp.ne.s32.totalorder %s204, %s205
      %p214 = scmp.eq.s32.totalorder %s33, 0
      %p215 = por %p213, %p214
      %p216 = scmp.ne.s32.totalorder %s204, %s205
      %p217 = scmp.eq.s32.totalorder %s34, 7
      %p218 = por %p216, %p217
      %p220 = scmp.ne.s32.totalorder %s205, %s219
      %p221 = scmp.eq.s32.totalorder %s34, 0
      %p222 = por %p220, %p221
      %s224 = sadd.s32 %s223, 1
      %p227 = scmp.eq.s32.totalorder %s28, 7
      %p228 = scmp.ne.s32.totalorder %s223, %s225
      %p229 = scmp.eq.s32.totalorder %s28, 0
      %p230 = por %p228, %p229
      %p231 = scmp.ne.s32.totalorder %s223, %s225
      %p232 = scmp.eq.s32.totalorder %s33, 7
      %p233 = por %p231, %p232
      %p234 = scmp.ne.s32.totalorder %s225, %s226
      %p235 = scmp.eq.s32.totalorder %s33, 0
      %p236 = por %p234, %p235
      %p237 = scmp.ne.s32.totalorder %s225, %s226
      %p238 = scmp.eq.s32.totalorder %s34, 7
      %p239 = por %p237, %p238
      %p241 = scmp.ne.s32.totalorder %s226, %s240
      %p242 = scmp.eq.s32.totalorder %s34, 0
      %p243 = por %p241, %p242
      %s245 = sadd.s32 %s244, 1
      %p248 = scmp.eq.s32.totalorder %s28, 7
      %p249 = scmp.ne.s32.totalorder %s244, %s246
      %p250 = scmp.eq.s32.totalorder %s28, 0
      %p251 = por %p249, %p250
      %p252 = scmp.ne.s32.totalorder %s244, %s246
      %p253 = scmp.eq.s32.totalorder %s33, 7
      %p254 = por %p252, %p253
      %p255 = scmp.ne.s32.totalorder %s246, %s247
      %p256 = scmp.eq.s32.totalorder %s33, 0
      %p257 = por %p255, %p256
      %p258 = scmp.ne.s32.totalorder %s246, %s247
      %p259 = scmp.eq.s32.totalorder %s34, 7
      %p260 = por %p258, %p259
      %p262 = scmp.ne.s32.totalorder %s247, %s261
      %p263 = scmp.eq.s32.totalorder %s34, 0
      %p264 = por %p262, %p263
      %s266 = sadd.s32 %s265, 1
      %p269 = scmp.eq.s32.totalorder %s28, 7
      %p270 = scmp.ne.s32.totalorder %s265, %s267
      %p271 = scmp.eq.s32.totalorder %s28, 0
      %p272 = por %p270, %p271
      %p273 = scmp.ne.s32.totalorder %s265, %s267
      %p274 = scmp.eq.s32.totalorder %s33, 7
      %p275 = por %p273, %p274
      %p276 = scmp.ne.s32.totalorder %s267, %s268
      %p277 = scmp.eq.s32.totalorder %s33, 0
      %p278 = por %p276, %p277
      %p279 = scmp.ne.s32.totalorder %s267, %s268
      %p280 = scmp.eq.s32.totalorder %s34, 7
      %p281 = por %p279, %p280
      %p283 = scmp.ne.s32.totalorder %s268, %s282
      %p284 = scmp.eq.s32.totalorder %s34, 0
      %p285 = por %p283, %p284
      %s287 = sadd.s32 %s286, 1
      %p290 = scmp.eq.s32.totalorder %s28, 7
      %p291 = scmp.ne.s32.totalorder %s286, %s288
      %p292 = scmp.eq.s32.totalorder %s28, 0
      %p293 = por %p291, %p292
      %p294 = scmp.ne.s32.totalorder %s286, %s288
      %p295 = scmp.eq.s32.totalorder %s33, 7
      %p296 = por %p294, %p295
      %p297 = scmp.ne.s32.totalorder %s288, %s289
      %p298 = scmp.eq.s32.totalorder %s33, 0
      %p299 = por %p297, %p298
      %p300 = scmp.ne.s32.totalorder %s288, %s289
      %p301 = scmp.eq.s32.totalorder %s34, 7
      %p302 = por %p300, %p301
      %p304 = scmp.ne.s32.totalorder %s289, %s303
      %p305 = scmp.eq.s32.totalorder %s34, 0
      %p306 = por %p304, %p305
      %s308 = sadd.s32 %s307, 1
      %p311 = scmp.eq.s32.totalorder %s28, 7
      %p312 = scmp.ne.s32.totalorder %s307, %s309
      %p313 = scmp.eq.s32.totalorder %s28, 0
      %p314 = por %p312, %p313
      %p315 = scmp.ne.s32.totalorder %s307, %s309
      %p316 = scmp.eq.s32.totalorder %s33, 7
      %p317 = por %p315, %p316
      %p318 = scmp.ne.s32.totalorder %s309, %s310
      %p319 = scmp.eq.s32.totalorder %s33, 0
      %p320 = por %p318, %p319
      %p321 = scmp.ne.s32.totalorder %s309, %s310
      %p322 = scmp.eq.s32.totalorder %s34, 7
      %p323 = por %p321, %p322
      %p325 = scmp.ne.s32.totalorder %s310, %s324
      %p326 = scmp.eq.s32.totalorder %s34, 0
      %p327 = por %p325, %p326
      %s328 = ssub.s32 %s35, %s47
      %s329 = ssub.s32 %s36, %s43
      %s330 = sor.u32 %s328, %s329
      %p331 = scmp.eq.s32.totalorder %s330, 0
      %s333 = sadd.s32 %s332, 1
      %s334 = scalar_select %p331, %s332, %s333
      %p337 = pneg %p331
      %p338 = scmp.eq.s32.totalorder %s28, 7
      %p339 = por %p337, %p338
      %p340 = scmp.ne.s32.totalorder %s332, %s335
      %p341 = scmp.eq.s32.totalorder %s28, 0
      %p342 = por %p340, %p341
      %p343 = scmp.ne.s32.totalorder %s332, %s335
      %p344 = scmp.eq.s32.totalorder %s33, 7
      %p345 = por %p343, %p344
      %p346 = scmp.ne.s32.totalorder %s335, %s336
      %p347 = scmp.eq.s32.totalorder %s33, 0
      %p348 = por %p346, %p347
      %p349 = scmp.ne.s32.totalorder %s335, %s336
      %p350 = scmp.eq.s32.totalorder %s34, 7
      %p351 = por %p349, %p350
      %p353 = scmp.ne.s32.totalorder %s336, %s352
      %p354 = scmp.eq.s32.totalorder %s34, 0
      %p355 = por %p353, %p354
      %p356 = scmp.le.s32.totalorder 1, %s28
      %p357 = scmp.lt.s32.totalorder %s28, 9
      %p358 = pnand %p356, %p357
      %p359 = pneg %p358
      // Predicated region
      $region9: #{tpu_custom_call.1} parent=5 // pred_check
        _
      $region10: #{tpu_custom_call.1} parent=5 // pred_check_branch
        %361 = sbr.rel (%p358) target = $region12
      $region11: #{tpu_custom_call.1} parent=5 // pred_region
        %s362 = ssub.s32 %s28, 1
        // Predicated region
        $region13: #{tpu_custom_call.1} parent=11 // pred_check
          %p363 = pneg %p89
        $region14: #{tpu_custom_call.1} parent=11 // pred_check_branch
          %365 = sbr.rel (%p363) target = $region16
        $region15: #{tpu_custom_call.1} parent=11 // pred_region
          _
        $region16: #{tpu_custom_call.1} parent=11 // pred_fallthru
          _
        // Predicated region
        $region17: #{tpu_custom_call.1} parent=11 // pred_check
          %p366 = pneg %p110
        $region18: #{tpu_custom_call.1} parent=11 // pred_check_branch
          %368 = sbr.rel (%p366) target = $region20
        $region19: #{tpu_custom_call.1} parent=11 // pred_region
          %s370 = ssub.s32 192, 192
          %371 = vsyncadd [#allocation8], %s370
          %s372 = sshll.u32 [#allocation7], 4
          %s373 = int_to_ptr.vmem [resolvable:$true] %s372
          %378 = dma.hbm_to_vmem [thread:$0]  %s3, 192, %s373, [#allocation8], 64, 64, 4
        $region20: #{tpu_custom_call.1} parent=11 // pred_fallthru
          _
        // Predicated region
        $region21: #{tpu_custom_call.1} parent=11 // pred_check
          %p379 = pneg %p131
        $region22: #{tpu_custom_call.1} parent=11 // pred_check_branch
          %381 = sbr.rel (%p379) target = $region24
        $region23: #{tpu_custom_call.1} parent=11 // pred_region
          %s383 = ssub.s32 256, 256
          %384 = vsyncadd [#allocation8], %s383
          %s385 = sshll.u32 [#allocation9], 4
          %s386 = int_to_ptr.vmem [resolvable:$true] %s385
          %391 = dma.hbm_to_vmem [thread:$0]  %s4, 256, %s386, [#allocation8], 128, 128, 8
        $region24: #{tpu_custom_call.1} parent=11 // pred_fallthru
          _
        // Predicated region
        $region25: #{tpu_custom_call.1} parent=11 // pred_check
          %p392 = pneg %p152
        $region26: #{tpu_custom_call.1} parent=11 // pred_check_branch
          %394 = sbr.rel (%p392) target = $region28
        $region27: #{tpu_custom_call.1} parent=11 // pred_region
          _
        $region28: #{tpu_custom_call.1} parent=11 // pred_fallthru
          _
        // Predicated region
        $region29: #{tpu_custom_call.1} parent=11 // pred_check
          %p395 = pneg %p173
        $region30: #{tpu_custom_call.1} parent=11 // pred_check_branch
          %397 = sbr.rel (%p395) target = $region32
        $region31: #{tpu_custom_call.1} parent=11 // pred_region
          _
        $region32: #{tpu_custom_call.1} parent=11 // pred_fallthru
          _
        // Predicated region
        $region33: #{tpu_custom_call.1} parent=11 // pred_check
          %p398 = pneg %p194
        $region34: #{tpu_custom_call.1} parent=11 // pred_check_branch
          %400 = sbr.rel (%p398) target = $region36
        $region35: #{tpu_custom_call.1} parent=11 // pred_region
          _
        $region36: #{tpu_custom_call.1} parent=11 // pred_fallthru
          _
        // Predicated region
        $region37: #{tpu_custom_call.1} parent=11 // pred_check
          %p401 = pneg %p215
        $region38: #{tpu_custom_call.1} parent=11 // pred_check_branch
          %403 = sbr.rel (%p401) target = $region40
        $region39: #{tpu_custom_call.1} parent=11 // pred_region
          _
        $region40: #{tpu_custom_call.1} parent=11 // pred_fallthru
          _
        // Predicated region
        $region41: #{tpu_custom_call.1} parent=11 // pred_check
          %p404 = pneg %p236
        $region42: #{tpu_custom_call.1} parent=11 // pred_check_branch
          %406 = sbr.rel (%p404) target = $region44
        $region43: #{tpu_custom_call.1} parent=11 // pred_region
          %s408 = ssub.s32 4096, 4096
          %409 = vsyncadd [#allocation11], %s408
          %s410 = sshll.u32 [#allocation10], 4
          %s411 = int_to_ptr.vmem [resolvable:$true] %s410
          %416 = dma.hbm_to_vmem [thread:$0]  %s9, 4096, %s411, [#allocation11], 256, 256, 16
        $region44: #{tpu_custom_call.1} parent=11 // pred_fallthru
          _
        // Predicated region
        $region45: #{tpu_custom_call.1} parent=11 // pred_check
          %p417 = pneg %p257
        $region46: #{tpu_custom_call.1} parent=11 // pred_check_branch
          %419 = sbr.rel (%p417) target = $region48
        $region47: #{tpu_custom_call.1} parent=11 // pred_region
          _
        $region48: #{tpu_custom_call.1} parent=11 // pred_fallthru
          _
        // Predicated region
        $region49: #{tpu_custom_call.1} parent=11 // pred_check
          %p420 = pneg %p278
        $region50: #{tpu_custom_call.1} parent=11 // pred_check_branch
          %422 = sbr.rel (%p420) target = $region52
        $region51: #{tpu_custom_call.1} parent=11 // pred_region
          %s424 = ssub.s32 4096, 4096
          %425 = vsyncadd [#allocation11], %s424
          %s426 = sshll.u32 [#allocation12], 4
          %s427 = int_to_ptr.vmem [resolvable:$true] %s426
          %432 = dma.hbm_to_vmem [thread:$0]  %s11, 4096, %s427, [#allocation11], 64, 64, 4
        $region52: #{tpu_custom_call.1} parent=11 // pred_fallthru
          _
        // Predicated region
        $region53: #{tpu_custom_call.1} parent=11 // pred_check
          %p433 = pneg %p299
        $region54: #{tpu_custom_call.1} parent=11 // pred_check_branch
          %435 = sbr.rel (%p433) target = $region56
        $region55: #{tpu_custom_call.1} parent=11 // pred_region
          _
        $region56: #{tpu_custom_call.1} parent=11 // pred_fallthru
          _
        // Predicated region
        $region57: #{tpu_custom_call.1} parent=11 // pred_check
          %p436 = pneg %p320
        $region58: #{tpu_custom_call.1} parent=11 // pred_check_branch
          %438 = sbr.rel (%p436) target = $region60
        $region59: #{tpu_custom_call.1} parent=11 // pred_region
          _
        $region60: #{tpu_custom_call.1} parent=11 // pred_fallthru
          _
      $region12: #{tpu_custom_call.1} parent=5 // pred_fallthru
        _
      %p439 = scmp.lt.s32.totalorder %s28, 8
      // Predicated region
      $region61: #{tpu_custom_call.1} parent=5 // pred_check
        %p440 = pneg %p439
      $region62: #{tpu_custom_call.1} parent=5 // pred_check_branch
        %442 = sbr.rel (%p440) target = $region64
      $region63: #{tpu_custom_call.1} parent=5 // pred_region
        // Predicated region
        $region65: #{tpu_custom_call.1} parent=63 // pred_check
          %p443 = pneg %p62
        $region66: #{tpu_custom_call.1} parent=63 // pred_check_branch
          %445 = sbr.rel (%p443) target = $region68
        $region67: #{tpu_custom_call.1} parent=63 // pred_region
          %s446 = sand.u32 %s52, 1
          %s447 = scalar_lea.sflag [#allocation5], %s446
          %s448 = sand.u32 %s52, 1
          %s449 = smul.addr %s448, 64
          %s450 = scalar_lea.vmem [#allocation4], %s449
          %s451 = smul.u32 8, %s36
          %s453 = ssub.s32 1024, 1024
          %454 = vsyncadd %s447, %s453
          %s455 = smul.addr %s451, 2
          %s456 = smul.addr %s35, 64
          %s457 = sadd.s32 %s455, %s456
          %s458 = smul.addr %s457, 64
          %s459 = scalar_lea.hbm %s0, %s458
          %s460 = sshll.u32 %s450, 4
          %s461 = int_to_ptr.vmem [resolvable:$true] %s460
          %466 = dma.hbm_to_vmem [thread:$0]  %s459, 1024, %s461, %s447, 64, 64, 4
        $region68: #{tpu_custom_call.1} parent=63 // pred_fallthru
          _
      $region64: #{tpu_custom_call.1} parent=5 // pred_fallthru
        _
      %p467 = scmp.le.s32.totalorder 1, %s28
      %p468 = scmp.lt.s32.totalorder %s28, 9
      %p469 = pnand %p467, %p468
      %p470 = pneg %p469
      // Predicated region
      $region69: #{tpu_custom_call.1} parent=5 // pred_check
        _
      $region70: #{tpu_custom_call.1} parent=5 // pred_check_branch
        %472 = sbr.rel (%p469) target = $region72
      $region71: #{tpu_custom_call.1} parent=5 // pred_region
        %s473 = ssub.s32 %s28, 1
        %s474 = sand.u32 %s55, 1
        %s475 = scalar_lea.sflag [#allocation5], %s474
        %s476 = sand.u32 %s55, 1
        %s477 = smul.addr %s476, 64
        %s478 = scalar_lea.vmem [#allocation4], %s477
        // Predicated region
        $region73: #{tpu_custom_call.1} parent=71 // pred_check
          %p479 = pneg %p68
        $region74: #{tpu_custom_call.1} parent=71 // pred_check_branch
          %481 = sbr.rel (%p479) target = $region76
        $region75: #{tpu_custom_call.1} parent=71 // pred_region
          %482 = dma.done %s475, 1024
        $region76: #{tpu_custom_call.1} parent=71 // pred_fallthru
          _
        // Predicated region
        $region77: #{tpu_custom_call.1} parent=71 // pred_check
          %p483 = pneg %p110
        $region78: #{tpu_custom_call.1} parent=71 // pred_check_branch
          %485 = sbr.rel (%p483) target = $region80
        $region79: #{tpu_custom_call.1} parent=71 // pred_region
          %486 = dma.done [#allocation8], 192
        $region80: #{tpu_custom_call.1} parent=71 // pred_fallthru
          _
        // Predicated region
        $region81: #{tpu_custom_call.1} parent=71 // pred_check
          %p487 = pneg %p131
        $region82: #{tpu_custom_call.1} parent=71 // pred_check_branch
          %489 = sbr.rel (%p487) target = $region84
        $region83: #{tpu_custom_call.1} parent=71 // pred_region
          %490 = dma.done [#allocation8], 256
        $region84: #{tpu_custom_call.1} parent=71 // pred_fallthru
          _
        // Predicated region
        $region85: #{tpu_custom_call.1} parent=71 // pred_check
          %p491 = pneg %p236
        $region86: #{tpu_custom_call.1} parent=71 // pred_check_branch
          %493 = sbr.rel (%p491) target = $region88
        $region87: #{tpu_custom_call.1} parent=71 // pred_region
          %494 = dma.done [#allocation11], 4096
        $region88: #{tpu_custom_call.1} parent=71 // pred_fallthru
          _
        // Predicated region
        $region89: #{tpu_custom_call.1} parent=71 // pred_check
          %p495 = pneg %p278
        $region90: #{tpu_custom_call.1} parent=71 // pred_check_branch
          %497 = sbr.rel (%p495) target = $region92
        $region91: #{tpu_custom_call.1} parent=71 // pred_region
          %498 = dma.done [#allocation11], 4096
        $region92: #{tpu_custom_call.1} parent=71 // pred_fallthru
          _
        %s499 = sand.u32 %s55, 1
        %s500 = scalar_lea.sflag [#allocation5], %s499
        %s501 = sand.u32 %s55, 1
        %s502 = smul.addr %s501, 64
        %s503 = scalar_lea.vmem [#allocation4], %s502
        %p504 = pneg %p68
        %p505 = pneg %p65
        %p506 = pneg %p89
        %p507 = pneg %p86
        %p508 = pneg %p110
        %p509 = pneg %p107
        %p510 = pneg %p131
        %p511 = pneg %p128
        %p512 = pneg %p152
        %p513 = pneg %p149
        %p514 = pneg %p173
        %p515 = pneg %p170
        %p516 = pneg %p194
        %p517 = pneg %p191
        %p518 = pneg %p215
        %p519 = pneg %p212
        %p520 = pneg %p236
        %p521 = pneg %p233
        %p522 = pneg %p257
        %p523 = pneg %p254
        %p524 = pneg %p278
        %p525 = pneg %p275
        %p526 = pneg %p299
        %p527 = pneg %p296
        %p528 = pneg %p320
        %p529 = pneg %p317
        %p530 = pneg %p348
        %p531 = pneg %p345
        %s532 = sand.u32 %s335, 1
        %s533 = scalar_lea.sflag [#allocation6], %s532
        %s534 = sand.u32 %s335, 1
        %s535 = smul.addr %s534, 64
        %s536 = scalar_lea.vmem [#allocation13], %s535
        %s537 = smul.u32 8, %s38
        %s538 = smul.u32 8, %s38
        %544 = vst [vmem:[#allocation2] sm:$0xff] 0.0
        %545 = vst [vmem:[#allocation2 + $0x20] sm:$0xff] 0.0
        %546 = vst [vmem:[#allocation2 + $0x40] sm:$0xff] 0.0
        %547 = vst [vmem:[#allocation2 + $0x60] sm:$0xff] 0.0
        %548 = vst [vmem:[#allocation2 + $0x80] sm:$0xff] 0.0
        %549 = vst [vmem:[#allocation2 + $0xa0] sm:$0xff] 0.0
        %550 = vst [vmem:[#allocation2 + $0xc0] sm:$0xff] 0.0
        %551 = vst [vmem:[#allocation2 + $0xe0] sm:$0xff] 0.0
        %552 = vst [vmem:[#allocation2 + $0x100] sm:$0xff] 0.0
        %553 = vst [vmem:[#allocation2 + $0x120] sm:$0xff] 0.0
        %554 = vst [vmem:[#allocation2 + $0x140] sm:$0xff] 0.0
        %555 = vst [vmem:[#allocation2 + $0x160] sm:$0xff] 0.0
        %556 = vst [vmem:[#allocation2 + $0x180] sm:$0xff] 0.0
        %557 = vst [vmem:[#allocation2 + $0x1a0] sm:$0xff] 0.0
        %558 = vst [vmem:[#allocation2 + $0x1c0] sm:$0xff] 0.0
        %559 = vst [vmem:[#allocation2 + $0x1e0] sm:$0xff] 0.0
        %560 = vst [vmem:[#allocation2 + $0x200] sm:$0xff] 0.0
        %561 = vst [vmem:[#allocation2 + $0x220] sm:$0xff] 0.0
        %562 = vst [vmem:[#allocation2 + $0x18] sm:$0xff] 0.0
        %563 = vst [vmem:[#allocation2 + $0x38] sm:$0xff] 0.0
        %564 = vst [vmem:[#allocation2 + $0x58] sm:$0xff] 0.0
        %565 = vst [vmem:[#allocation2 + $0x78] sm:$0xff] 0.0
        %566 = vst [vmem:[#allocation2 + $0x98] sm:$0xff] 0.0
        %567 = vst [vmem:[#allocation2 + $0xb8] sm:$0xff] 0.0
        %568 = vst [vmem:[#allocation2 + $0xd8] sm:$0xff] 0.0
        %569 = vst [vmem:[#allocation2 + $0xf8] sm:$0xff] 0.0
        %570 = vst [vmem:[#allocation2 + $0x118] sm:$0xff] 0.0
        %571 = vst [vmem:[#allocation2 + $0x138] sm:$0xff] 0.0
        %572 = vst [vmem:[#allocation2 + $0x158] sm:$0xff] 0.0
        %573 = vst [vmem:[#allocation2 + $0x178] sm:$0xff] 0.0
        %574 = vst [vmem:[#allocation2 + $0x198] sm:$0xff] 0.0
        %575 = vst [vmem:[#allocation2 + $0x1b8] sm:$0xff] 0.0
        %576 = vst [vmem:[#allocation2 + $0x1d8] sm:$0xff] 0.0
        %577 = vst [vmem:[#allocation2 + $0x1f8] sm:$0xff] 0.0
        %578 = vst [vmem:[#allocation2 + $0x218] sm:$0xff] 0.0
        %579 = vst [vmem:[#allocation2 + $0x238] sm:$0xff] 0.0
        %v580 = vld [vmem:[%s478] sm:$0xf]
        %v581 = vld [vmem:[%s478 + $0x4] sm:$0xf]
        %v582 = vld [vmem:[%s478 + $0x8] sm:$0xf]
        %v583 = vld [vmem:[%s478 + $0xc] sm:$0xf]
        %v584 = vld [vmem:[%s478 + $0x10] sm:$0xf]
        %v585 = vld [vmem:[%s478 + $0x14] sm:$0xf]
        %v586 = vld [vmem:[%s478 + $0x18] sm:$0xf]
        %v587 = vld [vmem:[%s478 + $0x1c] sm:$0xf]
        %v588 = vld [vmem:[%s478 + $0x20] sm:$0xf]
        %v589 = vld [vmem:[%s478 + $0x24] sm:$0xf]
        %v590 = vld [vmem:[%s478 + $0x28] sm:$0xf]
        %v591 = vld [vmem:[%s478 + $0x2c] sm:$0xf]
        %v592 = vld [vmem:[%s478 + $0x30] sm:$0xf]
        %v593 = vld [vmem:[%s478 + $0x34] sm:$0xf]
        %v594 = vld [vmem:[%s478 + $0x38] sm:$0xf]
        %v595 = vld [vmem:[%s478 + $0x3c] sm:$0xf]
        %v596 = vunpack.c.l.bf16 %v580
        %v597 = vunpack.c.l.bf16 %v581
        %v598 = vunpack.c.l.bf16 %v582
        %v599 = vunpack.c.l.bf16 %v583
        %v600 = vunpack.c.l.bf16 %v584
        %v601 = vunpack.c.l.bf16 %v585
        %v602 = vunpack.c.l.bf16 %v586
        %v603 = vunpack.c.l.bf16 %v587
        %v604 = vunpack.c.l.bf16 %v588
        %v605 = vunpack.c.l.bf16 %v589
        %v606 = vunpack.c.l.bf16 %v590
        %v607 = vunpack.c.l.bf16 %v591
        %v608 = vunpack.c.l.bf16 %v592
        %v609 = vunpack.c.l.bf16 %v593
        %v610 = vunpack.c.l.bf16 %v594
        %v611 = vunpack.c.l.bf16 %v595
        %s612 = scalar_lea.vmem [#allocation2], 160
        %613 = vst [vmem:[%s612 + $0x8] sm:$0xff] %v596
        %614 = vst [vmem:[%s612 + $0x10] sm:$0xff] %v597
        %615 = vst [vmem:[%s612 + $0x28] sm:$0xff] %v598
        %616 = vst [vmem:[%s612 + $0x30] sm:$0xff] %v599
        %617 = vst [vmem:[%s612 + $0x48] sm:$0xff] %v600
        %618 = vst [vmem:[%s612 + $0x50] sm:$0xff] %v601
        %619 = vst [vmem:[%s612 + $0x68] sm:$0xff] %v602
        %620 = vst [vmem:[%s612 + $0x70] sm:$0xff] %v603
        %621 = vst [vmem:[%s612 + $0x88] sm:$0xff] %v604
        %622 = vst [vmem:[%s612 + $0x90] sm:$0xff] %v605
        %623 = vst [vmem:[%s612 + $0xa8] sm:$0xff] %v606
        %624 = vst [vmem:[%s612 + $0xb0] sm:$0xff] %v607
        %625 = vst [vmem:[%s612 + $0xc8] sm:$0xff] %v608
        %626 = vst [vmem:[%s612 + $0xd0] sm:$0xff] %v609
        %627 = vst [vmem:[%s612 + $0xe8] sm:$0xff] %v610
        %628 = vst [vmem:[%s612 + $0xf0] sm:$0xff] %v611
        %p629 = scmp.gt.s32.totalorder %s38, 0
        // Predicated region
        $region93: #{tpu_custom_call.1} parent=71 // pred_check
          %p630 = pneg %p629
        $region94: #{tpu_custom_call.1} parent=71 // pred_check_branch
          %632 = sbr.rel (%p630) target = $region96
        $region95: #{tpu_custom_call.1} parent=71 // pred_region
          %s633 = smul.u32 %s38, 8
          %s634 = ssub.s32 %s633, 5
          $region97: #{tpu_custom_call.1} parent=95
            #allocation14 [shape = 's32[1]{0}', space=sflag, size = 0x4, scoped, tag = 'scoped memory for tpu_custom_call.1']
            %s635 = smul.u32 %s634, 2
            %s636 = smul.u32 %s37, 64
            %s637 = sadd.s32 %s635, %s636
            %s638 = smul.addr %s637, 64
            %s639 = scalar_lea.hbm %s1, %s638
            // Predicated region
            $region98: #{tpu_custom_call.1} parent=97 // pred_check
              _
            $region99: #{tpu_custom_call.1} parent=97 // pred_check_branch
              %641 = sbr.rel target = $region101
            $region100: #{tpu_custom_call.1} parent=97 // pred_region
              %642 = sst [smem:[#allocation17]] [#allocation16]
              %643 = sst [smem:[#allocation18]] [#allocation15]
            $region101: #{tpu_custom_call.1} parent=97 // pred_fallthru
              _
            %645 = shalt.err (0)
            %s647 = sshll.u32 [#allocation3], 4
            %s648 = int_to_ptr.vmem [resolvable:$true] %s647
            %650 = dma.hbm_to_vmem [thread:$0]  %s639, 640, %s648, [#allocation14]
            %s651 = smul.u32 4, 5
            %s652 = smul.u32 %s651, 2
            %s653 = smul.u32 %s652, 1
            %s654 = sshll.u32 %s653, 4
            %655 = dma.done [#allocation14], %s654
          %v656 = vld [vmem:[#allocation3] sm:$0xff]
          %v657 = vld [vmem:[#allocation3 + $0x8] sm:$0xff]
          %v658 = vld [vmem:[#allocation3 + $0x10] sm:$0xff]
          %v659 = vld [vmem:[#allocation3 + $0x18] sm:$0xff]
          %v660 = vld [vmem:[#allocation3 + $0x20] sm:$0xff]
          %v661 = vunpack.c.l.bf16 %v656
          %v662 = vunpack.c.h.bf16 %v656
          %v663 = vunpack.c.l.bf16 %v657
          %v664 = vunpack.c.h.bf16 %v657
          %v665 = vunpack.c.l.bf16 %v658
          %v666 = vunpack.c.h.bf16 %v658
          %v667 = vunpack.c.l.bf16 %v659
          %v668 = vunpack.c.h.bf16 %v659
          %v669 = vunpack.c.l.bf16 %v660
          %v670 = vunpack.c.h.bf16 %v660
          %671 = vst [vmem:[#allocation2 + $0x8] sm:$0xff] %v661
          %672 = vst [vmem:[#allocation2 + $0x10] sm:$0xff] %v662
          %673 = vst [vmem:[#allocation2 + $0x28] sm:$0xff] %v663
          %674 = vst [vmem:[#allocation2 + $0x30] sm:$0xff] %v664
          %675 = vst [vmem:[#allocation2 + $0x48] sm:$0xff] %v665
          %676 = vst [vmem:[#allocation2 + $0x50] sm:$0xff] %v666
          %677 = vst [vmem:[#allocation2 + $0x68] sm:$0xff] %v667
          %678 = vst [vmem:[#allocation2 + $0x70] sm:$0xff] %v668
          %679 = vst [vmem:[#allocation2 + $0x88] sm:$0xff] %v669
          %680 = vst [vmem:[#allocation2 + $0x90] sm:$0xff] %v670
        $region96: #{tpu_custom_call.1} parent=71 // pred_fallthru
          _
        %p681 = scmp.eq.s32.totalorder %s38, 0
        // Predicated region
        $region102: #{tpu_custom_call.1} parent=71 // pred_check
          %p682 = pneg %p681
        $region103: #{tpu_custom_call.1} parent=71 // pred_check_branch
          %684 = sbr.rel (%p682) target = $region105
        $region104: #{tpu_custom_call.1} parent=71 // pred_region
          %685 = vst [vmem:[#allocation2 + $0x8] sm:$0xff] 0.0
          %686 = vst [vmem:[#allocation2 + $0x10] sm:$0xff] 0.0
          %687 = vst [vmem:[#allocation2 + $0x28] sm:$0xff] 0.0
          %688 = vst [vmem:[#allocation2 + $0x30] sm:$0xff] 0.0
          %689 = vst [vmem:[#allocation2 + $0x48] sm:$0xff] 0.0
          %690 = vst [vmem:[#allocation2 + $0x50] sm:$0xff] 0.0
          %691 = vst [vmem:[#allocation2 + $0x68] sm:$0xff] 0.0
          %692 = vst [vmem:[#allocation2 + $0x70] sm:$0xff] 0.0
          %693 = vst [vmem:[#allocation2 + $0x88] sm:$0xff] 0.0
          %694 = vst [vmem:[#allocation2 + $0x90] sm:$0xff] 0.0
        $region105: #{tpu_custom_call.1} parent=71 // pred_fallthru
          _
        %p695 = scmp.lt.s32.totalorder %s38, 3
        // Predicated region
        $region106: #{tpu_custom_call.1} parent=71 // pred_check
          %p696 = pneg %p695
        $region107: #{tpu_custom_call.1} parent=71 // pred_check_branch
          %698 = sbr.rel (%p696) target = $region109
        $region108: #{tpu_custom_call.1} parent=71 // pred_region
          %s699 = sadd.s32 %s38, 1
          %s700 = smul.u32 %s699, 8
          $region110: #{tpu_custom_call.1} parent=108
            #allocation19 [shape = 's32[1]{0}', space=sflag, size = 0x4, scoped, tag = 'scoped memory for tpu_custom_call.1']
            %s701 = smul.u32 %s700, 2
            %s702 = smul.u32 %s37, 64
            %s703 = sadd.s32 %s701, %s702
            %s704 = smul.addr %s703, 64
            %s705 = scalar_lea.hbm %s1, %s704
            %s706 = scalar_lea.vmem [#allocation3], 40
            // Predicated region
            $region111: #{tpu_custom_call.1} parent=110 // pred_check
              _
            $region112: #{tpu_custom_call.1} parent=110 // pred_check_branch
              %708 = sbr.rel target = $region114
            $region113: #{tpu_custom_call.1} parent=110 // pred_region
              %709 = sst [smem:[#allocation17]] [#allocation21]
              %710 = sst [smem:[#allocation18]] [#allocation20]
            $region114: #{tpu_custom_call.1} parent=110 // pred_fallthru
              _
            %712 = shalt.err (0)
            %s714 = sshll.u32 %s706, 4
            %s715 = int_to_ptr.vmem [resolvable:$true] %s714
            %717 = dma.hbm_to_vmem [thread:$0]  %s705, 640, %s715, [#allocation19]
            %s718 = smul.u32 4, 5
            %s719 = smul.u32 %s718, 2
            %s720 = smul.u32 %s719, 1
            %s721 = sshll.u32 %s720, 4
            %722 = dma.done [#allocation19], %s721
          %s723 = scalar_lea.vmem [#allocation3], 40
          %v724 = vld [vmem:[%s723] sm:$0xff]
          %v725 = vld [vmem:[%s723 + $0x8] sm:$0xff]
          %v726 = vld [vmem:[%s723 + $0x10] sm:$0xff]
          %v727 = vld [vmem:[%s723 + $0x18] sm:$0xff]
          %v728 = vld [vmem:[%s723 + $0x20] sm:$0xff]
          %v729 = vunpack.c.l.bf16 %v724
          %v730 = vunpack.c.h.bf16 %v724
          %v731 = vunpack.c.l.bf16 %v725
          %v732 = vunpack.c.h.bf16 %v725
          %v733 = vunpack.c.l.bf16 %v726
          %v734 = vunpack.c.h.bf16 %v726
          %v735 = vunpack.c.l.bf16 %v727
          %v736 = vunpack.c.h.bf16 %v727
          %v737 = vunpack.c.l.bf16 %v728
          %v738 = vunpack.c.h.bf16 %v728
          %s739 = scalar_lea.vmem [#allocation2], 416
          %740 = vst [vmem:[%s739 + $0x8] sm:$0xff] %v729
          %741 = vst [vmem:[%s739 + $0x10] sm:$0xff] %v730
          %742 = vst [vmem:[%s739 + $0x28] sm:$0xff] %v731
          %743 = vst [vmem:[%s739 + $0x30] sm:$0xff] %v732
          %744 = vst [vmem:[%s739 + $0x48] sm:$0xff] %v733
          %745 = vst [vmem:[%s739 + $0x50] sm:$0xff] %v734
          %746 = vst [vmem:[%s739 + $0x68] sm:$0xff] %v735
          %747 = vst [vmem:[%s739 + $0x70] sm:$0xff] %v736
          %748 = vst [vmem:[%s739 + $0x88] sm:$0xff] %v737
          %749 = vst [vmem:[%s739 + $0x90] sm:$0xff] %v738
        $region109: #{tpu_custom_call.1} parent=71 // pred_fallthru
          _
        %p750 = scmp.eq.s32.totalorder %s38, 3
        // Predicated region
        $region115: #{tpu_custom_call.1} parent=71 // pred_check
          %p751 = pneg %p750
        $region116: #{tpu_custom_call.1} parent=71 // pred_check_branch
          %753 = sbr.rel (%p751) target = $region118
        $region117: #{tpu_custom_call.1} parent=71 // pred_region
          %s754 = scalar_lea.vmem [#allocation2], 416
          %755 = vst [vmem:[%s754 + $0x8] sm:$0xff] 0.0
          %756 = vst [vmem:[%s754 + $0x10] sm:$0xff] 0.0
          %757 = vst [vmem:[%s754 + $0x28] sm:$0xff] 0.0
          %758 = vst [vmem:[%s754 + $0x30] sm:$0xff] 0.0
          %759 = vst [vmem:[%s754 + $0x48] sm:$0xff] 0.0
          %760 = vst [vmem:[%s754 + $0x50] sm:$0xff] 0.0
          %761 = vst [vmem:[%s754 + $0x68] sm:$0xff] 0.0
          %762 = vst [vmem:[%s754 + $0x70] sm:$0xff] 0.0
          %763 = vst [vmem:[%s754 + $0x88] sm:$0xff] 0.0
          %764 = vst [vmem:[%s754 + $0x90] sm:$0xff] 0.0
        $region118: #{tpu_custom_call.1} parent=71 // pred_fallthru
          _
        %v765 = vld [vmem:[%s2] sm:$0x1]
        %v767 = vlaneseq
        %v768 = vshrl.u32 %v767, 7
        %v769 = vsub.s32 0, %v768
        %v770 = vrot.slane %v765, %v769
        %v772 = vmul.f32 %v596, %v770
        %v773 = vmul.f32 %v597, %v770
        %v774 = vmul.f32 %v598, %v770
        %v775 = vmul.f32 %v599, %v770
        %v776 = vmul.f32 %v600, %v770
        %v777 = vmul.f32 %v601, %v770
        %v778 = vmul.f32 %v602, %v770
        %v779 = vmul.f32 %v603, %v770
        %v780 = vmul.f32 %v604, %v770
        %v781 = vmul.f32 %v605, %v770
        %v782 = vmul.f32 %v606, %v770
        %v783 = vmul.f32 %v607, %v770
        %v784 = vmul.f32 %v608, %v770
        %v785 = vmul.f32 %v609, %v770
        %v786 = vmul.f32 %v610, %v770
        %v787 = vmul.f32 %v611, %v770
        %v788 = vld [vmem:[%s6] sm:$0x1]
        %v790 = vlaneseq
        %v791 = vshrl.u32 %v790, 7
        %v792 = vsub.s32 0, %v791
        %v793 = vrot.slane %v788, %v792
        %v795 = vadd.f32 %v772, %v793
        %v796 = vadd.f32 %v773, %v793
        %v797 = vadd.f32 %v774, %v793
        %v798 = vadd.f32 %v775, %v793
        %v799 = vadd.f32 %v776, %v793
        %v800 = vadd.f32 %v777, %v793
        %v801 = vadd.f32 %v778, %v793
        %v802 = vadd.f32 %v779, %v793
        %v803 = vadd.f32 %v780, %v793
        %v804 = vadd.f32 %v781, %v793
        %v805 = vadd.f32 %v782, %v793
        %v806 = vadd.f32 %v783, %v793
        %v807 = vadd.f32 %v784, %v793
        %v808 = vadd.f32 %v785, %v793
        %v809 = vadd.f32 %v786, %v793
        %v810 = vadd.f32 %v787, %v793
        %s811 = scalar_lea.vmem [#allocation2], 128
        %v812 = vld [vmem:[%s811 + $0x7] sm:$0xff]
        %v813 = vld [vmem:[%s811 + $0xf] sm:$0xff]
        %v814 = vld [vmem:[%s811 + $0x27] sm:$0xff]
        %v815 = vld [vmem:[%s811 + $0x2f] sm:$0xff]
        %v816 = vld [vmem:[%s811 + $0x47] sm:$0xff]
        %v817 = vld [vmem:[%s811 + $0x4f] sm:$0xff]
        %v818 = vld [vmem:[%s811 + $0x67] sm:$0xff]
        %v819 = vld [vmem:[%s811 + $0x6f] sm:$0xff]
        %v820 = vld [vmem:[%s811 + $0x87] sm:$0xff]
        %v821 = vld [vmem:[%s811 + $0x8f] sm:$0xff]
        %v822 = vld [vmem:[%s811 + $0xa7] sm:$0xff]
        %v823 = vld [vmem:[%s811 + $0xaf] sm:$0xff]
        %v824 = vld [vmem:[%s811 + $0xc7] sm:$0xff]
        %v825 = vld [vmem:[%s811 + $0xcf] sm:$0xff]
        %v826 = vld [vmem:[%s811 + $0xe7] sm:$0xff]
        %v827 = vld [vmem:[%s811 + $0xef] sm:$0xff]
        %v828 = vld [vmem:[#allocation7] sm:$0x1]
        %v829 = vlaneseq
        %v830 = vshrl.u32 %v829, 7
        %v831 = vsub.s32 0, %v830
        %v832 = vrot.slane %v828, %v831
        %v833 = vmul.f32 %v812, %v832
        %v834 = vmul.f32 %v813, %v832
        %v835 = vmul.f32 %v814, %v832
        %v836 = vmul.f32 %v815, %v832
        %v837 = vmul.f32 %v816, %v832
        %v838 = vmul.f32 %v817, %v832
        %v839 = vmul.f32 %v818, %v832
        %v840 = vmul.f32 %v819, %v832
        %v841 = vmul.f32 %v820, %v832
        %v842 = vmul.f32 %v821, %v832
        %v843 = vmul.f32 %v822, %v832
        %v844 = vmul.f32 %v823, %v832
        %v845 = vmul.f32 %v824, %v832
        %v846 = vmul.f32 %v825, %v832
        %v847 = vmul.f32 %v826, %v832
        %v848 = vmul.f32 %v827, %v832
        %v849 = vadd.f32 %v795, %v833
        %v850 = vadd.f32 %v796, %v834
        %v851 = vadd.f32 %v797, %v835
        %v852 = vadd.f32 %v798, %v836
        %v853 = vadd.f32 %v799, %v837
        %v854 = vadd.f32 %v800, %v838
        %v855 = vadd.f32 %v801, %v839
        %v856 = vadd.f32 %v802, %v840
        %v857 = vadd.f32 %v803, %v841
        %v858 = vadd.f32 %v804, %v842
        %v859 = vadd.f32 %v805, %v843
        %v860 = vadd.f32 %v806, %v844
        %v861 = vadd.f32 %v807, %v845
        %v862 = vadd.f32 %v808, %v846
        %v863 = vadd.f32 %v809, %v847
        %v864 = vadd.f32 %v810, %v848
        %v865 = vld [vmem:[%s811 + $0x8] sm:$0xff]
        %v866 = vld [vmem:[%s811 + $0x10] sm:$0xff]
        %v867 = vld [vmem:[%s811 + $0x28] sm:$0xff]
        %v868 = vld [vmem:[%s811 + $0x30] sm:$0xff]
        %v869 = vld [vmem:[%s811 + $0x48] sm:$0xff]
        %v870 = vld [vmem:[%s811 + $0x50] sm:$0xff]
        %v871 = vld [vmem:[%s811 + $0x68] sm:$0xff]
        %v872 = vld [vmem:[%s811 + $0x70] sm:$0xff]
        %v873 = vld [vmem:[%s811 + $0x88] sm:$0xff]
        %v874 = vld [vmem:[%s811 + $0x90] sm:$0xff]
        %v875 = vld [vmem:[%s811 + $0xa8] sm:$0xff]
        %v876 = vld [vmem:[%s811 + $0xb0] sm:$0xff]
        %v877 = vld [vmem:[%s811 + $0xc8] sm:$0xff]
        %v878 = vld [vmem:[%s811 + $0xd0] sm:$0xff]
        %v879 = vld [vmem:[%s811 + $0xe8] sm:$0xff]
        %v880 = vld [vmem:[%s811 + $0xf0] sm:$0xff]
        %v881 = vld [vmem:[#allocation7 + $0x1] sm:$0x1]
        %v882 = vlaneseq
        %v883 = vshrl.u32 %v882, 7
        %v884 = vsub.s32 0, %v883
        %v885 = vrot.slane %v881, %v884
        %v886 = vmul.f32 %v865, %v885
        %v887 = vmul.f32 %v866, %v885
        %v888 = vmul.f32 %v867, %v885
        %v889 = vmul.f32 %v868, %v885
        %v890 = vmul.f32 %v869, %v885
        %v891 = vmul.f32 %v870, %v885
        %v892 = vmul.f32 %v871, %v885
        %v893 = vmul.f32 %v872, %v885
        %v894 = vmul.f32 %v873, %v885
        %v895 = vmul.f32 %v874, %v885
        %v896 = vmul.f32 %v875, %v885
        %v897 = vmul.f32 %v876, %v885
        %v898 = vmul.f32 %v877, %v885
        %v899 = vmul.f32 %v878, %v885
        %v900 = vmul.f32 %v879, %v885
        %v901 = vmul.f32 %v880, %v885
        %v902 = vadd.f32 %v849, %v886
        %v903 = vadd.f32 %v850, %v887
        %v904 = vadd.f32 %v851, %v888
        %v905 = vadd.f32 %v852, %v889
        %v906 = vadd.f32 %v853, %v890
        %v907 = vadd.f32 %v854, %v891
        %v908 = vadd.f32 %v855, %v892
        %v909 = vadd.f32 %v856, %v893
        %v910 = vadd.f32 %v857, %v894
        %v911 = vadd.f32 %v858, %v895
        %v912 = vadd.f32 %v859, %v896
        %v913 = vadd.f32 %v860, %v897
        %v914 = vadd.f32 %v861, %v898
        %v915 = vadd.f32 %v862, %v899
        %v916 = vadd.f32 %v863, %v900
        %v917 = vadd.f32 %v864, %v901
        %v918 = vld [vmem:[%s811 + $0x9] sm:$0xff]
        %v919 = vld [vmem:[%s811 + $0x11] sm:$0xff]
        %v920 = vld [vmem:[%s811 + $0x29] sm:$0xff]
        %v921 = vld [vmem:[%s811 + $0x31] sm:$0xff]
        %v922 = vld [vmem:[%s811 + $0x49] sm:$0xff]
        %v923 = vld [vmem:[%s811 + $0x51] sm:$0xff]
        %v924 = vld [vmem:[%s811 + $0x69] sm:$0xff]
        %v925 = vld [vmem:[%s811 + $0x71] sm:$0xff]
        %v926 = vld [vmem:[%s811 + $0x89] sm:$0xff]
        %v927 = vld [vmem:[%s811 + $0x91] sm:$0xff]
        %v928 = vld [vmem:[%s811 + $0xa9] sm:$0xff]
        %v929 = vld [vmem:[%s811 + $0xb1] sm:$0xff]
        %v930 = vld [vmem:[%s811 + $0xc9] sm:$0xff]
        %v931 = vld [vmem:[%s811 + $0xd1] sm:$0xff]
        %v932 = vld [vmem:[%s811 + $0xe9] sm:$0xff]
        %v933 = vld [vmem:[%s811 + $0xf1] sm:$0xff]
        %v934 = vld [vmem:[#allocation7 + $0x2] sm:$0x1]
        %v935 = vlaneseq
        %v936 = vshrl.u32 %v935, 7
        %v937 = vsub.s32 0, %v936
        %v938 = vrot.slane %v934, %v937
        %v939 = vmul.f32 %v918, %v938
        %v940 = vmul.f32 %v919, %v938
        %v941 = vmul.f32 %v920, %v938
        %v942 = vmul.f32 %v921, %v938
        %v943 = vmul.f32 %v922, %v938
        %v944 = vmul.f32 %v923, %v938
        %v945 = vmul.f32 %v924, %v938
        %v946 = vmul.f32 %v925, %v938
        %v947 = vmul.f32 %v926, %v938
        %v948 = vmul.f32 %v927, %v938
        %v949 = vmul.f32 %v928, %v938
        %v950 = vmul.f32 %v929, %v938
        %v951 = vmul.f32 %v930, %v938
        %v952 = vmul.f32 %v931, %v938
        %v953 = vmul.f32 %v932, %v938
        %v954 = vmul.f32 %v933, %v938
        %v955 = vadd.f32 %v902, %v939
        %v956 = vadd.f32 %v903, %v940
        %v957 = vadd.f32 %v904, %v941
        %v958 = vadd.f32 %v905, %v942
        %v959 = vadd.f32 %v906, %v943
        %v960 = vadd.f32 %v907, %v944
        %v961 = vadd.f32 %v908, %v945
        %v962 = vadd.f32 %v909, %v946
        %v963 = vadd.f32 %v910, %v947
        %v964 = vadd.f32 %v911, %v948
        %v965 = vadd.f32 %v912, %v949
        %v966 = vadd.f32 %v913, %v950
        %v967 = vadd.f32 %v914, %v951
        %v968 = vadd.f32 %v915, %v952
        %v969 = vadd.f32 %v916, %v953
        %v970 = vadd.f32 %v917, %v954
        %v971 = vld [vmem:[%s612 + $0x7] sm:$0xff]
        %v972 = vld [vmem:[%s612 + $0xf] sm:$0xff]
        %v973 = vld [vmem:[%s612 + $0x27] sm:$0xff]
        %v974 = vld [vmem:[%s612 + $0x2f] sm:$0xff]
        %v975 = vld [vmem:[%s612 + $0x47] sm:$0xff]
        %v976 = vld [vmem:[%s612 + $0x4f] sm:$0xff]
        %v977 = vld [vmem:[%s612 + $0x67] sm:$0xff]
        %v978 = vld [vmem:[%s612 + $0x6f] sm:$0xff]
        %v979 = vld [vmem:[%s612 + $0x87] sm:$0xff]
        %v980 = vld [vmem:[%s612 + $0x8f] sm:$0xff]
        %v981 = vld [vmem:[%s612 + $0xa7] sm:$0xff]
        %v982 = vld [vmem:[%s612 + $0xaf] sm:$0xff]
        %v983 = vld [vmem:[%s612 + $0xc7] sm:$0xff]
        %v984 = vld [vmem:[%s612 + $0xcf] sm:$0xff]
        %v985 = vld [vmem:[%s612 + $0xe7] sm:$0xff]
        %v986 = vld [vmem:[%s612 + $0xef] sm:$0xff]
        %s987 = scalar_lea.vmem [#allocation7], 4
        %v988 = vld [vmem:[%s987] sm:$0x1]
        %v989 = vlaneseq
        %v990 = vshrl.u32 %v989, 7
        %v991 = vsub.s32 0, %v990
        %v992 = vrot.slane %v988, %v991
        %v993 = vmul.f32 %v971, %v992
        %v994 = vmul.f32 %v972, %v992
        %v995 = vmul.f32 %v973, %v992
        %v996 = vmul.f32 %v974, %v992
        %v997 = vmul.f32 %v975, %v992
        %v998 = vmul.f32 %v976, %v992
        %v999 = vmul.f32 %v977, %v992
        %v1000 = vmul.f32 %v978, %v992
        %v1001 = vmul.f32 %v979, %v992
        %v1002 = vmul.f32 %v980, %v992
        %v1003 = vmul.f32 %v981, %v992
        %v1004 = vmul.f32 %v982, %v992
        %v1005 = vmul.f32 %v983, %v992
        %v1006 = vmul.f32 %v984, %v992
        %v1007 = vmul.f32 %v985, %v992
        %v1008 = vmul.f32 %v986, %v992
        %v1009 = vadd.f32 %v955, %v993
        %v1010 = vadd.f32 %v956, %v994
        %v1011 = vadd.f32 %v957, %v995
        %v1012 = vadd.f32 %v958, %v996
        %v1013 = vadd.f32 %v959, %v997
        %v1014 = vadd.f32 %v960, %v998
        %v1015 = vadd.f32 %v961, %v999
        %v1016 = vadd.f32 %v962, %v1000
        %v1017 = vadd.f32 %v963, %v1001
        %v1018 = vadd.f32 %v964, %v1002
        %v1019 = vadd.f32 %v965, %v1003
        %v1020 = vadd.f32 %v966, %v1004
        %v1021 = vadd.f32 %v967, %v1005
        %v1022 = vadd.f32 %v968, %v1006
        %v1023 = vadd.f32 %v969, %v1007
        %v1024 = vadd.f32 %v970, %v1008
        %v1025 = vld [vmem:[%s612 + $0x8] sm:$0xff]
        %v1026 = vld [vmem:[%s612 + $0x10] sm:$0xff]
        %v1027 = vld [vmem:[%s612 + $0x28] sm:$0xff]
        %v1028 = vld [vmem:[%s612 + $0x30] sm:$0xff]
        %v1029 = vld [vmem:[%s612 + $0x48] sm:$0xff]
        %v1030 = vld [vmem:[%s612 + $0x50] sm:$0xff]
        %v1031 = vld [vmem:[%s612 + $0x68] sm:$0xff]
        %v1032 = vld [vmem:[%s612 + $0x70] sm:$0xff]
        %v1033 = vld [vmem:[%s612 + $0x88] sm:$0xff]
        %v1034 = vld [vmem:[%s612 + $0x90] sm:$0xff]
        %v1035 = vld [vmem:[%s612 + $0xa8] sm:$0xff]
        %v1036 = vld [vmem:[%s612 + $0xb0] sm:$0xff]
        %v1037 = vld [vmem:[%s612 + $0xc8] sm:$0xff]
        %v1038 = vld [vmem:[%s612 + $0xd0] sm:$0xff]
        %v1039 = vld [vmem:[%s612 + $0xe8] sm:$0xff]
        %v1040 = vld [vmem:[%s612 + $0xf0] sm:$0xff]
        %v1041 = vld [vmem:[%s987 + $0x1] sm:$0x1]
        %v1042 = vlaneseq
        %v1043 = vshrl.u32 %v1042, 7
        %v1044 = vsub.s32 0, %v1043
        %v1045 = vrot.slane %v1041, %v1044
        %v1046 = vmul.f32 %v1025, %v1045
        %v1047 = vmul.f32 %v1026, %v1045
        %v1048 = vmul.f32 %v1027, %v1045
        %v1049 = vmul.f32 %v1028, %v1045
        %v1050 = vmul.f32 %v1029, %v1045
        %v1051 = vmul.f32 %v1030, %v1045
        %v1052 = vmul.f32 %v1031, %v1045
        %v1053 = vmul.f32 %v1032, %v1045
        %v1054 = vmul.f32 %v1033, %v1045
        %v1055 = vmul.f32 %v1034, %v1045
        %v1056 = vmul.f32 %v1035, %v1045
        %v1057 = vmul.f32 %v1036, %v1045
        %v1058 = vmul.f32 %v1037, %v1045
        %v1059 = vmul.f32 %v1038, %v1045
        %v1060 = vmul.f32 %v1039, %v1045
        %v1061 = vmul.f32 %v1040, %v1045
        %v1062 = vadd.f32 %v1009, %v1046
        %v1063 = vadd.f32 %v1010, %v1047
        %v1064 = vadd.f32 %v1011, %v1048
        %v1065 = vadd.f32 %v1012, %v1049
        %v1066 = vadd.f32 %v1013, %v1050
        %v1067 = vadd.f32 %v1014, %v1051
        %v1068 = vadd.f32 %v1015, %v1052
        %v1069 = vadd.f32 %v1016, %v1053
        %v1070 = vadd.f32 %v1017, %v1054
        %v1071 = vadd.f32 %v1018, %v1055
        %v1072 = vadd.f32 %v1019, %v1056
        %v1073 = vadd.f32 %v1020, %v1057
        %v1074 = vadd.f32 %v1021, %v1058
        %v1075 = vadd.f32 %v1022, %v1059
        %v1076 = vadd.f32 %v1023, %v1060
        %v1077 = vadd.f32 %v1024, %v1061
        %v1078 = vld [vmem:[%s612 + $0x9] sm:$0xff]
        %v1079 = vld [vmem:[%s612 + $0x11] sm:$0xff]
        %v1080 = vld [vmem:[%s612 + $0x29] sm:$0xff]
        %v1081 = vld [vmem:[%s612 + $0x31] sm:$0xff]
        %v1082 = vld [vmem:[%s612 + $0x49] sm:$0xff]
        %v1083 = vld [vmem:[%s612 + $0x51] sm:$0xff]
        %v1084 = vld [vmem:[%s612 + $0x69] sm:$0xff]
        %v1085 = vld [vmem:[%s612 + $0x71] sm:$0xff]
        %v1086 = vld [vmem:[%s612 + $0x89] sm:$0xff]
        %v1087 = vld [vmem:[%s612 + $0x91] sm:$0xff]
        %v1088 = vld [vmem:[%s612 + $0xa9] sm:$0xff]
        %v1089 = vld [vmem:[%s612 + $0xb1] sm:$0xff]
        %v1090 = vld [vmem:[%s612 + $0xc9] sm:$0xff]
        %v1091 = vld [vmem:[%s612 + $0xd1] sm:$0xff]
        %v1092 = vld [vmem:[%s612 + $0xe9] sm:$0xff]
        %v1093 = vld [vmem:[%s612 + $0xf1] sm:$0xff]
        %v1094 = vld [vmem:[%s987 + $0x2] sm:$0x1]
        %v1095 = vlaneseq
        %v1096 = vshrl.u32 %v1095, 7
        %v1097 = vsub.s32 0, %v1096
        %v1098 = vrot.slane %v1094, %v1097
        %v1099 = vmul.f32 %v1078, %v1098
        %v1100 = vmul.f32 %v1079, %v1098
        %v1101 = vmul.f32 %v1080, %v1098
        %v1102 = vmul.f32 %v1081, %v1098
        %v1103 = vmul.f32 %v1082, %v1098
        %v1104 = vmul.f32 %v1083, %v1098
        %v1105 = vmul.f32 %v1084, %v1098
        %v1106 = vmul.f32 %v1085, %v1098
        %v1107 = vmul.f32 %v1086, %v1098
        %v1108 = vmul.f32 %v1087, %v1098
        %v1109 = vmul.f32 %v1088, %v1098
        %v1110 = vmul.f32 %v1089, %v1098
        %v1111 = vmul.f32 %v1090, %v1098
        %v1112 = vmul.f32 %v1091, %v1098
        %v1113 = vmul.f32 %v1092, %v1098
        %v1114 = vmul.f32 %v1093, %v1098
        %v1115 = vadd.f32 %v1062, %v1099
        %v1116 = vadd.f32 %v1063, %v1100
        %v1117 = vadd.f32 %v1064, %v1101
        %v1118 = vadd.f32 %v1065, %v1102
        %v1119 = vadd.f32 %v1066, %v1103
        %v1120 = vadd.f32 %v1067, %v1104
        %v1121 = vadd.f32 %v1068, %v1105
        %v1122 = vadd.f32 %v1069, %v1106
        %v1123 = vadd.f32 %v1070, %v1107
        %v1124 = vadd.f32 %v1071, %v1108
        %v1125 = vadd.f32 %v1072, %v1109
        %v1126 = vadd.f32 %v1073, %v1110
        %v1127 = vadd.f32 %v1074, %v1111
        %v1128 = vadd.f32 %v1075, %v1112
        %v1129 = vadd.f32 %v1076, %v1113
        %v1130 = vadd.f32 %v1077, %v1114
        %s1131 = scalar_lea.vmem [#allocation2], 192
        %v1132 = vld [vmem:[%s1131 + $0x7] sm:$0xff]
        %v1133 = vld [vmem:[%s1131 + $0xf] sm:$0xff]
        %v1134 = vld [vmem:[%s1131 + $0x27] sm:$0xff]
        %v1135 = vld [vmem:[%s1131 + $0x2f] sm:$0xff]
        %v1136 = vld [vmem:[%s1131 + $0x47] sm:$0xff]
        %v1137 = vld [vmem:[%s1131 + $0x4f] sm:$0xff]
        %v1138 = vld [vmem:[%s1131 + $0x67] sm:$0xff]
        %v1139 = vld [vmem:[%s1131 + $0x6f] sm:$0xff]
        %v1140 = vld [vmem:[%s1131 + $0x87] sm:$0xff]
        %v1141 = vld [vmem:[%s1131 + $0x8f] sm:$0xff]
        %v1142 = vld [vmem:[%s1131 + $0xa7] sm:$0xff]
        %v1143 = vld [vmem:[%s1131 + $0xaf] sm:$0xff]
        %v1144 = vld [vmem:[%s1131 + $0xc7] sm:$0xff]
        %v1145 = vld [vmem:[%s1131 + $0xcf] sm:$0xff]
        %v1146 = vld [vmem:[%s1131 + $0xe7] sm:$0xff]
        %v1147 = vld [vmem:[%s1131 + $0xef] sm:$0xff]
        %s1148 = scalar_lea.vmem [#allocation7], 8
        %v1149 = vld [vmem:[%s1148] sm:$0x1]
        %v1150 = vlaneseq
        %v1151 = vshrl.u32 %v1150, 7
        %v1152 = vsub.s32 0, %v1151
        %v1153 = vrot.slane %v1149, %v1152
        %v1154 = vmul.f32 %v1132, %v1153
        %v1155 = vmul.f32 %v1133, %v1153
        %v1156 = vmul.f32 %v1134, %v1153
        %v1157 = vmul.f32 %v1135, %v1153
        %v1158 = vmul.f32 %v1136, %v1153
        %v1159 = vmul.f32 %v1137, %v1153
        %v1160 = vmul.f32 %v1138, %v1153
        %v1161 = vmul.f32 %v1139, %v1153
        %v1162 = vmul.f32 %v1140, %v1153
        %v1163 = vmul.f32 %v1141, %v1153
        %v1164 = vmul.f32 %v1142, %v1153
        %v1165 = vmul.f32 %v1143, %v1153
        %v1166 = vmul.f32 %v1144, %v1153
        %v1167 = vmul.f32 %v1145, %v1153
        %v1168 = vmul.f32 %v1146, %v1153
        %v1169 = vmul.f32 %v1147, %v1153
        %v1170 = vadd.f32 %v1115, %v1154
        %v1171 = vadd.f32 %v1116, %v1155
        %v1172 = vadd.f32 %v1117, %v1156
        %v1173 = vadd.f32 %v1118, %v1157
        %v1174 = vadd.f32 %v1119, %v1158
        %v1175 = vadd.f32 %v1120, %v1159
        %v1176 = vadd.f32 %v1121, %v1160
        %v1177 = vadd.f32 %v1122, %v1161
        %v1178 = vadd.f32 %v1123, %v1162
        %v1179 = vadd.f32 %v1124, %v1163
        %v1180 = vadd.f32 %v1125, %v1164
        %v1181 = vadd.f32 %v1126, %v1165
        %v1182 = vadd.f32 %v1127, %v1166
        %v1183 = vadd.f32 %v1128, %v1167
        %v1184 = vadd.f32 %v1129, %v1168
        %v1185 = vadd.f32 %v1130, %v1169
        %v1186 = vld [vmem:[%s1131 + $0x8] sm:$0xff]
        %v1187 = vld [vmem:[%s1131 + $0x10] sm:$0xff]
        %v1188 = vld [vmem:[%s1131 + $0x28] sm:$0xff]
        %v1189 = vld [vmem:[%s1131 + $0x30] sm:$0xff]
        %v1190 = vld [vmem:[%s1131 + $0x48] sm:$0xff]
        %v1191 = vld [vmem:[%s1131 + $0x50] sm:$0xff]
        %v1192 = vld [vmem:[%s1131 + $0x68] sm:$0xff]
        %v1193 = vld [vmem:[%s1131 + $0x70] sm:$0xff]
        %v1194 = vld [vmem:[%s1131 + $0x88] sm:$0xff]
        %v1195 = vld [vmem:[%s1131 + $0x90] sm:$0xff]
        %v1196 = vld [vmem:[%s1131 + $0xa8] sm:$0xff]
        %v1197 = vld [vmem:[%s1131 + $0xb0] sm:$0xff]
        %v1198 = vld [vmem:[%s1131 + $0xc8] sm:$0xff]
        %v1199 = vld [vmem:[%s1131 + $0xd0] sm:$0xff]
        %v1200 = vld [vmem:[%s1131 + $0xe8] sm:$0xff]
        %v1201 = vld [vmem:[%s1131 + $0xf0] sm:$0xff]
        %v1202 = vld [vmem:[%s1148 + $0x1] sm:$0x1]
        %v1203 = vlaneseq
        %v1204 = vshrl.u32 %v1203, 7
        %v1205 = vsub.s32 0, %v1204
        %v1206 = vrot.slane %v1202, %v1205
        %v1207 = vmul.f32 %v1186, %v1206
        %v1208 = vmul.f32 %v1187, %v1206
        %v1209 = vmul.f32 %v1188, %v1206
        %v1210 = vmul.f32 %v1189, %v1206
        %v1211 = vmul.f32 %v1190, %v1206
        %v1212 = vmul.f32 %v1191, %v1206
        %v1213 = vmul.f32 %v1192, %v1206
        %v1214 = vmul.f32 %v1193, %v1206
        %v1215 = vmul.f32 %v1194, %v1206
        %v1216 = vmul.f32 %v1195, %v1206
        %v1217 = vmul.f32 %v1196, %v1206
        %v1218 = vmul.f32 %v1197, %v1206
        %v1219 = vmul.f32 %v1198, %v1206
        %v1220 = vmul.f32 %v1199, %v1206
        %v1221 = vmul.f32 %v1200, %v1206
        %v1222 = vmul.f32 %v1201, %v1206
        %v1223 = vadd.f32 %v1170, %v1207
        %v1224 = vadd.f32 %v1171, %v1208
        %v1225 = vadd.f32 %v1172, %v1209
        %v1226 = vadd.f32 %v1173, %v1210
        %v1227 = vadd.f32 %v1174, %v1211
        %v1228 = vadd.f32 %v1175, %v1212
        %v1229 = vadd.f32 %v1176, %v1213
        %v1230 = vadd.f32 %v1177, %v1214
        %v1231 = vadd.f32 %v1178, %v1215
        %v1232 = vadd.f32 %v1179, %v1216
        %v1233 = vadd.f32 %v1180, %v1217
        %v1234 = vadd.f32 %v1181, %v1218
        %v1235 = vadd.f32 %v1182, %v1219
        %v1236 = vadd.f32 %v1183, %v1220
        %v1237 = vadd.f32 %v1184, %v1221
        %v1238 = vadd.f32 %v1185, %v1222
        %v1239 = vld [vmem:[%s1131 + $0x9] sm:$0xff]
        %v1240 = vld [vmem:[%s1131 + $0x11] sm:$0xff]
        %v1241 = vld [vmem:[%s1131 + $0x29] sm:$0xff]
        %v1242 = vld [vmem:[%s1131 + $0x31] sm:$0xff]
        %v1243 = vld [vmem:[%s1131 + $0x49] sm:$0xff]
        %v1244 = vld [vmem:[%s1131 + $0x51] sm:$0xff]
        %v1245 = vld [vmem:[%s1131 + $0x69] sm:$0xff]
        %v1246 = vld [vmem:[%s1131 + $0x71] sm:$0xff]
        %v1247 = vld [vmem:[%s1131 + $0x89] sm:$0xff]
        %v1248 = vld [vmem:[%s1131 + $0x91] sm:$0xff]
        %v1249 = vld [vmem:[%s1131 + $0xa9] sm:$0xff]
        %v1250 = vld [vmem:[%s1131 + $0xb1] sm:$0xff]
        %v1251 = vld [vmem:[%s1131 + $0xc9] sm:$0xff]
        %v1252 = vld [vmem:[%s1131 + $0xd1] sm:$0xff]
        %v1253 = vld [vmem:[%s1131 + $0xe9] sm:$0xff]
        %v1254 = vld [vmem:[%s1131 + $0xf1] sm:$0xff]
        %v1255 = vld [vmem:[%s1148 + $0x2] sm:$0x1]
        %v1256 = vlaneseq
        %v1257 = vshrl.u32 %v1256, 7
        %v1258 = vsub.s32 0, %v1257
        %v1259 = vrot.slane %v1255, %v1258
        %v1260 = vmul.f32 %v1239, %v1259
        %v1261 = vmul.f32 %v1240, %v1259
        %v1262 = vmul.f32 %v1241, %v1259
        %v1263 = vmul.f32 %v1242, %v1259
        %v1264 = vmul.f32 %v1243, %v1259
        %v1265 = vmul.f32 %v1244, %v1259
        %v1266 = vmul.f32 %v1245, %v1259
        %v1267 = vmul.f32 %v1246, %v1259
        %v1268 = vmul.f32 %v1247, %v1259
        %v1269 = vmul.f32 %v1248, %v1259
        %v1270 = vmul.f32 %v1249, %v1259
        %v1271 = vmul.f32 %v1250, %v1259
        %v1272 = vmul.f32 %v1251, %v1259
        %v1273 = vmul.f32 %v1252, %v1259
        %v1274 = vmul.f32 %v1253, %v1259
        %v1275 = vmul.f32 %v1254, %v1259
        %v1276 = vadd.f32 %v1223, %v1260
        %v1277 = vadd.f32 %v1224, %v1261
        %v1278 = vadd.f32 %v1225, %v1262
        %v1279 = vadd.f32 %v1226, %v1263
        %v1280 = vadd.f32 %v1227, %v1264
        %v1281 = vadd.f32 %v1228, %v1265
        %v1282 = vadd.f32 %v1229, %v1266
        %v1283 = vadd.f32 %v1230, %v1267
        %v1284 = vadd.f32 %v1231, %v1268
        %v1285 = vadd.f32 %v1232, %v1269
        %v1286 = vadd.f32 %v1233, %v1270
        %v1287 = vadd.f32 %v1234, %v1271
        %v1288 = vadd.f32 %v1235, %v1272
        %v1289 = vadd.f32 %v1236, %v1273
        %v1290 = vadd.f32 %v1237, %v1274
        %v1291 = vadd.f32 %v1238, %v1275
        %v1292 = vld [vmem:[%s612 + $0x3] sm:$0xff]
        %v1293 = vld [vmem:[%s612 + $0xb] sm:$0xff]
        %v1294 = vld [vmem:[%s612 + $0x23] sm:$0xff]
        %v1295 = vld [vmem:[%s612 + $0x2b] sm:$0xff]
        %v1296 = vld [vmem:[%s612 + $0x43] sm:$0xff]
        %v1297 = vld [vmem:[%s612 + $0x4b] sm:$0xff]
        %v1298 = vld [vmem:[%s612 + $0x63] sm:$0xff]
        %v1299 = vld [vmem:[%s612 + $0x6b] sm:$0xff]
        %v1300 = vld [vmem:[%s612 + $0x83] sm:$0xff]
        %v1301 = vld [vmem:[%s612 + $0x8b] sm:$0xff]
        %v1302 = vld [vmem:[%s612 + $0xa3] sm:$0xff]
        %v1303 = vld [vmem:[%s612 + $0xab] sm:$0xff]
        %v1304 = vld [vmem:[%s612 + $0xc3] sm:$0xff]
        %v1305 = vld [vmem:[%s612 + $0xcb] sm:$0xff]
        %v1306 = vld [vmem:[%s612 + $0xe3] sm:$0xff]
        %v1307 = vld [vmem:[%s612 + $0xeb] sm:$0xff]
        %v1308 = vld [vmem:[#allocation9] sm:$0x1]
        %v1309 = vlaneseq
        %v1310 = vshrl.u32 %v1309, 7
        %v1311 = vsub.s32 0, %v1310
        %v1312 = vrot.slane %v1308, %v1311
        %v1313 = vmul.f32 %v1292, %v1312
        %v1314 = vmul.f32 %v1293, %v1312
        %v1315 = vmul.f32 %v1294, %v1312
        %v1316 = vmul.f32 %v1295, %v1312
        %v1317 = vmul.f32 %v1296, %v1312
        %v1318 = vmul.f32 %v1297, %v1312
        %v1319 = vmul.f32 %v1298, %v1312
        %v1320 = vmul.f32 %v1299, %v1312
        %v1321 = vmul.f32 %v1300, %v1312
        %v1322 = vmul.f32 %v1301, %v1312
        %v1323 = vmul.f32 %v1302, %v1312
        %v1324 = vmul.f32 %v1303, %v1312
        %v1325 = vmul.f32 %v1304, %v1312
        %v1326 = vmul.f32 %v1305, %v1312
        %v1327 = vmul.f32 %v1306, %v1312
        %v1328 = vmul.f32 %v1307, %v1312
        %v1329 = vadd.f32 %v1276, %v1313
        %v1330 = vadd.f32 %v1277, %v1314
        %v1331 = vadd.f32 %v1278, %v1315
        %v1332 = vadd.f32 %v1279, %v1316
        %v1333 = vadd.f32 %v1280, %v1317
        %v1334 = vadd.f32 %v1281, %v1318
        %v1335 = vadd.f32 %v1282, %v1319
        %v1336 = vadd.f32 %v1283, %v1320
        %v1337 = vadd.f32 %v1284, %v1321
        %v1338 = vadd.f32 %v1285, %v1322
        %v1339 = vadd.f32 %v1286, %v1323
        %v1340 = vadd.f32 %v1287, %v1324
        %v1341 = vadd.f32 %v1288, %v1325
        %v1342 = vadd.f32 %v1289, %v1326
        %v1343 = vadd.f32 %v1290, %v1327
        %v1344 = vadd.f32 %v1291, %v1328
        %v1345 = vld [vmem:[%s612 + $0x4] sm:$0xff]
        %v1346 = vld [vmem:[%s612 + $0xc] sm:$0xff]
        %v1347 = vld [vmem:[%s612 + $0x24] sm:$0xff]
        %v1348 = vld [vmem:[%s612 + $0x2c] sm:$0xff]
        %v1349 = vld [vmem:[%s612 + $0x44] sm:$0xff]
        %v1350 = vld [vmem:[%s612 + $0x4c] sm:$0xff]
        %v1351 = vld [vmem:[%s612 + $0x64] sm:$0xff]
        %v1352 = vld [vmem:[%s612 + $0x6c] sm:$0xff]
        %v1353 = vld [vmem:[%s612 + $0x84] sm:$0xff]
        %v1354 = vld [vmem:[%s612 + $0x8c] sm:$0xff]
        %v1355 = vld [vmem:[%s612 + $0xa4] sm:$0xff]
        %v1356 = vld [vmem:[%s612 + $0xac] sm:$0xff]
        %v1357 = vld [vmem:[%s612 + $0xc4] sm:$0xff]
        %v1358 = vld [vmem:[%s612 + $0xcc] sm:$0xff]
        %v1359 = vld [vmem:[%s612 + $0xe4] sm:$0xff]
        %v1360 = vld [vmem:[%s612 + $0xec] sm:$0xff]
        %v1361 = vld [vmem:[#allocation9 + $0x1] sm:$0x1]
        %v1362 = vlaneseq
        %v1363 = vshrl.u32 %v1362, 7
        %v1364 = vsub.s32 0, %v1363
        %v1365 = vrot.slane %v1361, %v1364
        %v1366 = vmul.f32 %v1345, %v1365
        %v1367 = vmul.f32 %v1346, %v1365
        %v1368 = vmul.f32 %v1347, %v1365
        %v1369 = vmul.f32 %v1348, %v1365
        %v1370 = vmul.f32 %v1349, %v1365
        %v1371 = vmul.f32 %v1350, %v1365
        %v1372 = vmul.f32 %v1351, %v1365
        %v1373 = vmul.f32 %v1352, %v1365
        %v1374 = vmul.f32 %v1353, %v1365
        %v1375 = vmul.f32 %v1354, %v1365
        %v1376 = vmul.f32 %v1355, %v1365
        %v1377 = vmul.f32 %v1356, %v1365
        %v1378 = vmul.f32 %v1357, %v1365
        %v1379 = vmul.f32 %v1358, %v1365
        %v1380 = vmul.f32 %v1359, %v1365
        %v1381 = vmul.f32 %v1360, %v1365
        %v1382 = vadd.f32 %v1329, %v1366
        %v1383 = vadd.f32 %v1330, %v1367
        %v1384 = vadd.f32 %v1331, %v1368
        %v1385 = vadd.f32 %v1332, %v1369
        %v1386 = vadd.f32 %v1333, %v1370
        %v1387 = vadd.f32 %v1334, %v1371
        %v1388 = vadd.f32 %v1335, %v1372
        %v1389 = vadd.f32 %v1336, %v1373
        %v1390 = vadd.f32 %v1337, %v1374
        %v1391 = vadd.f32 %v1338, %v1375
        %v1392 = vadd.f32 %v1339, %v1376
        %v1393 = vadd.f32 %v1340, %v1377
        %v1394 = vadd.f32 %v1341, %v1378
        %v1395 = vadd.f32 %v1342, %v1379
        %v1396 = vadd.f32 %v1343, %v1380
        %v1397 = vadd.f32 %v1344, %v1381
        %v1398 = vld [vmem:[%s612 + $0x5] sm:$0xff]
        %v1399 = vld [vmem:[%s612 + $0xd] sm:$0xff]
        %v1400 = vld [vmem:[%s612 + $0x25] sm:$0xff]
        %v1401 = vld [vmem:[%s612 + $0x2d] sm:$0xff]
        %v1402 = vld [vmem:[%s612 + $0x45] sm:$0xff]
        %v1403 = vld [vmem:[%s612 + $0x4d] sm:$0xff]
        %v1404 = vld [vmem:[%s612 + $0x65] sm:$0xff]
        %v1405 = vld [vmem:[%s612 + $0x6d] sm:$0xff]
        %v1406 = vld [vmem:[%s612 + $0x85] sm:$0xff]
        %v1407 = vld [vmem:[%s612 + $0x8d] sm:$0xff]
        %v1408 = vld [vmem:[%s612 + $0xa5] sm:$0xff]
        %v1409 = vld [vmem:[%s612 + $0xad] sm:$0xff]
        %v1410 = vld [vmem:[%s612 + $0xc5] sm:$0xff]
        %v1411 = vld [vmem:[%s612 + $0xcd] sm:$0xff]
        %v1412 = vld [vmem:[%s612 + $0xe5] sm:$0xff]
        %v1413 = vld [vmem:[%s612 + $0xed] sm:$0xff]
        %v1414 = vld [vmem:[#allocation9 + $0x2] sm:$0x1]
        %v1415 = vlaneseq
        %v1416 = vshrl.u32 %v1415, 7
        %v1417 = vsub.s32 0, %v1416
        %v1418 = vrot.slane %v1414, %v1417
        %v1419 = vmul.f32 %v1398, %v1418
        %v1420 = vmul.f32 %v1399, %v1418
        %v1421 = vmul.f32 %v1400, %v1418
        %v1422 = vmul.f32 %v1401, %v1418
        %v1423 = vmul.f32 %v1402, %v1418
        %v1424 = vmul.f32 %v1403, %v1418
        %v1425 = vmul.f32 %v1404, %v1418
        %v1426 = vmul.f32 %v1405, %v1418
        %v1427 = vmul.f32 %v1406, %v1418
        %v1428 = vmul.f32 %v1407, %v1418
        %v1429 = vmul.f32 %v1408, %v1418
        %v1430 = vmul.f32 %v1409, %v1418
        %v1431 = vmul.f32 %v1410, %v1418
        %v1432 = vmul.f32 %v1411, %v1418
        %v1433 = vmul.f32 %v1412, %v1418
        %v1434 = vmul.f32 %v1413, %v1418
        %v1435 = vadd.f32 %v1382, %v1419
        %v1436 = vadd.f32 %v1383, %v1420
        %v1437 = vadd.f32 %v1384, %v1421
        %v1438 = vadd.f32 %v1385, %v1422
        %v1439 = vadd.f32 %v1386, %v1423
        %v1440 = vadd.f32 %v1387, %v1424
        %v1441 = vadd.f32 %v1388, %v1425
        %v1442 = vadd.f32 %v1389, %v1426
        %v1443 = vadd.f32 %v1390, %v1427
        %v1444 = vadd.f32 %v1391, %v1428
        %v1445 = vadd.f32 %v1392, %v1429
        %v1446 = vadd.f32 %v1393, %v1430
        %v1447 = vadd.f32 %v1394, %v1431
        %v1448 = vadd.f32 %v1395, %v1432
        %v1449 = vadd.f32 %v1396, %v1433
        %v1450 = vadd.f32 %v1397, %v1434
        %v1451 = vld [vmem:[%s612 + $0x6] sm:$0xff]
        %v1452 = vld [vmem:[%s612 + $0xe] sm:$0xff]
        %v1453 = vld [vmem:[%s612 + $0x26] sm:$0xff]
        %v1454 = vld [vmem:[%s612 + $0x2e] sm:$0xff]
        %v1455 = vld [vmem:[%s612 + $0x46] sm:$0xff]
        %v1456 = vld [vmem:[%s612 + $0x4e] sm:$0xff]
        %v1457 = vld [vmem:[%s612 + $0x66] sm:$0xff]
        %v1458 = vld [vmem:[%s612 + $0x6e] sm:$0xff]
        %v1459 = vld [vmem:[%s612 + $0x86] sm:$0xff]
        %v1460 = vld [vmem:[%s612 + $0x8e] sm:$0xff]
        %v1461 = vld [vmem:[%s612 + $0xa6] sm:$0xff]
        %v1462 = vld [vmem:[%s612 + $0xae] sm:$0xff]
        %v1463 = vld [vmem:[%s612 + $0xc6] sm:$0xff]
        %v1464 = vld [vmem:[%s612 + $0xce] sm:$0xff]
        %v1465 = vld [vmem:[%s612 + $0xe6] sm:$0xff]
        %v1466 = vld [vmem:[%s612 + $0xee] sm:$0xff]
        %v1467 = vld [vmem:[#allocation9 + $0x3] sm:$0x1]
        %v1468 = vlaneseq
        %v1469 = vshrl.u32 %v1468, 7
        %v1470 = vsub.s32 0, %v1469
        %v1471 = vrot.slane %v1467, %v1470
        %v1472 = vmul.f32 %v1451, %v1471
        %v1473 = vmul.f32 %v1452, %v1471
        %v1474 = vmul.f32 %v1453, %v1471
        %v1475 = vmul.f32 %v1454, %v1471
        %v1476 = vmul.f32 %v1455, %v1471
        %v1477 = vmul.f32 %v1456, %v1471
        %v1478 = vmul.f32 %v1457, %v1471
        %v1479 = vmul.f32 %v1458, %v1471
        %v1480 = vmul.f32 %v1459, %v1471
        %v1481 = vmul.f32 %v1460, %v1471
        %v1482 = vmul.f32 %v1461, %v1471
        %v1483 = vmul.f32 %v1462, %v1471
        %v1484 = vmul.f32 %v1463, %v1471
        %v1485 = vmul.f32 %v1464, %v1471
        %v1486 = vmul.f32 %v1465, %v1471
        %v1487 = vmul.f32 %v1466, %v1471
        %v1488 = vadd.f32 %v1435, %v1472
        %v1489 = vadd.f32 %v1436, %v1473
        %v1490 = vadd.f32 %v1437, %v1474
        %v1491 = vadd.f32 %v1438, %v1475
        %v1492 = vadd.f32 %v1439, %v1476
        %v1493 = vadd.f32 %v1440, %v1477
        %v1494 = vadd.f32 %v1441, %v1478
        %v1495 = vadd.f32 %v1442, %v1479
        %v1496 = vadd.f32 %v1443, %v1480
        %v1497 = vadd.f32 %v1444, %v1481
        %v1498 = vadd.f32 %v1445, %v1482
        %v1499 = vadd.f32 %v1446, %v1483
        %v1500 = vadd.f32 %v1447, %v1484
        %v1501 = vadd.f32 %v1448, %v1485
        %v1502 = vadd.f32 %v1449, %v1486
        %v1503 = vadd.f32 %v1450, %v1487
        %v1504 = vld [vmem:[#allocation9 + $0x4] sm:$0x1]
        %v1505 = vlaneseq
        %v1506 = vshrl.u32 %v1505, 7
        %v1507 = vsub.s32 0, %v1506
        %v1508 = vrot.slane %v1504, %v1507
        %v1509 = vmul.f32 %v971, %v1508
        %v1510 = vmul.f32 %v972, %v1508
        %v1511 = vmul.f32 %v973, %v1508
        %v1512 = vmul.f32 %v974, %v1508
        %v1513 = vmul.f32 %v975, %v1508
        %v1514 = vmul.f32 %v976, %v1508
        %v1515 = vmul.f32 %v977, %v1508
        %v1516 = vmul.f32 %v978, %v1508
        %v1517 = vmul.f32 %v979, %v1508
        %v1518 = vmul.f32 %v980, %v1508
        %v1519 = vmul.f32 %v981, %v1508
        %v1520 = vmul.f32 %v982, %v1508
        %v1521 = vmul.f32 %v983, %v1508
        %v1522 = vmul.f32 %v984, %v1508
        %v1523 = vmul.f32 %v985, %v1508
        %v1524 = vmul.f32 %v986, %v1508
        %v1525 = vadd.f32 %v1488, %v1509
        %v1526 = vadd.f32 %v1489, %v1510
        %v1527 = vadd.f32 %v1490, %v1511
        %v1528 = vadd.f32 %v1491, %v1512
        %v1529 = vadd.f32 %v1492, %v1513
        %v1530 = vadd.f32 %v1493, %v1514
        %v1531 = vadd.f32 %v1494, %v1515
        %v1532 = vadd.f32 %v1495, %v1516
        %v1533 = vadd.f32 %v1496, %v1517
        %v1534 = vadd.f32 %v1497, %v1518
        %v1535 = vadd.f32 %v1498, %v1519
        %v1536 = vadd.f32 %v1499, %v1520
        %v1537 = vadd.f32 %v1500, %v1521
        %v1538 = vadd.f32 %v1501, %v1522
        %v1539 = vadd.f32 %v1502, %v1523
        %v1540 = vadd.f32 %v1503, %v1524
        %v1541 = vld [vmem:[#allocation9 + $0x5] sm:$0x1]
        %v1542 = vlaneseq
        %v1543 = vshrl.u32 %v1542, 7
        %v1544 = vsub.s32 0, %v1543
        %v1545 = vrot.slane %v1541, %v1544
        %v1546 = vmul.f32 %v1025, %v1545
        %v1547 = vmul.f32 %v1026, %v1545
        %v1548 = vmul.f32 %v1027, %v1545
        %v1549 = vmul.f32 %v1028, %v1545
        %v1550 = vmul.f32 %v1029, %v1545
        %v1551 = vmul.f32 %v1030, %v1545
        %v1552 = vmul.f32 %v1031, %v1545
        %v1553 = vmul.f32 %v1032, %v1545
        %v1554 = vmul.f32 %v1033, %v1545
        %v1555 = vmul.f32 %v1034, %v1545
        %v1556 = vmul.f32 %v1035, %v1545
        %v1557 = vmul.f32 %v1036, %v1545
        %v1558 = vmul.f32 %v1037, %v1545
        %v1559 = vmul.f32 %v1038, %v1545
        %v1560 = vmul.f32 %v1039, %v1545
        %v1561 = vmul.f32 %v1040, %v1545
        %v1562 = vadd.f32 %v1525, %v1546
        %v1563 = vadd.f32 %v1526, %v1547
        %v1564 = vadd.f32 %v1527, %v1548
        %v1565 = vadd.f32 %v1528, %v1549
        %v1566 = vadd.f32 %v1529, %v1550
        %v1567 = vadd.f32 %v1530, %v1551
        %v1568 = vadd.f32 %v1531, %v1552
        %v1569 = vadd.f32 %v1532, %v1553
        %v1570 = vadd.f32 %v1533, %v1554
        %v1571 = vadd.f32 %v1534, %v1555
        %v1572 = vadd.f32 %v1535, %v1556
        %v1573 = vadd.f32 %v1536, %v1557
        %v1574 = vadd.f32 %v1537, %v1558
        %v1575 = vadd.f32 %v1538, %v1559
        %v1576 = vadd.f32 %v1539, %v1560
        %v1577 = vadd.f32 %v1540, %v1561
        %v1578 = vld [vmem:[#allocation9 + $0x6] sm:$0x1]
        %v1579 = vlaneseq
        %v1580 = vshrl.u32 %v1579, 7
        %v1581 = vsub.s32 0, %v1580
        %v1582 = vrot.slane %v1578, %v1581
        %v1583 = vmul.f32 %v1078, %v1582
        %v1584 = vmul.f32 %v1079, %v1582
        %v1585 = vmul.f32 %v1080, %v1582
        %v1586 = vmul.f32 %v1081, %v1582
        %v1587 = vmul.f32 %v1082, %v1582
        %v1588 = vmul.f32 %v1083, %v1582
        %v1589 = vmul.f32 %v1084, %v1582
        %v1590 = vmul.f32 %v1085, %v1582
        %v1591 = vmul.f32 %v1086, %v1582
        %v1592 = vmul.f32 %v1087, %v1582
        %v1593 = vmul.f32 %v1088, %v1582
        %v1594 = vmul.f32 %v1089, %v1582
        %v1595 = vmul.f32 %v1090, %v1582
        %v1596 = vmul.f32 %v1091, %v1582
        %v1597 = vmul.f32 %v1092, %v1582
        %v1598 = vmul.f32 %v1093, %v1582
        %v1599 = vadd.f32 %v1562, %v1583
        %v1600 = vadd.f32 %v1563, %v1584
        %v1601 = vadd.f32 %v1564, %v1585
        %v1602 = vadd.f32 %v1565, %v1586
        %v1603 = vadd.f32 %v1566, %v1587
        %v1604 = vadd.f32 %v1567, %v1588
        %v1605 = vadd.f32 %v1568, %v1589
        %v1606 = vadd.f32 %v1569, %v1590
        %v1607 = vadd.f32 %v1570, %v1591
        %v1608 = vadd.f32 %v1571, %v1592
        %v1609 = vadd.f32 %v1572, %v1593
        %v1610 = vadd.f32 %v1573, %v1594
        %v1611 = vadd.f32 %v1574, %v1595
        %v1612 = vadd.f32 %v1575, %v1596
        %v1613 = vadd.f32 %v1576, %v1597
        %v1614 = vadd.f32 %v1577, %v1598
        %v1615 = vld [vmem:[%s612 + $0xa] sm:$0xff]
        %v1616 = vld [vmem:[%s612 + $0x12] sm:$0xff]
        %v1617 = vld [vmem:[%s612 + $0x2a] sm:$0xff]
        %v1618 = vld [vmem:[%s612 + $0x32] sm:$0xff]
        %v1619 = vld [vmem:[%s612 + $0x4a] sm:$0xff]
        %v1620 = vld [vmem:[%s612 + $0x52] sm:$0xff]
        %v1621 = vld [vmem:[%s612 + $0x6a] sm:$0xff]
        %v1622 = vld [vmem:[%s612 + $0x72] sm:$0xff]
        %v1623 = vld [vmem:[%s612 + $0x8a] sm:$0xff]
        %v1624 = vld [vmem:[%s612 + $0x92] sm:$0xff]
        %v1625 = vld [vmem:[%s612 + $0xaa] sm:$0xff]
        %v1626 = vld [vmem:[%s612 + $0xb2] sm:$0xff]
        %v1627 = vld [vmem:[%s612 + $0xca] sm:$0xff]
        %v1628 = vld [vmem:[%s612 + $0xd2] sm:$0xff]
        %v1629 = vld [vmem:[%s612 + $0xea] sm:$0xff]
        %v1630 = vld [vmem:[%s612 + $0xf2] sm:$0xff]
        %v1631 = vld [vmem:[#allocation9 + $0x7] sm:$0x1]
        %v1632 = vlaneseq
        %v1633 = vshrl.u32 %v1632, 7
        %v1634 = vsub.s32 0, %v1633
        %v1635 = vrot.slane %v1631, %v1634
        %v1636 = vmul.f32 %v1615, %v1635
        %v1637 = vmul.f32 %v1616, %v1635
        %v1638 = vmul.f32 %v1617, %v1635
        %v1639 = vmul.f32 %v1618, %v1635
        %v1640 = vmul.f32 %v1619, %v1635
        %v1641 = vmul.f32 %v1620, %v1635
        %v1642 = vmul.f32 %v1621, %v1635
        %v1643 = vmul.f32 %v1622, %v1635
        %v1644 = vmul.f32 %v1623, %v1635
        %v1645 = vmul.f32 %v1624, %v1635
        %v1646 = vmul.f32 %v1625, %v1635
        %v1647 = vmul.f32 %v1626, %v1635
        %v1648 = vmul.f32 %v1627, %v1635
        %v1649 = vmul.f32 %v1628, %v1635
        %v1650 = vmul.f32 %v1629, %v1635
        %v1651 = vmul.f32 %v1630, %v1635
        %v1652 = vadd.f32 %v1599, %v1636
        %v1653 = vadd.f32 %v1600, %v1637
        %v1654 = vadd.f32 %v1601, %v1638
        %v1655 = vadd.f32 %v1602, %v1639
        %v1656 = vadd.f32 %v1603, %v1640
        %v1657 = vadd.f32 %v1604, %v1641
        %v1658 = vadd.f32 %v1605, %v1642
        %v1659 = vadd.f32 %v1606, %v1643
        %v1660 = vadd.f32 %v1607, %v1644
        %v1661 = vadd.f32 %v1608, %v1645
        %v1662 = vadd.f32 %v1609, %v1646
        %v1663 = vadd.f32 %v1610, %v1647
        %v1664 = vadd.f32 %v1611, %v1648
        %v1665 = vadd.f32 %v1612, %v1649
        %v1666 = vadd.f32 %v1613, %v1650
        %v1667 = vadd.f32 %v1614, %v1651
        %v1668 = vld [vmem:[%s612 + $0x13] sm:$0xff]
        %v1669 = vld [vmem:[%s612 + $0x33] sm:$0xff]
        %v1670 = vld [vmem:[%s612 + $0x53] sm:$0xff]
        %v1671 = vld [vmem:[%s612 + $0x73] sm:$0xff]
        %v1672 = vld [vmem:[%s612 + $0x93] sm:$0xff]
        %v1673 = vld [vmem:[%s612 + $0xb3] sm:$0xff]
        %v1674 = vld [vmem:[%s612 + $0xd3] sm:$0xff]
        %v1675 = vld [vmem:[%s612 + $0xf3] sm:$0xff]
        %v1676 = vld [vmem:[#allocation9 + $0x8] sm:$0x1]
        %v1677 = vlaneseq
        %v1678 = vshrl.u32 %v1677, 7
        %v1679 = vsub.s32 0, %v1678
        %v1680 = vrot.slane %v1676, %v1679
        %v1681 = vmul.f32 %v1293, %v1680
        %v1682 = vmul.f32 %v1668, %v1680
        %v1683 = vmul.f32 %v1295, %v1680
        %v1684 = vmul.f32 %v1669, %v1680
        %v1685 = vmul.f32 %v1297, %v1680
        %v1686 = vmul.f32 %v1670, %v1680
        %v1687 = vmul.f32 %v1299, %v1680
        %v1688 = vmul.f32 %v1671, %v1680
        %v1689 = vmul.f32 %v1301, %v1680
        %v1690 = vmul.f32 %v1672, %v1680
        %v1691 = vmul.f32 %v1303, %v1680
        %v1692 = vmul.f32 %v1673, %v1680
        %v1693 = vmul.f32 %v1305, %v1680
        %v1694 = vmul.f32 %v1674, %v1680
        %v1695 = vmul.f32 %v1307, %v1680
        %v1696 = vmul.f32 %v1675, %v1680
        %v1697 = vadd.f32 %v1652, %v1681
        %v1698 = vadd.f32 %v1653, %v1682
        %v1699 = vadd.f32 %v1654, %v1683
        %v1700 = vadd.f32 %v1655, %v1684
        %v1701 = vadd.f32 %v1656, %v1685
        %v1702 = vadd.f32 %v1657, %v1686
        %v1703 = vadd.f32 %v1658, %v1687
        %v1704 = vadd.f32 %v1659, %v1688
        %v1705 = vadd.f32 %v1660, %v1689
        %v1706 = vadd.f32 %v1661, %v1690
        %v1707 = vadd.f32 %v1662, %v1691
        %v1708 = vadd.f32 %v1663, %v1692
        %v1709 = vadd.f32 %v1664, %v1693
        %v1710 = vadd.f32 %v1665, %v1694
        %v1711 = vadd.f32 %v1666, %v1695
        %v1712 = vadd.f32 %v1667, %v1696
        %v1713 = vld [vmem:[%s612 + $0x14] sm:$0xff]
        %v1714 = vld [vmem:[%s612 + $0x34] sm:$0xff]
        %v1715 = vld [vmem:[%s612 + $0x54] sm:$0xff]
        %v1716 = vld [vmem:[%s612 + $0x74] sm:$0xff]
        %v1717 = vld [vmem:[%s612 + $0x94] sm:$0xff]
        %v1718 = vld [vmem:[%s612 + $0xb4] sm:$0xff]
        %v1719 = vld [vmem:[%s612 + $0xd4] sm:$0xff]
        %v1720 = vld [vmem:[%s612 + $0xf4] sm:$0xff]
        %v1721 = vld [vmem:[#allocation9 + $0x9] sm:$0x1]
        %v1722 = vlaneseq
        %v1723 = vshrl.u32 %v1722, 7
        %v1724 = vsub.s32 0, %v1723
        %v1725 = vrot.slane %v1721, %v1724
        %v1726 = vmul.f32 %v1346, %v1725
        %v1727 = vmul.f32 %v1713, %v1725
        %v1728 = vmul.f32 %v1348, %v1725
        %v1729 = vmul.f32 %v1714, %v1725
        %v1730 = vmul.f32 %v1350, %v1725
        %v1731 = vmul.f32 %v1715, %v1725
        %v1732 = vmul.f32 %v1352, %v1725
        %v1733 = vmul.f32 %v1716, %v1725
        %v1734 = vmul.f32 %v1354, %v1725
        %v1735 = vmul.f32 %v1717, %v1725
        %v1736 = vmul.f32 %v1356, %v1725
        %v1737 = vmul.f32 %v1718, %v1725
        %v1738 = vmul.f32 %v1358, %v1725
        %v1739 = vmul.f32 %v1719, %v1725
        %v1740 = vmul.f32 %v1360, %v1725
        %v1741 = vmul.f32 %v1720, %v1725
        %v1742 = vadd.f32 %v1697, %v1726
        %v1743 = vadd.f32 %v1698, %v1727
        %v1744 = vadd.f32 %v1699, %v1728
        %v1745 = vadd.f32 %v1700, %v1729
        %v1746 = vadd.f32 %v1701, %v1730
        %v1747 = vadd.f32 %v1702, %v1731
        %v1748 = vadd.f32 %v1703, %v1732
        %v1749 = vadd.f32 %v1704, %v1733
        %v1750 = vadd.f32 %v1705, %v1734
        %v1751 = vadd.f32 %v1706, %v1735
        %v1752 = vadd.f32 %v1707, %v1736
        %v1753 = vadd.f32 %v1708, %v1737
        %v1754 = vadd.f32 %v1709, %v1738
        %v1755 = vadd.f32 %v1710, %v1739
        %v1756 = vadd.f32 %v1711, %v1740
        %v1757 = vadd.f32 %v1712, %v1741
        %v1758 = vld [vmem:[%s612 + $0x15] sm:$0xff]
        %v1759 = vld [vmem:[%s612 + $0x35] sm:$0xff]
        %v1760 = vld [vmem:[%s612 + $0x55] sm:$0xff]
        %v1761 = vld [vmem:[%s612 + $0x75] sm:$0xff]
        %v1762 = vld [vmem:[%s612 + $0x95] sm:$0xff]
        %v1763 = vld [vmem:[%s612 + $0xb5] sm:$0xff]
        %v1764 = vld [vmem:[%s612 + $0xd5] sm:$0xff]
        %v1765 = vld [vmem:[%s612 + $0xf5] sm:$0xff]
        %v1766 = vld [vmem:[#allocation9 + $0xa] sm:$0x1]
        %v1767 = vlaneseq
        %v1768 = vshrl.u32 %v1767, 7
        %v1769 = vsub.s32 0, %v1768
        %v1770 = vrot.slane %v1766, %v1769
        %v1771 = vmul.f32 %v1399, %v1770
        %v1772 = vmul.f32 %v1758, %v1770
        %v1773 = vmul.f32 %v1401, %v1770
        %v1774 = vmul.f32 %v1759, %v1770
        %v1775 = vmul.f32 %v1403, %v1770
        %v1776 = vmul.f32 %v1760, %v1770
        %v1777 = vmul.f32 %v1405, %v1770
        %v1778 = vmul.f32 %v1761, %v1770
        %v1779 = vmul.f32 %v1407, %v1770
        %v1780 = vmul.f32 %v1762, %v1770
        %v1781 = vmul.f32 %v1409, %v1770
        %v1782 = vmul.f32 %v1763, %v1770
        %v1783 = vmul.f32 %v1411, %v1770
        %v1784 = vmul.f32 %v1764, %v1770
        %v1785 = vmul.f32 %v1413, %v1770
        %v1786 = vmul.f32 %v1765, %v1770
        %v1787 = vadd.f32 %v1742, %v1771
        %v1788 = vadd.f32 %v1743, %v1772
        %v1789 = vadd.f32 %v1744, %v1773
        %v1790 = vadd.f32 %v1745, %v1774
        %v1791 = vadd.f32 %v1746, %v1775
        %v1792 = vadd.f32 %v1747, %v1776
        %v1793 = vadd.f32 %v1748, %v1777
        %v1794 = vadd.f32 %v1749, %v1778
        %v1795 = vadd.f32 %v1750, %v1779
        %v1796 = vadd.f32 %v1751, %v1780
        %v1797 = vadd.f32 %v1752, %v1781
        %v1798 = vadd.f32 %v1753, %v1782
        %v1799 = vadd.f32 %v1754, %v1783
        %v1800 = vadd.f32 %v1755, %v1784
        %v1801 = vadd.f32 %v1756, %v1785
        %v1802 = vadd.f32 %v1757, %v1786
        %v1803 = vld [vmem:[#allocation2 + $0x8] sm:$0xff]
        %v1804 = vld [vmem:[#allocation2 + $0x10] sm:$0xff]
        %v1805 = vld [vmem:[#allocation2 + $0x28] sm:$0xff]
        %v1806 = vld [vmem:[#allocation2 + $0x30] sm:$0xff]
        %v1807 = vld [vmem:[#allocation2 + $0x48] sm:$0xff]
        %v1808 = vld [vmem:[#allocation2 + $0x50] sm:$0xff]
        %v1809 = vld [vmem:[#allocation2 + $0x68] sm:$0xff]
        %v1810 = vld [vmem:[#allocation2 + $0x70] sm:$0xff]
        %v1811 = vld [vmem:[#allocation2 + $0x88] sm:$0xff]
        %v1812 = vld [vmem:[#allocation2 + $0x90] sm:$0xff]
        %v1813 = vld [vmem:[#allocation2 + $0xa8] sm:$0xff]
        %v1814 = vld [vmem:[#allocation2 + $0xb0] sm:$0xff]
        %v1815 = vld [vmem:[#allocation2 + $0xc8] sm:$0xff]
        %v1816 = vld [vmem:[#allocation2 + $0xd0] sm:$0xff]
        %v1817 = vld [vmem:[#allocation2 + $0xe8] sm:$0xff]
        %v1818 = vld [vmem:[#allocation2 + $0xf0] sm:$0xff]
        %v1819 = vld [vmem:[%s5] sm:$0x1]
        %v1820 = vlaneseq
        %v1821 = vshrl.u32 %v1820, 7
        %v1822 = vsub.s32 0, %v1821
        %v1823 = vrot.slane %v1819, %v1822
        %v1824 = vmul.f32 %v1803, %v1823
        %v1825 = vmul.f32 %v1804, %v1823
        %v1826 = vmul.f32 %v1805, %v1823
        %v1827 = vmul.f32 %v1806, %v1823
        %v1828 = vmul.f32 %v1807, %v1823
        %v1829 = vmul.f32 %v1808, %v1823
        %v1830 = vmul.f32 %v1809, %v1823
        %v1831 = vmul.f32 %v1810, %v1823
        %v1832 = vmul.f32 %v1811, %v1823
        %v1833 = vmul.f32 %v1812, %v1823
        %v1834 = vmul.f32 %v1813, %v1823
        %v1835 = vmul.f32 %v1814, %v1823
        %v1836 = vmul.f32 %v1815, %v1823
        %v1837 = vmul.f32 %v1816, %v1823
        %v1838 = vmul.f32 %v1817, %v1823
        %v1839 = vmul.f32 %v1818, %v1823
        %v1840 = vadd.f32 %v1787, %v1824
        %v1841 = vadd.f32 %v1788, %v1825
        %v1842 = vadd.f32 %v1789, %v1826
        %v1843 = vadd.f32 %v1790, %v1827
        %v1844 = vadd.f32 %v1791, %v1828
        %v1845 = vadd.f32 %v1792, %v1829
        %v1846 = vadd.f32 %v1793, %v1830
        %v1847 = vadd.f32 %v1794, %v1831
        %v1848 = vadd.f32 %v1795, %v1832
        %v1849 = vadd.f32 %v1796, %v1833
        %v1850 = vadd.f32 %v1797, %v1834
        %v1851 = vadd.f32 %v1798, %v1835
        %v1852 = vadd.f32 %v1799, %v1836
        %v1853 = vadd.f32 %v1800, %v1837
        %v1854 = vadd.f32 %v1801, %v1838
        %v1855 = vadd.f32 %v1802, %v1839
        %s1856 = scalar_lea.vmem [#allocation2], 32
        %v1857 = vld [vmem:[%s1856 + $0x8] sm:$0xff]
        %v1858 = vld [vmem:[%s1856 + $0x10] sm:$0xff]
        %v1859 = vld [vmem:[%s1856 + $0x28] sm:$0xff]
        %v1860 = vld [vmem:[%s1856 + $0x30] sm:$0xff]
        %v1861 = vld [vmem:[%s1856 + $0x48] sm:$0xff]
        %v1862 = vld [vmem:[%s1856 + $0x50] sm:$0xff]
        %v1863 = vld [vmem:[%s1856 + $0x68] sm:$0xff]
        %v1864 = vld [vmem:[%s1856 + $0x70] sm:$0xff]
        %v1865 = vld [vmem:[%s1856 + $0x88] sm:$0xff]
        %v1866 = vld [vmem:[%s1856 + $0x90] sm:$0xff]
        %v1867 = vld [vmem:[%s1856 + $0xa8] sm:$0xff]
        %v1868 = vld [vmem:[%s1856 + $0xb0] sm:$0xff]
        %v1869 = vld [vmem:[%s1856 + $0xc8] sm:$0xff]
        %v1870 = vld [vmem:[%s1856 + $0xd0] sm:$0xff]
        %v1871 = vld [vmem:[%s1856 + $0xe8] sm:$0xff]
        %v1872 = vld [vmem:[%s1856 + $0xf0] sm:$0xff]
        %v1873 = vld [vmem:[%s5 + $0x1] sm:$0x1]
        %v1874 = vlaneseq
        %v1875 = vshrl.u32 %v1874, 7
        %v1876 = vsub.s32 0, %v1875
        %v1877 = vrot.slane %v1873, %v1876
        %v1878 = vmul.f32 %v1857, %v1877
        %v1879 = vmul.f32 %v1858, %v1877
        %v1880 = vmul.f32 %v1859, %v1877
        %v1881 = vmul.f32 %v1860, %v1877
        %v1882 = vmul.f32 %v1861, %v1877
        %v1883 = vmul.f32 %v1862, %v1877
        %v1884 = vmul.f32 %v1863, %v1877
        %v1885 = vmul.f32 %v1864, %v1877
        %v1886 = vmul.f32 %v1865, %v1877
        %v1887 = vmul.f32 %v1866, %v1877
        %v1888 = vmul.f32 %v1867, %v1877
        %v1889 = vmul.f32 %v1868, %v1877
        %v1890 = vmul.f32 %v1869, %v1877
        %v1891 = vmul.f32 %v1870, %v1877
        %v1892 = vmul.f32 %v1871, %v1877
        %v1893 = vmul.f32 %v1872, %v1877
        %v1894 = vadd.f32 %v1840, %v1878
        %v1895 = vadd.f32 %v1841, %v1879
        %v1896 = vadd.f32 %v1842, %v1880
        %v1897 = vadd.f32 %v1843, %v1881
        %v1898 = vadd.f32 %v1844, %v1882
        %v1899 = vadd.f32 %v1845, %v1883
        %v1900 = vadd.f32 %v1846, %v1884
        %v1901 = vadd.f32 %v1847, %v1885
        %v1902 = vadd.f32 %v1848, %v1886
        %v1903 = vadd.f32 %v1849, %v1887
        %v1904 = vadd.f32 %v1850, %v1888
        %v1905 = vadd.f32 %v1851, %v1889
        %v1906 = vadd.f32 %v1852, %v1890
        %v1907 = vadd.f32 %v1853, %v1891
        %v1908 = vadd.f32 %v1854, %v1892
        %v1909 = vadd.f32 %v1855, %v1893
        %s1910 = scalar_lea.vmem [#allocation2], 64
        %v1911 = vld [vmem:[%s1910 + $0x8] sm:$0xff]
        %v1912 = vld [vmem:[%s1910 + $0x10] sm:$0xff]
        %v1913 = vld [vmem:[%s1910 + $0x28] sm:$0xff]
        %v1914 = vld [vmem:[%s1910 + $0x30] sm:$0xff]
        %v1915 = vld [vmem:[%s1910 + $0x48] sm:$0xff]
        %v1916 = vld [vmem:[%s1910 + $0x50] sm:$0xff]
        %v1917 = vld [vmem:[%s1910 + $0x68] sm:$0xff]
        %v1918 = vld [vmem:[%s1910 + $0x70] sm:$0xff]
        %v1919 = vld [vmem:[%s1910 + $0x88] sm:$0xff]
        %v1920 = vld [vmem:[%s1910 + $0x90] sm:$0xff]
        %v1921 = vld [vmem:[%s1910 + $0xa8] sm:$0xff]
        %v1922 = vld [vmem:[%s1910 + $0xb0] sm:$0xff]
        %v1923 = vld [vmem:[%s1910 + $0xc8] sm:$0xff]
        %v1924 = vld [vmem:[%s1910 + $0xd0] sm:$0xff]
        %v1925 = vld [vmem:[%s1910 + $0xe8] sm:$0xff]
        %v1926 = vld [vmem:[%s1910 + $0xf0] sm:$0xff]
        %v1927 = vld [vmem:[%s5 + $0x2] sm:$0x1]
        %v1928 = vlaneseq
        %v1929 = vshrl.u32 %v1928, 7
        %v1930 = vsub.s32 0, %v1929
        %v1931 = vrot.slane %v1927, %v1930
        %v1932 = vmul.f32 %v1911, %v1931
        %v1933 = vmul.f32 %v1912, %v1931
        %v1934 = vmul.f32 %v1913, %v1931
        %v1935 = vmul.f32 %v1914, %v1931
        %v1936 = vmul.f32 %v1915, %v1931
        %v1937 = vmul.f32 %v1916, %v1931
        %v1938 = vmul.f32 %v1917, %v1931
        %v1939 = vmul.f32 %v1918, %v1931
        %v1940 = vmul.f32 %v1919, %v1931
        %v1941 = vmul.f32 %v1920, %v1931
        %v1942 = vmul.f32 %v1921, %v1931
        %v1943 = vmul.f32 %v1922, %v1931
        %v1944 = vmul.f32 %v1923, %v1931
        %v1945 = vmul.f32 %v1924, %v1931
        %v1946 = vmul.f32 %v1925, %v1931
        %v1947 = vmul.f32 %v1926, %v1931
        %v1948 = vadd.f32 %v1894, %v1932
        %v1949 = vadd.f32 %v1895, %v1933
        %v1950 = vadd.f32 %v1896, %v1934
        %v1951 = vadd.f32 %v1897, %v1935
        %v1952 = vadd.f32 %v1898, %v1936
        %v1953 = vadd.f32 %v1899, %v1937
        %v1954 = vadd.f32 %v1900, %v1938
        %v1955 = vadd.f32 %v1901, %v1939
        %v1956 = vadd.f32 %v1902, %v1940
        %v1957 = vadd.f32 %v1903, %v1941
        %v1958 = vadd.f32 %v1904, %v1942
        %v1959 = vadd.f32 %v1905, %v1943
        %v1960 = vadd.f32 %v1906, %v1944
        %v1961 = vadd.f32 %v1907, %v1945
        %v1962 = vadd.f32 %v1908, %v1946
        %v1963 = vadd.f32 %v1909, %v1947
        %s1964 = scalar_lea.vmem [#allocation2], 96
        %v1965 = vld [vmem:[%s1964 + $0x8] sm:$0xff]
        %v1966 = vld [vmem:[%s1964 + $0x10] sm:$0xff]
        %v1967 = vld [vmem:[%s1964 + $0x28] sm:$0xff]
        %v1968 = vld [vmem:[%s1964 + $0x30] sm:$0xff]
        %v1969 = vld [vmem:[%s1964 + $0x48] sm:$0xff]
        %v1970 = vld [vmem:[%s1964 + $0x50] sm:$0xff]
        %v1971 = vld [vmem:[%s1964 + $0x68] sm:$0xff]
        %v1972 = vld [vmem:[%s1964 + $0x70] sm:$0xff]
        %v1973 = vld [vmem:[%s1964 + $0x88] sm:$0xff]
        %v1974 = vld [vmem:[%s1964 + $0x90] sm:$0xff]
        %v1975 = vld [vmem:[%s1964 + $0xa8] sm:$0xff]
        %v1976 = vld [vmem:[%s1964 + $0xb0] sm:$0xff]
        %v1977 = vld [vmem:[%s1964 + $0xc8] sm:$0xff]
        %v1978 = vld [vmem:[%s1964 + $0xd0] sm:$0xff]
        %v1979 = vld [vmem:[%s1964 + $0xe8] sm:$0xff]
        %v1980 = vld [vmem:[%s1964 + $0xf0] sm:$0xff]
        %v1981 = vld [vmem:[%s5 + $0x3] sm:$0x1]
        %v1982 = vlaneseq
        %v1983 = vshrl.u32 %v1982, 7
        %v1984 = vsub.s32 0, %v1983
        %v1985 = vrot.slane %v1981, %v1984
        %v1986 = vmul.f32 %v1965, %v1985
        %v1987 = vmul.f32 %v1966, %v1985
        %v1988 = vmul.f32 %v1967, %v1985
        %v1989 = vmul.f32 %v1968, %v1985
        %v1990 = vmul.f32 %v1969, %v1985
        %v1991 = vmul.f32 %v1970, %v1985
        %v1992 = vmul.f32 %v1971, %v1985
        %v1993 = vmul.f32 %v1972, %v1985
        %v1994 = vmul.f32 %v1973, %v1985
        %v1995 = vmul.f32 %v1974, %v1985
        %v1996 = vmul.f32 %v1975, %v1985
        %v1997 = vmul.f32 %v1976, %v1985
        %v1998 = vmul.f32 %v1977, %v1985
        %v1999 = vmul.f32 %v1978, %v1985
        %v2000 = vmul.f32 %v1979, %v1985
        %v2001 = vmul.f32 %v1980, %v1985
        %v2002 = vadd.f32 %v1948, %v1986
        %v2003 = vadd.f32 %v1949, %v1987
        %v2004 = vadd.f32 %v1950, %v1988
        %v2005 = vadd.f32 %v1951, %v1989
        %v2006 = vadd.f32 %v1952, %v1990
        %v2007 = vadd.f32 %v1953, %v1991
        %v2008 = vadd.f32 %v1954, %v1992
        %v2009 = vadd.f32 %v1955, %v1993
        %v2010 = vadd.f32 %v1956, %v1994
        %v2011 = vadd.f32 %v1957, %v1995
        %v2012 = vadd.f32 %v1958, %v1996
        %v2013 = vadd.f32 %v1959, %v1997
        %v2014 = vadd.f32 %v1960, %v1998
        %v2015 = vadd.f32 %v1961, %v1999
        %v2016 = vadd.f32 %v1962, %v2000
        %v2017 = vadd.f32 %v1963, %v2001
        %v2018 = vld [vmem:[%s5 + $0x4] sm:$0x1]
        %v2019 = vlaneseq
        %v2020 = vshrl.u32 %v2019, 7
        %v2021 = vsub.s32 0, %v2020
        %v2022 = vrot.slane %v2018, %v2021
        %v2023 = vmul.f32 %v865, %v2022
        %v2024 = vmul.f32 %v866, %v2022
        %v2025 = vmul.f32 %v867, %v2022
        %v2026 = vmul.f32 %v868, %v2022
        %v2027 = vmul.f32 %v869, %v2022
        %v2028 = vmul.f32 %v870, %v2022
        %v2029 = vmul.f32 %v871, %v2022
        %v2030 = vmul.f32 %v872, %v2022
        %v2031 = vmul.f32 %v873, %v2022
        %v2032 = vmul.f32 %v874, %v2022
        %v2033 = vmul.f32 %v875, %v2022
        %v2034 = vmul.f32 %v876, %v2022
        %v2035 = vmul.f32 %v877, %v2022
        %v2036 = vmul.f32 %v878, %v2022
        %v2037 = vmul.f32 %v879, %v2022
        %v2038 = vmul.f32 %v880, %v2022
        %v2039 = vadd.f32 %v2002, %v2023
        %v2040 = vadd.f32 %v2003, %v2024
        %v2041 = vadd.f32 %v2004, %v2025
        %v2042 = vadd.f32 %v2005, %v2026
        %v2043 = vadd.f32 %v2006, %v2027
        %v2044 = vadd.f32 %v2007, %v2028
        %v2045 = vadd.f32 %v2008, %v2029
        %v2046 = vadd.f32 %v2009, %v2030
        %v2047 = vadd.f32 %v2010, %v2031
        %v2048 = vadd.f32 %v2011, %v2032
        %v2049 = vadd.f32 %v2012, %v2033
        %v2050 = vadd.f32 %v2013, %v2034
        %v2051 = vadd.f32 %v2014, %v2035
        %v2052 = vadd.f32 %v2015, %v2036
        %v2053 = vadd.f32 %v2016, %v2037
        %v2054 = vadd.f32 %v2017, %v2038
        %v2055 = vld [vmem:[%s5 + $0x5] sm:$0x1]
        %v2056 = vlaneseq
        %v2057 = vshrl.u32 %v2056, 7
        %v2058 = vsub.s32 0, %v2057
        %v2059 = vrot.slane %v2055, %v2058
        %v2060 = vmul.f32 %v1025, %v2059
        %v2061 = vmul.f32 %v1026, %v2059
        %v2062 = vmul.f32 %v1027, %v2059
        %v2063 = vmul.f32 %v1028, %v2059
        %v2064 = vmul.f32 %v1029, %v2059
        %v2065 = vmul.f32 %v1030, %v2059
        %v2066 = vmul.f32 %v1031, %v2059
        %v2067 = vmul.f32 %v1032, %v2059
        %v2068 = vmul.f32 %v1033, %v2059
        %v2069 = vmul.f32 %v1034, %v2059
        %v2070 = vmul.f32 %v1035, %v2059
        %v2071 = vmul.f32 %v1036, %v2059
        %v2072 = vmul.f32 %v1037, %v2059
        %v2073 = vmul.f32 %v1038, %v2059
        %v2074 = vmul.f32 %v1039, %v2059
        %v2075 = vmul.f32 %v1040, %v2059
        %v2076 = vadd.f32 %v2039, %v2060
        %v2077 = vadd.f32 %v2040, %v2061
        %v2078 = vadd.f32 %v2041, %v2062
        %v2079 = vadd.f32 %v2042, %v2063
        %v2080 = vadd.f32 %v2043, %v2064
        %v2081 = vadd.f32 %v2044, %v2065
        %v2082 = vadd.f32 %v2045, %v2066
        %v2083 = vadd.f32 %v2046, %v2067
        %v2084 = vadd.f32 %v2047, %v2068
        %v2085 = vadd.f32 %v2048, %v2069
        %v2086 = vadd.f32 %v2049, %v2070
        %v2087 = vadd.f32 %v2050, %v2071
        %v2088 = vadd.f32 %v2051, %v2072
        %v2089 = vadd.f32 %v2052, %v2073
        %v2090 = vadd.f32 %v2053, %v2074
        %v2091 = vadd.f32 %v2054, %v2075
        %v2092 = vld [vmem:[%s5 + $0x6] sm:$0x1]
        %v2093 = vlaneseq
        %v2094 = vshrl.u32 %v2093, 7
        %v2095 = vsub.s32 0, %v2094
        %v2096 = vrot.slane %v2092, %v2095
        %v2097 = vmul.f32 %v1186, %v2096
        %v2098 = vmul.f32 %v1187, %v2096
        %v2099 = vmul.f32 %v1188, %v2096
        %v2100 = vmul.f32 %v1189, %v2096
        %v2101 = vmul.f32 %v1190, %v2096
        %v2102 = vmul.f32 %v1191, %v2096
        %v2103 = vmul.f32 %v1192, %v2096
        %v2104 = vmul.f32 %v1193, %v2096
        %v2105 = vmul.f32 %v1194, %v2096
        %v2106 = vmul.f32 %v1195, %v2096
        %v2107 = vmul.f32 %v1196, %v2096
        %v2108 = vmul.f32 %v1197, %v2096
        %v2109 = vmul.f32 %v1198, %v2096
        %v2110 = vmul.f32 %v1199, %v2096
        %v2111 = vmul.f32 %v1200, %v2096
        %v2112 = vmul.f32 %v1201, %v2096
        %v2113 = vadd.f32 %v2076, %v2097
        %v2114 = vadd.f32 %v2077, %v2098
        %v2115 = vadd.f32 %v2078, %v2099
        %v2116 = vadd.f32 %v2079, %v2100
        %v2117 = vadd.f32 %v2080, %v2101
        %v2118 = vadd.f32 %v2081, %v2102
        %v2119 = vadd.f32 %v2082, %v2103
        %v2120 = vadd.f32 %v2083, %v2104
        %v2121 = vadd.f32 %v2084, %v2105
        %v2122 = vadd.f32 %v2085, %v2106
        %v2123 = vadd.f32 %v2086, %v2107
        %v2124 = vadd.f32 %v2087, %v2108
        %v2125 = vadd.f32 %v2088, %v2109
        %v2126 = vadd.f32 %v2089, %v2110
        %v2127 = vadd.f32 %v2090, %v2111
        %v2128 = vadd.f32 %v2091, %v2112
        %s2129 = scalar_lea.vmem [#allocation2], 224
        %v2130 = vld [vmem:[%s2129 + $0x8] sm:$0xff]
        %v2131 = vld [vmem:[%s2129 + $0x10] sm:$0xff]
        %v2132 = vld [vmem:[%s2129 + $0x28] sm:$0xff]
        %v2133 = vld [vmem:[%s2129 + $0x30] sm:$0xff]
        %v2134 = vld [vmem:[%s2129 + $0x48] sm:$0xff]
        %v2135 = vld [vmem:[%s2129 + $0x50] sm:$0xff]
        %v2136 = vld [vmem:[%s2129 + $0x68] sm:$0xff]
        %v2137 = vld [vmem:[%s2129 + $0x70] sm:$0xff]
        %v2138 = vld [vmem:[%s2129 + $0x88] sm:$0xff]
        %v2139 = vld [vmem:[%s2129 + $0x90] sm:$0xff]
        %v2140 = vld [vmem:[%s2129 + $0xa8] sm:$0xff]
        %v2141 = vld [vmem:[%s2129 + $0xb0] sm:$0xff]
        %v2142 = vld [vmem:[%s2129 + $0xc8] sm:$0xff]
        %v2143 = vld [vmem:[%s2129 + $0xd0] sm:$0xff]
        %v2144 = vld [vmem:[%s2129 + $0xe8] sm:$0xff]
        %v2145 = vld [vmem:[%s2129 + $0xf0] sm:$0xff]
        %v2146 = vld [vmem:[%s5 + $0x7] sm:$0x1]
        %v2147 = vlaneseq
        %v2148 = vshrl.u32 %v2147, 7
        %v2149 = vsub.s32 0, %v2148
        %v2150 = vrot.slane %v2146, %v2149
        %v2151 = vmul.f32 %v2130, %v2150
        %v2152 = vmul.f32 %v2131, %v2150
        %v2153 = vmul.f32 %v2132, %v2150
        %v2154 = vmul.f32 %v2133, %v2150
        %v2155 = vmul.f32 %v2134, %v2150
        %v2156 = vmul.f32 %v2135, %v2150
        %v2157 = vmul.f32 %v2136, %v2150
        %v2158 = vmul.f32 %v2137, %v2150
        %v2159 = vmul.f32 %v2138, %v2150
        %v2160 = vmul.f32 %v2139, %v2150
        %v2161 = vmul.f32 %v2140, %v2150
        %v2162 = vmul.f32 %v2141, %v2150
        %v2163 = vmul.f32 %v2142, %v2150
        %v2164 = vmul.f32 %v2143, %v2150
        %v2165 = vmul.f32 %v2144, %v2150
        %v2166 = vmul.f32 %v2145, %v2150
        %v2167 = vadd.f32 %v2113, %v2151
        %v2168 = vadd.f32 %v2114, %v2152
        %v2169 = vadd.f32 %v2115, %v2153
        %v2170 = vadd.f32 %v2116, %v2154
        %v2171 = vadd.f32 %v2117, %v2155
        %v2172 = vadd.f32 %v2118, %v2156
        %v2173 = vadd.f32 %v2119, %v2157
        %v2174 = vadd.f32 %v2120, %v2158
        %v2175 = vadd.f32 %v2121, %v2159
        %v2176 = vadd.f32 %v2122, %v2160
        %v2177 = vadd.f32 %v2123, %v2161
        %v2178 = vadd.f32 %v2124, %v2162
        %v2179 = vadd.f32 %v2125, %v2163
        %v2180 = vadd.f32 %v2126, %v2164
        %v2181 = vadd.f32 %v2127, %v2165
        %v2182 = vadd.f32 %v2128, %v2166
        %s2183 = scalar_lea.vmem [#allocation2], 256
        %v2184 = vld [vmem:[%s2183 + $0x8] sm:$0xff]
        %v2185 = vld [vmem:[%s2183 + $0x10] sm:$0xff]
        %v2186 = vld [vmem:[%s2183 + $0x28] sm:$0xff]
        %v2187 = vld [vmem:[%s2183 + $0x30] sm:$0xff]
        %v2188 = vld [vmem:[%s2183 + $0x48] sm:$0xff]
        %v2189 = vld [vmem:[%s2183 + $0x50] sm:$0xff]
        %v2190 = vld [vmem:[%s2183 + $0x68] sm:$0xff]
        %v2191 = vld [vmem:[%s2183 + $0x70] sm:$0xff]
        %v2192 = vld [vmem:[%s2183 + $0x88] sm:$0xff]
        %v2193 = vld [vmem:[%s2183 + $0x90] sm:$0xff]
        %v2194 = vld [vmem:[%s2183 + $0xa8] sm:$0xff]
        %v2195 = vld [vmem:[%s2183 + $0xb0] sm:$0xff]
        %v2196 = vld [vmem:[%s2183 + $0xc8] sm:$0xff]
        %v2197 = vld [vmem:[%s2183 + $0xd0] sm:$0xff]
        %v2198 = vld [vmem:[%s2183 + $0xe8] sm:$0xff]
        %v2199 = vld [vmem:[%s2183 + $0xf0] sm:$0xff]
        %v2200 = vld [vmem:[%s5 + $0x8] sm:$0x1]
        %v2201 = vlaneseq
        %v2202 = vshrl.u32 %v2201, 7
        %v2203 = vsub.s32 0, %v2202
        %v2204 = vrot.slane %v2200, %v2203
        %v2205 = vmul.f32 %v2184, %v2204
        %v2206 = vmul.f32 %v2185, %v2204
        %v2207 = vmul.f32 %v2186, %v2204
        %v2208 = vmul.f32 %v2187, %v2204
        %v2209 = vmul.f32 %v2188, %v2204
        %v2210 = vmul.f32 %v2189, %v2204
        %v2211 = vmul.f32 %v2190, %v2204
        %v2212 = vmul.f32 %v2191, %v2204
        %v2213 = vmul.f32 %v2192, %v2204
        %v2214 = vmul.f32 %v2193, %v2204
        %v2215 = vmul.f32 %v2194, %v2204
        %v2216 = vmul.f32 %v2195, %v2204
        %v2217 = vmul.f32 %v2196, %v2204
        %v2218 = vmul.f32 %v2197, %v2204
        %v2219 = vmul.f32 %v2198, %v2204
        %v2220 = vmul.f32 %v2199, %v2204
        %v2221 = vadd.f32 %v2167, %v2205
        %v2222 = vadd.f32 %v2168, %v2206
        %v2223 = vadd.f32 %v2169, %v2207
        %v2224 = vadd.f32 %v2170, %v2208
        %v2225 = vadd.f32 %v2171, %v2209
        %v2226 = vadd.f32 %v2172, %v2210
        %v2227 = vadd.f32 %v2173, %v2211
        %v2228 = vadd.f32 %v2174, %v2212
        %v2229 = vadd.f32 %v2175, %v2213
        %v2230 = vadd.f32 %v2176, %v2214
        %v2231 = vadd.f32 %v2177, %v2215
        %v2232 = vadd.f32 %v2178, %v2216
        %v2233 = vadd.f32 %v2179, %v2217
        %v2234 = vadd.f32 %v2180, %v2218
        %v2235 = vadd.f32 %v2181, %v2219
        %v2236 = vadd.f32 %v2182, %v2220
        %s2237 = scalar_lea.vmem [#allocation2], 288
        %v2238 = vld [vmem:[%s2237 + $0x8] sm:$0xff]
        %v2239 = vld [vmem:[%s2237 + $0x10] sm:$0xff]
        %v2240 = vld [vmem:[%s2237 + $0x28] sm:$0xff]
        %v2241 = vld [vmem:[%s2237 + $0x30] sm:$0xff]
        %v2242 = vld [vmem:[%s2237 + $0x48] sm:$0xff]
        %v2243 = vld [vmem:[%s2237 + $0x50] sm:$0xff]
        %v2244 = vld [vmem:[%s2237 + $0x68] sm:$0xff]
        %v2245 = vld [vmem:[%s2237 + $0x70] sm:$0xff]
        %v2246 = vld [vmem:[%s2237 + $0x88] sm:$0xff]
        %v2247 = vld [vmem:[%s2237 + $0x90] sm:$0xff]
        %v2248 = vld [vmem:[%s2237 + $0xa8] sm:$0xff]
        %v2249 = vld [vmem:[%s2237 + $0xb0] sm:$0xff]
        %v2250 = vld [vmem:[%s2237 + $0xc8] sm:$0xff]
        %v2251 = vld [vmem:[%s2237 + $0xd0] sm:$0xff]
        %v2252 = vld [vmem:[%s2237 + $0xe8] sm:$0xff]
        %v2253 = vld [vmem:[%s2237 + $0xf0] sm:$0xff]
        %v2254 = vld [vmem:[%s5 + $0x9] sm:$0x1]
        %v2255 = vlaneseq
        %v2256 = vshrl.u32 %v2255, 7
        %v2257 = vsub.s32 0, %v2256
        %v2258 = vrot.slane %v2254, %v2257
        %v2259 = vmul.f32 %v2238, %v2258
        %v2260 = vmul.f32 %v2239, %v2258
        %v2261 = vmul.f32 %v2240, %v2258
        %v2262 = vmul.f32 %v2241, %v2258
        %v2263 = vmul.f32 %v2242, %v2258
        %v2264 = vmul.f32 %v2243, %v2258
        %v2265 = vmul.f32 %v2244, %v2258
        %v2266 = vmul.f32 %v2245, %v2258
        %v2267 = vmul.f32 %v2246, %v2258
        %v2268 = vmul.f32 %v2247, %v2258
        %v2269 = vmul.f32 %v2248, %v2258
        %v2270 = vmul.f32 %v2249, %v2258
        %v2271 = vmul.f32 %v2250, %v2258
        %v2272 = vmul.f32 %v2251, %v2258
        %v2273 = vmul.f32 %v2252, %v2258
        %v2274 = vmul.f32 %v2253, %v2258
        %v2275 = vadd.f32 %v2221, %v2259
        %v2276 = vadd.f32 %v2222, %v2260
        %v2277 = vadd.f32 %v2223, %v2261
        %v2278 = vadd.f32 %v2224, %v2262
        %v2279 = vadd.f32 %v2225, %v2263
        %v2280 = vadd.f32 %v2226, %v2264
        %v2281 = vadd.f32 %v2227, %v2265
        %v2282 = vadd.f32 %v2228, %v2266
        %v2283 = vadd.f32 %v2229, %v2267
        %v2284 = vadd.f32 %v2230, %v2268
        %v2285 = vadd.f32 %v2231, %v2269
        %v2286 = vadd.f32 %v2232, %v2270
        %v2287 = vadd.f32 %v2233, %v2271
        %v2288 = vadd.f32 %v2234, %v2272
        %v2289 = vadd.f32 %v2235, %v2273
        %v2290 = vadd.f32 %v2236, %v2274
        %s2291 = scalar_lea.vmem [#allocation2], 320
        %v2292 = vld [vmem:[%s2291 + $0x8] sm:$0xff]
        %v2293 = vld [vmem:[%s2291 + $0x10] sm:$0xff]
        %v2294 = vld [vmem:[%s2291 + $0x28] sm:$0xff]
        %v2295 = vld [vmem:[%s2291 + $0x30] sm:$0xff]
        %v2296 = vld [vmem:[%s2291 + $0x48] sm:$0xff]
        %v2297 = vld [vmem:[%s2291 + $0x50] sm:$0xff]
        %v2298 = vld [vmem:[%s2291 + $0x68] sm:$0xff]
        %v2299 = vld [vmem:[%s2291 + $0x70] sm:$0xff]
        %v2300 = vld [vmem:[%s2291 + $0x88] sm:$0xff]
        %v2301 = vld [vmem:[%s2291 + $0x90] sm:$0xff]
        %v2302 = vld [vmem:[%s2291 + $0xa8] sm:$0xff]
        %v2303 = vld [vmem:[%s2291 + $0xb0] sm:$0xff]
        %v2304 = vld [vmem:[%s2291 + $0xc8] sm:$0xff]
        %v2305 = vld [vmem:[%s2291 + $0xd0] sm:$0xff]
        %v2306 = vld [vmem:[%s2291 + $0xe8] sm:$0xff]
        %v2307 = vld [vmem:[%s2291 + $0xf0] sm:$0xff]
        %v2308 = vld [vmem:[%s5 + $0xa] sm:$0x1]
        %v2309 = vlaneseq
        %v2310 = vshrl.u32 %v2309, 7
        %v2311 = vsub.s32 0, %v2310
        %v2312 = vrot.slane %v2308, %v2311
        %v2313 = vmul.f32 %v2292, %v2312
        %v2314 = vmul.f32 %v2293, %v2312
        %v2315 = vmul.f32 %v2294, %v2312
        %v2316 = vmul.f32 %v2295, %v2312
        %v2317 = vmul.f32 %v2296, %v2312
        %v2318 = vmul.f32 %v2297, %v2312
        %v2319 = vmul.f32 %v2298, %v2312
        %v2320 = vmul.f32 %v2299, %v2312
        %v2321 = vmul.f32 %v2300, %v2312
        %v2322 = vmul.f32 %v2301, %v2312
        %v2323 = vmul.f32 %v2302, %v2312
        %v2324 = vmul.f32 %v2303, %v2312
        %v2325 = vmul.f32 %v2304, %v2312
        %v2326 = vmul.f32 %v2305, %v2312
        %v2327 = vmul.f32 %v2306, %v2312
        %v2328 = vmul.f32 %v2307, %v2312
        %v2329 = vadd.f32 %v2275, %v2313
        %v2330 = vadd.f32 %v2276, %v2314
        %v2331 = vadd.f32 %v2277, %v2315
        %v2332 = vadd.f32 %v2278, %v2316
        %v2333 = vadd.f32 %v2279, %v2317
        %v2334 = vadd.f32 %v2280, %v2318
        %v2335 = vadd.f32 %v2281, %v2319
        %v2336 = vadd.f32 %v2282, %v2320
        %v2337 = vadd.f32 %v2283, %v2321
        %v2338 = vadd.f32 %v2284, %v2322
        %v2339 = vadd.f32 %v2285, %v2323
        %v2340 = vadd.f32 %v2286, %v2324
        %v2341 = vadd.f32 %v2287, %v2325
        %v2342 = vadd.f32 %v2288, %v2326
        %v2343 = vadd.f32 %v2289, %v2327
        %v2344 = vadd.f32 %v2290, %v2328
        %v2345 = vld [vmem:[%s7] sm:$0x1]
        %v2347 = vlaneseq
        %v2348 = vshrl.u32 %v2347, 7
        %v2349 = vsub.s32 0, %v2348
        %v2350 = vrot.slane %v2345, %v2349
        %v2352 = vmul.f32 %v2329, %v2350
        %v2353 = vmul.f32 %v2330, %v2350
        %v2354 = vmul.f32 %v2331, %v2350
        %v2355 = vmul.f32 %v2332, %v2350
        %v2356 = vmul.f32 %v2333, %v2350
        %v2357 = vmul.f32 %v2334, %v2350
        %v2358 = vmul.f32 %v2335, %v2350
        %v2359 = vmul.f32 %v2336, %v2350
        %v2360 = vmul.f32 %v2337, %v2350
        %v2361 = vmul.f32 %v2338, %v2350
        %v2362 = vmul.f32 %v2339, %v2350
        %v2363 = vmul.f32 %v2340, %v2350
        %v2364 = vmul.f32 %v2341, %v2350
        %v2365 = vmul.f32 %v2342, %v2350
        %v2366 = vmul.f32 %v2343, %v2350
        %v2367 = vmul.f32 %v2344, %v2350
        %v2368 = vld [vmem:[%s8] sm:$0x1]
        %v2370 = vlaneseq
        %v2371 = vshrl.u32 %v2370, 7
        %v2372 = vsub.s32 0, %v2371
        %v2373 = vrot.slane %v2368, %v2372
        %v2375 = vadd.f32 %v2352, %v2373
        %v2376 = vadd.f32 %v2353, %v2373
        %v2377 = vadd.f32 %v2354, %v2373
        %v2378 = vadd.f32 %v2355, %v2373
        %v2379 = vadd.f32 %v2356, %v2373
        %v2380 = vadd.f32 %v2357, %v2373
        %v2381 = vadd.f32 %v2358, %v2373
        %v2382 = vadd.f32 %v2359, %v2373
        %v2383 = vadd.f32 %v2360, %v2373
        %v2384 = vadd.f32 %v2361, %v2373
        %v2385 = vadd.f32 %v2362, %v2373
        %v2386 = vadd.f32 %v2363, %v2373
        %v2387 = vadd.f32 %v2364, %v2373
        %v2388 = vadd.f32 %v2365, %v2373
        %v2389 = vadd.f32 %v2366, %v2373
        %v2390 = vadd.f32 %v2367, %v2373
        %v2391 = vpack.c.bf16 %v2376, %v2375
        %v2392 = vpack.c.bf16 %v2378, %v2377
        %v2393 = vpack.c.bf16 %v2380, %v2379
        %v2394 = vpack.c.bf16 %v2382, %v2381
        %v2395 = vpack.c.bf16 %v2384, %v2383
        %v2396 = vpack.c.bf16 %v2386, %v2385
        %v2397 = vpack.c.bf16 %v2388, %v2387
        %v2398 = vpack.c.bf16 %v2390, %v2389
        %v2399 = vld [vmem:[#allocation10] sm:$0xff]
        %v2400 = vld [vmem:[#allocation10 + $0x8] sm:$0xff]
        %v2401 = vld [vmem:[#allocation10 + $0x10] sm:$0xff]
        %v2402 = vld [vmem:[#allocation10 + $0x18] sm:$0xff]
        %v2403 = vld [vmem:[#allocation10 + $0x20] sm:$0xff]
        %v2404 = vld [vmem:[#allocation10 + $0x28] sm:$0xff]
        %v2405 = vld [vmem:[#allocation10 + $0x30] sm:$0xff]
        %v2406 = vld [vmem:[#allocation10 + $0x38] sm:$0xff]
        %v2407 = vld [vmem:[#allocation10 + $0x40] sm:$0xff]
        %v2408 = vld [vmem:[#allocation10 + $0x48] sm:$0xff]
        %v2409 = vld [vmem:[#allocation10 + $0x50] sm:$0xff]
        %v2410 = vld [vmem:[#allocation10 + $0x58] sm:$0xff]
        %v2411 = vld [vmem:[#allocation10 + $0x60] sm:$0xff]
        %v2412 = vld [vmem:[#allocation10 + $0x68] sm:$0xff]
        %v2413 = vld [vmem:[#allocation10 + $0x70] sm:$0xff]
        %v2414 = vld [vmem:[#allocation10 + $0x78] sm:$0xff]
        %v2415 = vld [vmem:[#allocation10 + $0x80] sm:$0xff]
        %v2416 = vld [vmem:[#allocation10 + $0x88] sm:$0xff]
        %v2417 = vld [vmem:[#allocation10 + $0x90] sm:$0xff]
        %v2418 = vld [vmem:[#allocation10 + $0x98] sm:$0xff]
        %v2419 = vld [vmem:[#allocation10 + $0xa0] sm:$0xff]
        %v2420 = vld [vmem:[#allocation10 + $0xa8] sm:$0xff]
        %v2421 = vld [vmem:[#allocation10 + $0xb0] sm:$0xff]
        %v2422 = vld [vmem:[#allocation10 + $0xb8] sm:$0xff]
        %v2423 = vld [vmem:[#allocation10 + $0xc0] sm:$0xff]
        %v2424 = vld [vmem:[#allocation10 + $0xc8] sm:$0xff]
        %v2425 = vld [vmem:[#allocation10 + $0xd0] sm:$0xff]
        %v2426 = vld [vmem:[#allocation10 + $0xd8] sm:$0xff]
        %v2427 = vld [vmem:[#allocation10 + $0xe0] sm:$0xff]
        %v2428 = vld [vmem:[#allocation10 + $0xe8] sm:$0xff]
        %v2429 = vld [vmem:[#allocation10 + $0xf0] sm:$0xff]
        %v2430 = vld [vmem:[#allocation10 + $0xf8] sm:$0xff]
        %v2463 = vunpack.c.l.b16 %v2399
        %v2464 = vunpack.c.h.b16 %v2399
        %v2465 = vunpack.c.l.b16 %v2400
        %v2466 = vunpack.c.h.b16 %v2400
        %v2467 = vunpack.c.l.b16 %v2401
        %v2468 = vunpack.c.h.b16 %v2401
        %v2469 = vunpack.c.l.b16 %v2402
        %v2470 = vunpack.c.h.b16 %v2402
        %v2471 = vunpack.c.l.b16 %v2403
        %v2472 = vunpack.c.h.b16 %v2403
        %v2473 = vunpack.c.l.b16 %v2404
        %v2474 = vunpack.c.h.b16 %v2404
        %v2475 = vunpack.c.l.b16 %v2405
        %v2476 = vunpack.c.h.b16 %v2405
        %v2477 = vunpack.c.l.b16 %v2406
        %v2478 = vunpack.c.h.b16 %v2406
        %v2479 = vunpack.c.l.b16 %v2407
        %v2480 = vunpack.c.h.b16 %v2407
        %v2481 = vunpack.c.l.b16 %v2408
        %v2482 = vunpack.c.h.b16 %v2408
        %v2483 = vunpack.c.l.b16 %v2409
        %v2484 = vunpack.c.h.b16 %v2409
        %v2485 = vunpack.c.l.b16 %v2410
        %v2486 = vunpack.c.h.b16 %v2410
        %v2487 = vunpack.c.l.b16 %v2411
        %v2488 = vunpack.c.h.b16 %v2411
        %v2489 = vunpack.c.l.b16 %v2412
        %v2490 = vunpack.c.h.b16 %v2412
        %v2491 = vunpack.c.l.b16 %v2413
        %v2492 = vunpack.c.h.b16 %v2413
        %v2493 = vunpack.c.l.b16 %v2414
        %v2494 = vunpack.c.h.b16 %v2414
        %v2495 = vunpack.c.l.b16 %v2415
        %v2496 = vunpack.c.h.b16 %v2415
        %v2497 = vunpack.c.l.b16 %v2416
        %v2498 = vunpack.c.h.b16 %v2416
        %v2499 = vunpack.c.l.b16 %v2417
        %v2500 = vunpack.c.h.b16 %v2417
        %v2501 = vunpack.c.l.b16 %v2418
        %v2502 = vunpack.c.h.b16 %v2418
        %v2503 = vunpack.c.l.b16 %v2419
        %v2504 = vunpack.c.h.b16 %v2419
        %v2505 = vunpack.c.l.b16 %v2420
        %v2506 = vunpack.c.h.b16 %v2420
        %v2507 = vunpack.c.l.b16 %v2421
        %v2508 = vunpack.c.h.b16 %v2421
        %v2509 = vunpack.c.l.b16 %v2422
        %v2510 = vunpack.c.h.b16 %v2422
        %v2511 = vunpack.c.l.b16 %v2423
        %v2512 = vunpack.c.h.b16 %v2423
        %v2513 = vunpack.c.l.b16 %v2424
        %v2514 = vunpack.c.h.b16 %v2424
        %v2515 = vunpack.c.l.b16 %v2425
        %v2516 = vunpack.c.h.b16 %v2425
        %v2517 = vunpack.c.l.b16 %v2426
        %v2518 = vunpack.c.h.b16 %v2426
        %v2519 = vunpack.c.l.b16 %v2427
        %v2520 = vunpack.c.h.b16 %v2427
        %v2521 = vunpack.c.l.b16 %v2428
        %v2522 = vunpack.c.h.b16 %v2428
        %v2523 = vunpack.c.l.b16 %v2429
        %v2524 = vunpack.c.h.b16 %v2429
        %v2525 = vunpack.c.l.b16 %v2430
        %v2526 = vunpack.c.h.b16 %v2430
        %v2527 = vpack.c.b16 %v2467, %v2463
        %v2528 = vpack.c.b16 %v2468, %v2464
        %v2529 = vpack.c.b16 %v2469, %v2465
        %v2530 = vpack.c.b16 %v2470, %v2466
        %v2531 = vpack.c.b16 %v2475, %v2471
        %v2532 = vpack.c.b16 %v2476, %v2472
        %v2533 = vpack.c.b16 %v2477, %v2473
        %v2534 = vpack.c.b16 %v2478, %v2474
        %v2535 = vpack.c.b16 %v2483, %v2479
        %v2536 = vpack.c.b16 %v2484, %v2480
        %v2537 = vpack.c.b16 %v2485, %v2481
        %v2538 = vpack.c.b16 %v2486, %v2482
        %v2539 = vpack.c.b16 %v2491, %v2487
        %v2540 = vpack.c.b16 %v2492, %v2488
        %v2541 = vpack.c.b16 %v2493, %v2489
        %v2542 = vpack.c.b16 %v2494, %v2490
        %v2543 = vpack.c.b16 %v2499, %v2495
        %v2544 = vpack.c.b16 %v2500, %v2496
        %v2545 = vpack.c.b16 %v2501, %v2497
        %v2546 = vpack.c.b16 %v2502, %v2498
        %v2547 = vpack.c.b16 %v2507, %v2503
        %v2548 = vpack.c.b16 %v2508, %v2504
        %v2549 = vpack.c.b16 %v2509, %v2505
        %v2550 = vpack.c.b16 %v2510, %v2506
        %v2551 = vpack.c.b16 %v2515, %v2511
        %v2552 = vpack.c.b16 %v2516, %v2512
        %v2553 = vpack.c.b16 %v2517, %v2513
        %v2554 = vpack.c.b16 %v2518, %v2514
        %v2555 = vpack.c.b16 %v2523, %v2519
        %v2556 = vpack.c.b16 %v2524, %v2520
        %v2557 = vpack.c.b16 %v2525, %v2521
        %v2558 = vpack.c.b16 %v2526, %v2522
        %2591 = vmatprep.subr.bf16.mxu0 %v2528
        %2592 = vmatpush1.bf16.msra.mxu0 %v2527
        %2593 = vmatprep.subr.bf16.mxu0 %v2532
        %2594 = vmatpush1.bf16.msra.mxu0 %v2531
        %2595 = vmatprep.subr.bf16.mxu0 %v2536
        %2596 = vmatpush1.bf16.msra.mxu0 %v2535
        %2597 = vmatprep.subr.bf16.mxu0 %v2540
        %2598 = vmatpush1.bf16.msra.mxu0 %v2539
        %2599 = vmatprep.subr.bf16.mxu0 %v2544
        %2600 = vmatpush1.bf16.msra.mxu0 %v2543
        %2601 = vmatprep.subr.bf16.mxu0 %v2548
        %2602 = vmatpush1.bf16.msra.mxu0 %v2547
        %2603 = vmatprep.subr.bf16.mxu0 %v2552
        %2604 = vmatpush1.bf16.msra.mxu0 %v2551
        %2605 = vmatprep.subr.bf16.mxu0 %v2556
        %2606 = vmatpush1.bf16.msra.mxu0 %v2555
        %2607 = vmatprep.subr.bf16.mxu0 0
        %2608 = vmatpush1.bf16.msra.mxu0 0
        %2609 = vmatprep.subr.bf16.mxu0 0
        %2610 = vmatpush1.bf16.msra.mxu0 0
        %2611 = vmatprep.subr.bf16.mxu0 0
        %2612 = vmatpush1.bf16.msra.mxu0 0
        %2613 = vmatprep.subr.bf16.mxu0 0
        %2614 = vmatpush1.bf16.msra.mxu0 0
        %2615 = vmatprep.subr.bf16.mxu0 0
        %2616 = vmatpush1.bf16.msra.mxu0 0
        %2617 = vmatprep.subr.bf16.mxu0 0
        %2618 = vmatpush1.bf16.msra.mxu0 0
        %2619 = vmatprep.subr.bf16.mxu0 0
        %2620 = vmatpush1.bf16.msra.mxu0 0
        %2621 = vmatprep.subr.bf16.mxu0 0
        %2622 = vmatpush1.bf16.msra.mxu0 0
        %2623 = vmatprep.mubr.bf16.mxu0 0
        %2624 = vmatmul.mubr.bf16.gmra.mrb[0].mxu0 %v2391
        %v2625 = vpop.f32.mrb[0].mxu0
        %v2626 = vadd.f32 0.0, %v2625
        %v2627 = vpop.f32.mrb[0].mxu0
        %v2628 = vadd.f32 0.0, %v2627
        %v2629 = vpop.f32.mrb[0].mxu0
        %v2630 = vadd.f32 0.0, %v2629
        %v2631 = vpop.f32.mrb[0].mxu0
        %v2632 = vadd.f32 0.0, %v2631
        %2633 = vmatprep.mubr.bf16.mxu0 0
        %2634 = vmatmul.mubr.bf16.gmra.mrb[0].mxu0 %v2392
        %v2635 = vpop.f32.mrb[0].mxu0
        %v2636 = vadd.f32 0.0, %v2635
        %v2637 = vpop.f32.mrb[0].mxu0
        %v2638 = vadd.f32 0.0, %v2637
        %v2639 = vpop.f32.mrb[0].mxu0
        %v2640 = vadd.f32 0.0, %v2639
        %v2641 = vpop.f32.mrb[0].mxu0
        %v2642 = vadd.f32 0.0, %v2641
        %2643 = vmatprep.mubr.bf16.mxu0 0
        %2644 = vmatmul.mubr.bf16.gmra.mrb[0].mxu0 %v2393
        %v2645 = vpop.f32.mrb[0].mxu0
        %v2646 = vadd.f32 0.0, %v2645
        %v2647 = vpop.f32.mrb[0].mxu0
        %v2648 = vadd.f32 0.0, %v2647
        %v2649 = vpop.f32.mrb[0].mxu0
        %v2650 = vadd.f32 0.0, %v2649
        %v2651 = vpop.f32.mrb[0].mxu0
        %v2652 = vadd.f32 0.0, %v2651
        %2653 = vmatprep.mubr.bf16.mxu0 0
        %2654 = vmatmul.mubr.bf16.gmra.mrb[0].mxu0 %v2394
        %v2655 = vpop.f32.mrb[0].mxu0
        %v2656 = vadd.f32 0.0, %v2655
        %v2657 = vpop.f32.mrb[0].mxu0
        %v2658 = vadd.f32 0.0, %v2657
        %v2659 = vpop.f32.mrb[0].mxu0
        %v2660 = vadd.f32 0.0, %v2659
        %v2661 = vpop.f32.mrb[0].mxu0
        %v2662 = vadd.f32 0.0, %v2661
        %2663 = vmatprep.mubr.bf16.mxu0 0
        %2664 = vmatmul.mubr.bf16.gmra.mrb[0].mxu0 %v2395
        %v2665 = vpop.f32.mrb[0].mxu0
        %v2666 = vadd.f32 0.0, %v2665
        %v2667 = vpop.f32.mrb[0].mxu0
        %v2668 = vadd.f32 0.0, %v2667
        %v2669 = vpop.f32.mrb[0].mxu0
        %v2670 = vadd.f32 0.0, %v2669
        %v2671 = vpop.f32.mrb[0].mxu0
        %v2672 = vadd.f32 0.0, %v2671
        %2673 = vmatprep.mubr.bf16.mxu0 0
        %2674 = vmatmul.mubr.bf16.gmra.mrb[0].mxu0 %v2396
        %v2675 = vpop.f32.mrb[0].mxu0
        %v2676 = vadd.f32 0.0, %v2675
        %v2677 = vpop.f32.mrb[0].mxu0
        %v2678 = vadd.f32 0.0, %v2677
        %v2679 = vpop.f32.mrb[0].mxu0
        %v2680 = vadd.f32 0.0, %v2679
        %v2681 = vpop.f32.mrb[0].mxu0
        %v2682 = vadd.f32 0.0, %v2681
        %2683 = vmatprep.mubr.bf16.mxu0 0
        %2684 = vmatmul.mubr.bf16.gmra.mrb[0].mxu0 %v2397
        %v2685 = vpop.f32.mrb[0].mxu0
        %v2686 = vadd.f32 0.0, %v2685
        %v2687 = vpop.f32.mrb[0].mxu0
        %v2688 = vadd.f32 0.0, %v2687
        %v2689 = vpop.f32.mrb[0].mxu0
        %v2690 = vadd.f32 0.0, %v2689
        %v2691 = vpop.f32.mrb[0].mxu0
        %v2692 = vadd.f32 0.0, %v2691
        %2693 = vmatprep.mubr.bf16.mxu0 0
        %2694 = vmatmul.mubr.bf16.gmra.mrb[0].mxu0 %v2398
        %v2695 = vpop.f32.mrb[0].mxu0
        %v2696 = vadd.f32 0.0, %v2695
        %v2697 = vpop.f32.mrb[0].mxu0
        %v2698 = vadd.f32 0.0, %v2697
        %v2699 = vpop.f32.mrb[0].mxu0
        %v2700 = vadd.f32 0.0, %v2699
        %v2701 = vpop.f32.mrb[0].mxu0
        %v2702 = vadd.f32 0.0, %v2701
        %2703 = vdwg.mxu0
        %2704 = vmatprep.subr.bf16.mxu0 %v2530
        %2705 = vmatpush1.bf16.msra.mxu0 %v2529
        %2706 = vmatprep.subr.bf16.mxu0 %v2534
        %2707 = vmatpush1.bf16.msra.mxu0 %v2533
        %2708 = vmatprep.subr.bf16.mxu0 %v2538
        %2709 = vmatpush1.bf16.msra.mxu0 %v2537
        %2710 = vmatprep.subr.bf16.mxu0 %v2542
        %2711 = vmatpush1.bf16.msra.mxu0 %v2541
        %2712 = vmatprep.subr.bf16.mxu0 %v2546
        %2713 = vmatpush1.bf16.msra.mxu0 %v2545
        %2714 = vmatprep.subr.bf16.mxu0 %v2550
        %2715 = vmatpush1.bf16.msra.mxu0 %v2549
        %2716 = vmatprep.subr.bf16.mxu0 %v2554
        %2717 = vmatpush1.bf16.msra.mxu0 %v2553
        %2718 = vmatprep.subr.bf16.mxu0 %v2558
        %2719 = vmatpush1.bf16.msra.mxu0 %v2557
        %2720 = vmatprep.subr.bf16.mxu0 0
        %2721 = vmatpush1.bf16.msra.mxu0 0
        %2722 = vmatprep.subr.bf16.mxu0 0
        %2723 = vmatpush1.bf16.msra.mxu0 0
        %2724 = vmatprep.subr.bf16.mxu0 0
        %2725 = vmatpush1.bf16.msra.mxu0 0
        %2726 = vmatprep.subr.bf16.mxu0 0
        %2727 = vmatpush1.bf16.msra.mxu0 0
        %2728 = vmatprep.subr.bf16.mxu0 0
        %2729 = vmatpush1.bf16.msra.mxu0 0
        %2730 = vmatprep.subr.bf16.mxu0 0
        %2731 = vmatpush1.bf16.msra.mxu0 0
        %2732 = vmatprep.subr.bf16.mxu0 0
        %2733 = vmatpush1.bf16.msra.mxu0 0
        %2734 = vmatprep.subr.bf16.mxu0 0
        %2735 = vmatpush1.bf16.msra.mxu0 0
        %2736 = vmatprep.mubr.bf16.mxu0 0
        %2737 = vmatmul.mubr.bf16.gmra.mrb[0].mxu0 %v2391
        %v2738 = vpop.f32.mrb[0].mxu0
        %v2739 = vadd.f32 0.0, %v2738
        %v2740 = vpop.f32.mrb[0].mxu0
        %v2741 = vadd.f32 0.0, %v2740
        %v2742 = vpop.f32.mrb[0].mxu0
        %v2743 = vadd.f32 0.0, %v2742
        %v2744 = vpop.f32.mrb[0].mxu0
        %v2745 = vadd.f32 0.0, %v2744
        %2746 = vmatprep.mubr.bf16.mxu0 0
        %2747 = vmatmul.mubr.bf16.gmra.mrb[0].mxu0 %v2392
        %v2748 = vpop.f32.mrb[0].mxu0
        %v2749 = vadd.f32 0.0, %v2748
        %v2750 = vpop.f32.mrb[0].mxu0
        %v2751 = vadd.f32 0.0, %v2750
        %v2752 = vpop.f32.mrb[0].mxu0
        %v2753 = vadd.f32 0.0, %v2752
        %v2754 = vpop.f32.mrb[0].mxu0
        %v2755 = vadd.f32 0.0, %v2754
        %2756 = vmatprep.mubr.bf16.mxu0 0
        %2757 = vmatmul.mubr.bf16.gmra.mrb[0].mxu0 %v2393
        %v2758 = vpop.f32.mrb[0].mxu0
        %v2759 = vadd.f32 0.0, %v2758
        %v2760 = vpop.f32.mrb[0].mxu0
        %v2761 = vadd.f32 0.0, %v2760
        %v2762 = vpop.f32.mrb[0].mxu0
        %v2763 = vadd.f32 0.0, %v2762
        %v2764 = vpop.f32.mrb[0].mxu0
        %v2765 = vadd.f32 0.0, %v2764
        %2766 = vmatprep.mubr.bf16.mxu0 0
        %2767 = vmatmul.mubr.bf16.gmra.mrb[0].mxu0 %v2394
        %v2768 = vpop.f32.mrb[0].mxu0
        %v2769 = vadd.f32 0.0, %v2768
        %v2770 = vpop.f32.mrb[0].mxu0
        %v2771 = vadd.f32 0.0, %v2770
        %v2772 = vpop.f32.mrb[0].mxu0
        %v2773 = vadd.f32 0.0, %v2772
        %v2774 = vpop.f32.mrb[0].mxu0
        %v2775 = vadd.f32 0.0, %v2774
        %2776 = vmatprep.mubr.bf16.mxu0 0
        %2777 = vmatmul.mubr.bf16.gmra.mrb[0].mxu0 %v2395
        %v2778 = vpop.f32.mrb[0].mxu0
        %v2779 = vadd.f32 0.0, %v2778
        %v2780 = vpop.f32.mrb[0].mxu0
        %v2781 = vadd.f32 0.0, %v2780
        %v2782 = vpop.f32.mrb[0].mxu0
        %v2783 = vadd.f32 0.0, %v2782
        %v2784 = vpop.f32.mrb[0].mxu0
        %v2785 = vadd.f32 0.0, %v2784
        %2786 = vmatprep.mubr.bf16.mxu0 0
        %2787 = vmatmul.mubr.bf16.gmra.mrb[0].mxu0 %v2396
        %v2788 = vpop.f32.mrb[0].mxu0
        %v2789 = vadd.f32 0.0, %v2788
        %v2790 = vpop.f32.mrb[0].mxu0
        %v2791 = vadd.f32 0.0, %v2790
        %v2792 = vpop.f32.mrb[0].mxu0
        %v2793 = vadd.f32 0.0, %v2792
        %v2794 = vpop.f32.mrb[0].mxu0
        %v2795 = vadd.f32 0.0, %v2794
        %2796 = vmatprep.mubr.bf16.mxu0 0
        %2797 = vmatmul.mubr.bf16.gmra.mrb[0].mxu0 %v2397
        %v2798 = vpop.f32.mrb[0].mxu0
        %v2799 = vadd.f32 0.0, %v2798
        %v2800 = vpop.f32.mrb[0].mxu0
        %v2801 = vadd.f32 0.0, %v2800
        %v2802 = vpop.f32.mrb[0].mxu0
        %v2803 = vadd.f32 0.0, %v2802
        %v2804 = vpop.f32.mrb[0].mxu0
        %v2805 = vadd.f32 0.0, %v2804
        %2806 = vmatprep.mubr.bf16.mxu0 0
        %2807 = vmatmul.mubr.bf16.gmra.mrb[0].mxu0 %v2398
        %v2808 = vpop.f32.mrb[0].mxu0
        %v2809 = vadd.f32 0.0, %v2808
        %v2810 = vpop.f32.mrb[0].mxu0
        %v2811 = vadd.f32 0.0, %v2810
        %v2812 = vpop.f32.mrb[0].mxu0
        %v2813 = vadd.f32 0.0, %v2812
        %v2814 = vpop.f32.mrb[0].mxu0
        %v2815 = vadd.f32 0.0, %v2814
        %2816 = vdwg.mxu0
        %v2817 = vpack.c.bf16 %v2630, %v2626
        %v2818 = vpack.c.bf16 %v2632, %v2628
        %v2819 = vpack.c.bf16 %v2743, %v2739
        %v2820 = vpack.c.bf16 %v2745, %v2741
        %v2821 = vpack.c.bf16 %v2640, %v2636
        %v2822 = vpack.c.bf16 %v2642, %v2638
        %v2823 = vpack.c.bf16 %v2753, %v2749
        %v2824 = vpack.c.bf16 %v2755, %v2751
        %v2825 = vpack.c.bf16 %v2650, %v2646
        %v2826 = vpack.c.bf16 %v2652, %v2648
        %v2827 = vpack.c.bf16 %v2763, %v2759
        %v2828 = vpack.c.bf16 %v2765, %v2761
        %v2829 = vpack.c.bf16 %v2660, %v2656
        %v2830 = vpack.c.bf16 %v2662, %v2658
        %v2831 = vpack.c.bf16 %v2773, %v2769
        %v2832 = vpack.c.bf16 %v2775, %v2771
        %v2833 = vpack.c.bf16 %v2670, %v2666
        %v2834 = vpack.c.bf16 %v2672, %v2668
        %v2835 = vpack.c.bf16 %v2783, %v2779
        %v2836 = vpack.c.bf16 %v2785, %v2781
        %v2837 = vpack.c.bf16 %v2680, %v2676
        %v2838 = vpack.c.bf16 %v2682, %v2678
        %v2839 = vpack.c.bf16 %v2793, %v2789
        %v2840 = vpack.c.bf16 %v2795, %v2791
        %v2841 = vpack.c.bf16 %v2690, %v2686
        %v2842 = vpack.c.bf16 %v2692, %v2688
        %v2843 = vpack.c.bf16 %v2803, %v2799
        %v2844 = vpack.c.bf16 %v2805, %v2801
        %v2845 = vpack.c.bf16 %v2700, %v2696
        %v2846 = vpack.c.bf16 %v2702, %v2698
        %v2847 = vpack.c.bf16 %v2813, %v2809
        %v2848 = vpack.c.bf16 %v2815, %v2811
        %v2849 = vld [vmem:[%s10] sm:$0xf]
        %v2852 = vunpack.c.l.s4 1966171168
        %v2853 = vunpack.c.0.s8 %v2852
        %v2854 = vlaneseq
        %v2855 = vshrl.u32 %v2854, 7
        %v2856 = vsub.s32 %v2853, %v2855
        %v2857 = vrot.slane %v2849, %v2856
        %v2858 = vcombine.high %v2857, %v2857
        %v2860 = vunpack.c.l.s4 1966171168
        %v2861 = vunpack.c.0.s8 %v2860
        %v2862 = vlaneseq
        %v2863 = vshrl.u32 %v2862, 7
        %v2864 = vsub.s32 %v2861, %v2863
        %v2865 = vrot.slane %v2857, %v2864
        %v2867 = vunpack.c.l.s4 1966171168
        %v2868 = vunpack.c.0.s8 %v2867
        %v2869 = vlaneseq
        %v2870 = vshrl.u32 %v2869, 7
        %v2871 = vsub.s32 %v2868, %v2870
        %v2872 = vrot.slane %v2858, %v2871
        %v2873 = vcombine.high %v2865, %v2865
        %v2874 = vcombine.high %v2872, %v2872
        %v2876 = vpack.i.b16 %v2865, %v2865
        %v2878 = vlaneseq
        %v2879 = vshrl.u32 %v2878, 7
        %v2880 = vsub.s32 0, %v2879
        %v2881 = vrot.slane %v2876, %v2880
        %v2883 = vpack.i.b16 %v2872, %v2872
        %v2885 = vlaneseq
        %v2886 = vshrl.u32 %v2885, 7
        %v2887 = vsub.s32 0, %v2886
        %v2888 = vrot.slane %v2883, %v2887
        %v2890 = vpack.i.b16 %v2873, %v2873
        %v2892 = vlaneseq
        %v2893 = vshrl.u32 %v2892, 7
        %v2894 = vsub.s32 0, %v2893
        %v2895 = vrot.slane %v2890, %v2894
        %v2897 = vpack.i.b16 %v2874, %v2874
        %v2899 = vlaneseq
        %v2900 = vshrl.u32 %v2899, 7
        %v2901 = vsub.s32 0, %v2900
        %v2902 = vrot.slane %v2897, %v2901
        %v2903 = vadd.bf16 %v2817, %v2881
        %v2904 = vadd.bf16 %v2818, %v2888
        %v2905 = vadd.bf16 %v2819, %v2895
        %v2906 = vadd.bf16 %v2820, %v2902
        %v2907 = vadd.bf16 %v2821, %v2881
        %v2908 = vadd.bf16 %v2822, %v2888
        %v2909 = vadd.bf16 %v2823, %v2895
        %v2910 = vadd.bf16 %v2824, %v2902
        %v2911 = vadd.bf16 %v2825, %v2881
        %v2912 = vadd.bf16 %v2826, %v2888
        %v2913 = vadd.bf16 %v2827, %v2895
        %v2914 = vadd.bf16 %v2828, %v2902
        %v2915 = vadd.bf16 %v2829, %v2881
        %v2916 = vadd.bf16 %v2830, %v2888
        %v2917 = vadd.bf16 %v2831, %v2895
        %v2918 = vadd.bf16 %v2832, %v2902
        %v2919 = vadd.bf16 %v2833, %v2881
        %v2920 = vadd.bf16 %v2834, %v2888
        %v2921 = vadd.bf16 %v2835, %v2895
        %v2922 = vadd.bf16 %v2836, %v2902
        %v2923 = vadd.bf16 %v2837, %v2881
        %v2924 = vadd.bf16 %v2838, %v2888
        %v2925 = vadd.bf16 %v2839, %v2895
        %v2926 = vadd.bf16 %v2840, %v2902
        %v2927 = vadd.bf16 %v2841, %v2881
        %v2928 = vadd.bf16 %v2842, %v2888
        %v2929 = vadd.bf16 %v2843, %v2895
        %v2930 = vadd.bf16 %v2844, %v2902
        %v2931 = vadd.bf16 %v2845, %v2881
        %v2932 = vadd.bf16 %v2846, %v2888
        %v2933 = vadd.bf16 %v2847, %v2895
        %v2934 = vadd.bf16 %v2848, %v2902
        %v2935 = vmul.bf16 %v2903, 1056980736
        %v2936 = vmul.bf16 %v2904, 1056980736
        %v2937 = vmul.bf16 %v2905, 1056980736
        %v2938 = vmul.bf16 %v2906, 1056980736
        %v2939 = vmul.bf16 %v2907, 1056980736
        %v2940 = vmul.bf16 %v2908, 1056980736
        %v2941 = vmul.bf16 %v2909, 1056980736
        %v2942 = vmul.bf16 %v2910, 1056980736
        %v2943 = vmul.bf16 %v2911, 1056980736
        %v2944 = vmul.bf16 %v2912, 1056980736
        %v2945 = vmul.bf16 %v2913, 1056980736
        %v2946 = vmul.bf16 %v2914, 1056980736
        %v2947 = vmul.bf16 %v2915, 1056980736
        %v2948 = vmul.bf16 %v2916, 1056980736
        %v2949 = vmul.bf16 %v2917, 1056980736
        %v2950 = vmul.bf16 %v2918, 1056980736
        %v2951 = vmul.bf16 %v2919, 1056980736
        %v2952 = vmul.bf16 %v2920, 1056980736
        %v2953 = vmul.bf16 %v2921, 1056980736
        %v2954 = vmul.bf16 %v2922, 1056980736
        %v2955 = vmul.bf16 %v2923, 1056980736
        %v2956 = vmul.bf16 %v2924, 1056980736
        %v2957 = vmul.bf16 %v2925, 1056980736
        %v2958 = vmul.bf16 %v2926, 1056980736
        %v2959 = vmul.bf16 %v2927, 1056980736
        %v2960 = vmul.bf16 %v2928, 1056980736
        %v2961 = vmul.bf16 %v2929, 1056980736
        %v2962 = vmul.bf16 %v2930, 1056980736
        %v2963 = vmul.bf16 %v2931, 1056980736
        %v2964 = vmul.bf16 %v2932, 1056980736
        %v2965 = vmul.bf16 %v2933, 1056980736
        %v2966 = vmul.bf16 %v2934, 1056980736
        %v2967 = vmul.bf16 %v2903, 1027030327
        %v2968 = vmul.bf16 %v2904, 1027030327
        %v2969 = vmul.bf16 %v2905, 1027030327
        %v2970 = vmul.bf16 %v2906, 1027030327
        %v2971 = vmul.bf16 %v2907, 1027030327
        %v2972 = vmul.bf16 %v2908, 1027030327
        %v2973 = vmul.bf16 %v2909, 1027030327
        %v2974 = vmul.bf16 %v2910, 1027030327
        %v2975 = vmul.bf16 %v2911, 1027030327
        %v2976 = vmul.bf16 %v2912, 1027030327
        %v2977 = vmul.bf16 %v2913, 1027030327
        %v2978 = vmul.bf16 %v2914, 1027030327
        %v2979 = vmul.bf16 %v2915, 1027030327
        %v2980 = vmul.bf16 %v2916, 1027030327
        %v2981 = vmul.bf16 %v2917, 1027030327
        %v2982 = vmul.bf16 %v2918, 1027030327
        %v2983 = vmul.bf16 %v2919, 1027030327
        %v2984 = vmul.bf16 %v2920, 1027030327
        %v2985 = vmul.bf16 %v2921, 1027030327
        %v2986 = vmul.bf16 %v2922, 1027030327
        %v2987 = vmul.bf16 %v2923, 1027030327
        %v2988 = vmul.bf16 %v2924, 1027030327
        %v2989 = vmul.bf16 %v2925, 1027030327
        %v2990 = vmul.bf16 %v2926, 1027030327
        %v2991 = vmul.bf16 %v2927, 1027030327
        %v2992 = vmul.bf16 %v2928, 1027030327
        %v2993 = vmul.bf16 %v2929, 1027030327
        %v2994 = vmul.bf16 %v2930, 1027030327
        %v2995 = vmul.bf16 %v2931, 1027030327
        %v2996 = vmul.bf16 %v2932, 1027030327
        %v2997 = vmul.bf16 %v2933, 1027030327
        %v2998 = vmul.bf16 %v2934, 1027030327
        %v2999 = vmul.bf16 %v2967, %v2903
        %v3000 = vmul.bf16 %v2968, %v2904
        %v3001 = vmul.bf16 %v2969, %v2905
        %v3002 = vmul.bf16 %v2970, %v2906
        %v3003 = vmul.bf16 %v2971, %v2907
        %v3004 = vmul.bf16 %v2972, %v2908
        %v3005 = vmul.bf16 %v2973, %v2909
        %v3006 = vmul.bf16 %v2974, %v2910
        %v3007 = vmul.bf16 %v2975, %v2911
        %v3008 = vmul.bf16 %v2976, %v2912
        %v3009 = vmul.bf16 %v2977, %v2913
        %v3010 = vmul.bf16 %v2978, %v2914
        %v3011 = vmul.bf16 %v2979, %v2915
        %v3012 = vmul.bf16 %v2980, %v2916
        %v3013 = vmul.bf16 %v2981, %v2917
        %v3014 = vmul.bf16 %v2982, %v2918
        %v3015 = vmul.bf16 %v2983, %v2919
        %v3016 = vmul.bf16 %v2984, %v2920
        %v3017 = vmul.bf16 %v2985, %v2921
        %v3018 = vmul.bf16 %v2986, %v2922
        %v3019 = vmul.bf16 %v2987, %v2923
        %v3020 = vmul.bf16 %v2988, %v2924
        %v3021 = vmul.bf16 %v2989, %v2925
        %v3022 = vmul.bf16 %v2990, %v2926
        %v3023 = vmul.bf16 %v2991, %v2927
        %v3024 = vmul.bf16 %v2992, %v2928
        %v3025 = vmul.bf16 %v2993, %v2929
        %v3026 = vmul.bf16 %v2994, %v2930
        %v3027 = vmul.bf16 %v2995, %v2931
        %v3028 = vmul.bf16 %v2996, %v2932
        %v3029 = vmul.bf16 %v2997, %v2933
        %v3030 = vmul.bf16 %v2998, %v2934
        %v3031 = vmul.bf16 %v2999, %v2903
        %v3032 = vmul.bf16 %v3000, %v2904
        %v3033 = vmul.bf16 %v3001, %v2905
        %v3034 = vmul.bf16 %v3002, %v2906
        %v3035 = vmul.bf16 %v3003, %v2907
        %v3036 = vmul.bf16 %v3004, %v2908
        %v3037 = vmul.bf16 %v3005, %v2909
        %v3038 = vmul.bf16 %v3006, %v2910
        %v3039 = vmul.bf16 %v3007, %v2911
        %v3040 = vmul.bf16 %v3008, %v2912
        %v3041 = vmul.bf16 %v3009, %v2913
        %v3042 = vmul.bf16 %v3010, %v2914
        %v3043 = vmul.bf16 %v3011, %v2915
        %v3044 = vmul.bf16 %v3012, %v2916
        %v3045 = vmul.bf16 %v3013, %v2917
        %v3046 = vmul.bf16 %v3014, %v2918
        %v3047 = vmul.bf16 %v3015, %v2919
        %v3048 = vmul.bf16 %v3016, %v2920
        %v3049 = vmul.bf16 %v3017, %v2921
        %v3050 = vmul.bf16 %v3018, %v2922
        %v3051 = vmul.bf16 %v3019, %v2923
        %v3052 = vmul.bf16 %v3020, %v2924
        %v3053 = vmul.bf16 %v3021, %v2925
        %v3054 = vmul.bf16 %v3022, %v2926
        %v3055 = vmul.bf16 %v3023, %v2927
        %v3056 = vmul.bf16 %v3024, %v2928
        %v3057 = vmul.bf16 %v3025, %v2929
        %v3058 = vmul.bf16 %v3026, %v2930
        %v3059 = vmul.bf16 %v3027, %v2931
        %v3060 = vmul.bf16 %v3028, %v2932
        %v3061 = vmul.bf16 %v3029, %v2933
        %v3062 = vmul.bf16 %v3030, %v2934
        %v3063 = vadd.bf16 %v2903, %v3031
        %v3064 = vadd.bf16 %v2904, %v3032
        %v3065 = vadd.bf16 %v2905, %v3033
        %v3066 = vadd.bf16 %v2906, %v3034
        %v3067 = vadd.bf16 %v2907, %v3035
        %v3068 = vadd.bf16 %v2908, %v3036
        %v3069 = vadd.bf16 %v2909, %v3037
        %v3070 = vadd.bf16 %v2910, %v3038
        %v3071 = vadd.bf16 %v2911, %v3039
        %v3072 = vadd.bf16 %v2912, %v3040
        %v3073 = vadd.bf16 %v2913, %v3041
        %v3074 = vadd.bf16 %v2914, %v3042
        %v3075 = vadd.bf16 %v2915, %v3043
        %v3076 = vadd.bf16 %v2916, %v3044
        %v3077 = vadd.bf16 %v2917, %v3045
        %v3078 = vadd.bf16 %v2918, %v3046
        %v3079 = vadd.bf16 %v2919, %v3047
        %v3080 = vadd.bf16 %v2920, %v3048
        %v3081 = vadd.bf16 %v2921, %v3049
        %v3082 = vadd.bf16 %v2922, %v3050
        %v3083 = vadd.bf16 %v2923, %v3051
        %v3084 = vadd.bf16 %v2924, %v3052
        %v3085 = vadd.bf16 %v2925, %v3053
        %v3086 = vadd.bf16 %v2926, %v3054
        %v3087 = vadd.bf16 %v2927, %v3055
        %v3088 = vadd.bf16 %v2928, %v3056
        %v3089 = vadd.bf16 %v2929, %v3057
        %v3090 = vadd.bf16 %v2930, %v3058
        %v3091 = vadd.bf16 %v2931, %v3059
        %v3092 = vadd.bf16 %v2932, %v3060
        %v3093 = vadd.bf16 %v2933, %v3061
        %v3094 = vadd.bf16 %v2934, %v3062
        %v3095 = vmul.bf16 %v3063, 1061961548
        %v3096 = vmul.bf16 %v3064, 1061961548
        %v3097 = vmul.bf16 %v3065, 1061961548
        %v3098 = vmul.bf16 %v3066, 1061961548
        %v3099 = vmul.bf16 %v3067, 1061961548
        %v3100 = vmul.bf16 %v3068, 1061961548
        %v3101 = vmul.bf16 %v3069, 1061961548
        %v3102 = vmul.bf16 %v3070, 1061961548
        %v3103 = vmul.bf16 %v3071, 1061961548
        %v3104 = vmul.bf16 %v3072, 1061961548
        %v3105 = vmul.bf16 %v3073, 1061961548
        %v3106 = vmul.bf16 %v3074, 1061961548
        %v3107 = vmul.bf16 %v3075, 1061961548
        %v3108 = vmul.bf16 %v3076, 1061961548
        %v3109 = vmul.bf16 %v3077, 1061961548
        %v3110 = vmul.bf16 %v3078, 1061961548
        %v3111 = vmul.bf16 %v3079, 1061961548
        %v3112 = vmul.bf16 %v3080, 1061961548
        %v3113 = vmul.bf16 %v3081, 1061961548
        %v3114 = vmul.bf16 %v3082, 1061961548
        %v3115 = vmul.bf16 %v3083, 1061961548
        %v3116 = vmul.bf16 %v3084, 1061961548
        %v3117 = vmul.bf16 %v3085, 1061961548
        %v3118 = vmul.bf16 %v3086, 1061961548
        %v3119 = vmul.bf16 %v3087, 1061961548
        %v3120 = vmul.bf16 %v3088, 1061961548
        %v3121 = vmul.bf16 %v3089, 1061961548
        %v3122 = vmul.bf16 %v3090, 1061961548
        %v3123 = vmul.bf16 %v3091, 1061961548
        %v3124 = vmul.bf16 %v3092, 1061961548
        %v3125 = vmul.bf16 %v3093, 1061961548
        %v3126 = vmul.bf16 %v3094, 1061961548
        %v3127 = vtanh.bf16.pop %v3095
        %v3128 = vtanh.bf16.pop %v3096
        %v3129 = vtanh.bf16.pop %v3097
        %v3130 = vtanh.bf16.pop %v3098
        %v3131 = vtanh.bf16.pop %v3099
        %v3132 = vtanh.bf16.pop %v3100
        %v3133 = vtanh.bf16.pop %v3101
        %v3134 = vtanh.bf16.pop %v3102
        %v3135 = vtanh.bf16.pop %v3103
        %v3136 = vtanh.bf16.pop %v3104
        %v3137 = vtanh.bf16.pop %v3105
        %v3138 = vtanh.bf16.pop %v3106
        %v3139 = vtanh.bf16.pop %v3107
        %v3140 = vtanh.bf16.pop %v3108
        %v3141 = vtanh.bf16.pop %v3109
        %v3142 = vtanh.bf16.pop %v3110
        %v3143 = vtanh.bf16.pop %v3111
        %v3144 = vtanh.bf16.pop %v3112
        %v3145 = vtanh.bf16.pop %v3113
        %v3146 = vtanh.bf16.pop %v3114
        %v3147 = vtanh.bf16.pop %v3115
        %v3148 = vtanh.bf16.pop %v3116
        %v3149 = vtanh.bf16.pop %v3117
        %v3150 = vtanh.bf16.pop %v3118
        %v3151 = vtanh.bf16.pop %v3119
        %v3152 = vtanh.bf16.pop %v3120
        %v3153 = vtanh.bf16.pop %v3121
        %v3154 = vtanh.bf16.pop %v3122
        %v3155 = vtanh.bf16.pop %v3123
        %v3156 = vtanh.bf16.pop %v3124
        %v3157 = vtanh.bf16.pop %v3125
        %v3158 = vtanh.bf16.pop %v3126
        %v3159 = vadd.bf16 %v3127, 1065369472
        %v3160 = vadd.bf16 %v3128, 1065369472
        %v3161 = vadd.bf16 %v3129, 1065369472
        %v3162 = vadd.bf16 %v3130, 1065369472
        %v3163 = vadd.bf16 %v3131, 1065369472
        %v3164 = vadd.bf16 %v3132, 1065369472
        %v3165 = vadd.bf16 %v3133, 1065369472
        %v3166 = vadd.bf16 %v3134, 1065369472
        %v3167 = vadd.bf16 %v3135, 1065369472
        %v3168 = vadd.bf16 %v3136, 1065369472
        %v3169 = vadd.bf16 %v3137, 1065369472
        %v3170 = vadd.bf16 %v3138, 1065369472
        %v3171 = vadd.bf16 %v3139, 1065369472
        %v3172 = vadd.bf16 %v3140, 1065369472
        %v3173 = vadd.bf16 %v3141, 1065369472
        %v3174 = vadd.bf16 %v3142, 1065369472
        %v3175 = vadd.bf16 %v3143, 1065369472
        %v3176 = vadd.bf16 %v3144, 1065369472
        %v3177 = vadd.bf16 %v3145, 1065369472
        %v3178 = vadd.bf16 %v3146, 1065369472
        %v3179 = vadd.bf16 %v3147, 1065369472
        %v3180 = vadd.bf16 %v3148, 1065369472
        %v3181 = vadd.bf16 %v3149, 1065369472
        %v3182 = vadd.bf16 %v3150, 1065369472
        %v3183 = vadd.bf16 %v3151, 1065369472
        %v3184 = vadd.bf16 %v3152, 1065369472
        %v3185 = vadd.bf16 %v3153, 1065369472
        %v3186 = vadd.bf16 %v3154, 1065369472
        %v3187 = vadd.bf16 %v3155, 1065369472
        %v3188 = vadd.bf16 %v3156, 1065369472
        %v3189 = vadd.bf16 %v3157, 1065369472
        %v3190 = vadd.bf16 %v3158, 1065369472
        %v3191 = vmul.bf16 %v2935, %v3159
        %v3192 = vmul.bf16 %v2936, %v3160
        %v3193 = vmul.bf16 %v2937, %v3161
        %v3194 = vmul.bf16 %v2938, %v3162
        %v3195 = vmul.bf16 %v2939, %v3163
        %v3196 = vmul.bf16 %v2940, %v3164
        %v3197 = vmul.bf16 %v2941, %v3165
        %v3198 = vmul.bf16 %v2942, %v3166
        %v3199 = vmul.bf16 %v2943, %v3167
        %v3200 = vmul.bf16 %v2944, %v3168
        %v3201 = vmul.bf16 %v2945, %v3169
        %v3202 = vmul.bf16 %v2946, %v3170
        %v3203 = vmul.bf16 %v2947, %v3171
        %v3204 = vmul.bf16 %v2948, %v3172
        %v3205 = vmul.bf16 %v2949, %v3173
        %v3206 = vmul.bf16 %v2950, %v3174
        %v3207 = vmul.bf16 %v2951, %v3175
        %v3208 = vmul.bf16 %v2952, %v3176
        %v3209 = vmul.bf16 %v2953, %v3177
        %v3210 = vmul.bf16 %v2954, %v3178
        %v3211 = vmul.bf16 %v2955, %v3179
        %v3212 = vmul.bf16 %v2956, %v3180
        %v3213 = vmul.bf16 %v2957, %v3181
        %v3214 = vmul.bf16 %v2958, %v3182
        %v3215 = vmul.bf16 %v2959, %v3183
        %v3216 = vmul.bf16 %v2960, %v3184
        %v3217 = vmul.bf16 %v2961, %v3185
        %v3218 = vmul.bf16 %v2962, %v3186
        %v3219 = vmul.bf16 %v2963, %v3187
        %v3220 = vmul.bf16 %v2964, %v3188
        %v3221 = vmul.bf16 %v2965, %v3189
        %v3222 = vmul.bf16 %v2966, %v3190
        %v3223 = vld [vmem:[#allocation12] sm:$0xf]
        %v3224 = vld [vmem:[#allocation12 + $0x4] sm:$0xf]
        %v3225 = vld [vmem:[#allocation12 + $0x8] sm:$0xf]
        %v3226 = vld [vmem:[#allocation12 + $0xc] sm:$0xf]
        %v3227 = vld [vmem:[#allocation12 + $0x10] sm:$0xf]
        %v3228 = vld [vmem:[#allocation12 + $0x14] sm:$0xf]
        %v3229 = vld [vmem:[#allocation12 + $0x18] sm:$0xf]
        %v3230 = vld [vmem:[#allocation12 + $0x1c] sm:$0xf]
        %v3231 = vld [vmem:[#allocation12 + $0x20] sm:$0xf]
        %v3232 = vld [vmem:[#allocation12 + $0x24] sm:$0xf]
        %v3233 = vld [vmem:[#allocation12 + $0x28] sm:$0xf]
        %v3234 = vld [vmem:[#allocation12 + $0x2c] sm:$0xf]
        %v3235 = vld [vmem:[#allocation12 + $0x30] sm:$0xf]
        %v3236 = vld [vmem:[#allocation12 + $0x34] sm:$0xf]
        %v3237 = vld [vmem:[#allocation12 + $0x38] sm:$0xf]
        %v3238 = vld [vmem:[#allocation12 + $0x3c] sm:$0xf]
        %v3239 = vld [vmem:[#allocation12 + $0x40] sm:$0xf]
        %v3240 = vld [vmem:[#allocation12 + $0x44] sm:$0xf]
        %v3241 = vld [vmem:[#allocation12 + $0x48] sm:$0xf]
        %v3242 = vld [vmem:[#allocation12 + $0x4c] sm:$0xf]
        %v3243 = vld [vmem:[#allocation12 + $0x50] sm:$0xf]
        %v3244 = vld [vmem:[#allocation12 + $0x54] sm:$0xf]
        %v3245 = vld [vmem:[#allocation12 + $0x58] sm:$0xf]
        %v3246 = vld [vmem:[#allocation12 + $0x5c] sm:$0xf]
        %v3247 = vld [vmem:[#allocation12 + $0x60] sm:$0xf]
        %v3248 = vld [vmem:[#allocation12 + $0x64] sm:$0xf]
        %v3249 = vld [vmem:[#allocation12 + $0x68] sm:$0xf]
        %v3250 = vld [vmem:[#allocation12 + $0x6c] sm:$0xf]
        %v3251 = vld [vmem:[#allocation12 + $0x70] sm:$0xf]
        %v3252 = vld [vmem:[#allocation12 + $0x74] sm:$0xf]
        %v3253 = vld [vmem:[#allocation12 + $0x78] sm:$0xf]
        %v3254 = vld [vmem:[#allocation12 + $0x7c] sm:$0xf]
        %v3255 = vld [vmem:[#allocation12 + $0x80] sm:$0xf]
        %v3256 = vld [vmem:[#allocation12 + $0x84] sm:$0xf]
        %v3257 = vld [vmem:[#allocation12 + $0x88] sm:$0xf]
        %v3258 = vld [vmem:[#allocation12 + $0x8c] sm:$0xf]
        %v3259 = vld [vmem:[#allocation12 + $0x90] sm:$0xf]
        %v3260 = vld [vmem:[#allocation12 + $0x94] sm:$0xf]
        %v3261 = vld [vmem:[#allocation12 + $0x98] sm:$0xf]
        %v3262 = vld [vmem:[#allocation12 + $0x9c] sm:$0xf]
        %v3263 = vld [vmem:[#allocation12 + $0xa0] sm:$0xf]
        %v3264 = vld [vmem:[#allocation12 + $0xa4] sm:$0xf]
        %v3265 = vld [vmem:[#allocation12 + $0xa8] sm:$0xf]
        %v3266 = vld [vmem:[#allocation12 + $0xac] sm:$0xf]
        %v3267 = vld [vmem:[#allocation12 + $0xb0] sm:$0xf]
        %v3268 = vld [vmem:[#allocation12 + $0xb4] sm:$0xf]
        %v3269 = vld [vmem:[#allocation12 + $0xb8] sm:$0xf]
        %v3270 = vld [vmem:[#allocation12 + $0xbc] sm:$0xf]
        %v3271 = vld [vmem:[#allocation12 + $0xc0] sm:$0xf]
        %v3272 = vld [vmem:[#allocation12 + $0xc4] sm:$0xf]
        %v3273 = vld [vmem:[#allocation12 + $0xc8] sm:$0xf]
        %v3274 = vld [vmem:[#allocation12 + $0xcc] sm:$0xf]
        %v3275 = vld [vmem:[#allocation12 + $0xd0] sm:$0xf]
        %v3276 = vld [vmem:[#allocation12 + $0xd4] sm:$0xf]
        %v3277 = vld [vmem:[#allocation12 + $0xd8] sm:$0xf]
        %v3278 = vld [vmem:[#allocation12 + $0xdc] sm:$0xf]
        %v3279 = vld [vmem:[#allocation12 + $0xe0] sm:$0xf]
        %v3280 = vld [vmem:[#allocation12 + $0xe4] sm:$0xf]
        %v3281 = vld [vmem:[#allocation12 + $0xe8] sm:$0xf]
        %v3282 = vld [vmem:[#allocation12 + $0xec] sm:$0xf]
        %v3283 = vld [vmem:[#allocation12 + $0xf0] sm:$0xf]
        %v3284 = vld [vmem:[#allocation12 + $0xf4] sm:$0xf]
        %v3285 = vld [vmem:[#allocation12 + $0xf8] sm:$0xf]
        %v3286 = vld [vmem:[#allocation12 + $0xfc] sm:$0xf]
        %v3287 = vld [vmem:[%s12] sm:$0x1]
        %v3289 = vlaneseq
        %v3290 = vshrl.u32 %v3289, 7
        %v3291 = vsub.s32 0, %v3290
        %v3292 = vrot.slane %v3287, %v3291
        %v3358 = vunpack.c.l.b16 %v3223
        %v3359 = vunpack.c.l.b16 %v3224
        %v3360 = vunpack.c.l.b16 %v3225
        %v3361 = vunpack.c.l.b16 %v3226
        %v3362 = vunpack.c.l.b16 %v3227
        %v3363 = vunpack.c.l.b16 %v3228
        %v3364 = vunpack.c.l.b16 %v3229
        %v3365 = vunpack.c.l.b16 %v3230
        %v3366 = vunpack.c.l.b16 %v3231
        %v3367 = vunpack.c.l.b16 %v3232
        %v3368 = vunpack.c.l.b16 %v3233
        %v3369 = vunpack.c.l.b16 %v3234
        %v3370 = vunpack.c.l.b16 %v3235
        %v3371 = vunpack.c.l.b16 %v3236
        %v3372 = vunpack.c.l.b16 %v3237
        %v3373 = vunpack.c.l.b16 %v3238
        %v3374 = vunpack.c.l.b16 %v3239
        %v3375 = vunpack.c.l.b16 %v3240
        %v3376 = vunpack.c.l.b16 %v3241
        %v3377 = vunpack.c.l.b16 %v3242
        %v3378 = vunpack.c.l.b16 %v3243
        %v3379 = vunpack.c.l.b16 %v3244
        %v3380 = vunpack.c.l.b16 %v3245
        %v3381 = vunpack.c.l.b16 %v3246
        %v3382 = vunpack.c.l.b16 %v3247
        %v3383 = vunpack.c.l.b16 %v3248
        %v3384 = vunpack.c.l.b16 %v3249
        %v3385 = vunpack.c.l.b16 %v3250
        %v3386 = vunpack.c.l.b16 %v3251
        %v3387 = vunpack.c.l.b16 %v3252
        %v3388 = vunpack.c.l.b16 %v3253
        %v3389 = vunpack.c.l.b16 %v3254
        %v3390 = vunpack.c.l.b16 %v3255
        %v3391 = vunpack.c.l.b16 %v3256
        %v3392 = vunpack.c.l.b16 %v3257
        %v3393 = vunpack.c.l.b16 %v3258
        %v3394 = vunpack.c.l.b16 %v3259
        %v3395 = vunpack.c.l.b16 %v3260
        %v3396 = vunpack.c.l.b16 %v3261
        %v3397 = vunpack.c.l.b16 %v3262
        %v3398 = vunpack.c.l.b16 %v3263
        %v3399 = vunpack.c.l.b16 %v3264
        %v3400 = vunpack.c.l.b16 %v3265
        %v3401 = vunpack.c.l.b16 %v3266
        %v3402 = vunpack.c.l.b16 %v3267
        %v3403 = vunpack.c.l.b16 %v3268
        %v3404 = vunpack.c.l.b16 %v3269
        %v3405 = vunpack.c.l.b16 %v3270
        %v3406 = vunpack.c.l.b16 %v3271
        %v3407 = vunpack.c.l.b16 %v3272
        %v3408 = vunpack.c.l.b16 %v3273
        %v3409 = vunpack.c.l.b16 %v3274
        %v3410 = vunpack.c.l.b16 %v3275
        %v3411 = vunpack.c.l.b16 %v3276
        %v3412 = vunpack.c.l.b16 %v3277
        %v3413 = vunpack.c.l.b16 %v3278
        %v3414 = vunpack.c.l.b16 %v3279
        %v3415 = vunpack.c.l.b16 %v3280
        %v3416 = vunpack.c.l.b16 %v3281
        %v3417 = vunpack.c.l.b16 %v3282
        %v3418 = vunpack.c.l.b16 %v3283
        %v3419 = vunpack.c.l.b16 %v3284
        %v3420 = vunpack.c.l.b16 %v3285
        %v3421 = vunpack.c.l.b16 %v3286
        %v3422 = vpack.c.b16 %v3359, %v3358
        %v3423 = vpack.c.b16 %v3361, %v3360
        %v3424 = vpack.c.b16 %v3363, %v3362
        %v3425 = vpack.c.b16 %v3365, %v3364
        %v3426 = vpack.c.b16 %v3367, %v3366
        %v3427 = vpack.c.b16 %v3369, %v3368
        %v3428 = vpack.c.b16 %v3371, %v3370
        %v3429 = vpack.c.b16 %v3373, %v3372
        %v3430 = vpack.c.b16 %v3375, %v3374
        %v3431 = vpack.c.b16 %v3377, %v3376
        %v3432 = vpack.c.b16 %v3379, %v3378
        %v3433 = vpack.c.b16 %v3381, %v3380
        %v3434 = vpack.c.b16 %v3383, %v3382
        %v3435 = vpack.c.b16 %v3385, %v3384
        %v3436 = vpack.c.b16 %v3387, %v3386
        %v3437 = vpack.c.b16 %v3389, %v3388
        %v3438 = vpack.c.b16 %v3391, %v3390
        %v3439 = vpack.c.b16 %v3393, %v3392
        %v3440 = vpack.c.b16 %v3395, %v3394
        %v3441 = vpack.c.b16 %v3397, %v3396
        %v3442 = vpack.c.b16 %v3399, %v3398
        %v3443 = vpack.c.b16 %v3401, %v3400
        %v3444 = vpack.c.b16 %v3403, %v3402
        %v3445 = vpack.c.b16 %v3405, %v3404
        %v3446 = vpack.c.b16 %v3407, %v3406
        %v3447 = vpack.c.b16 %v3409, %v3408
        %v3448 = vpack.c.b16 %v3411, %v3410
        %v3449 = vpack.c.b16 %v3413, %v3412
        %v3450 = vpack.c.b16 %v3415, %v3414
        %v3451 = vpack.c.b16 %v3417, %v3416
        %v3452 = vpack.c.b16 %v3419, %v3418
        %v3453 = vpack.c.b16 %v3421, %v3420
        %3486 = vmatprep.subr.bf16.mxu0 0
        %3487 = vmatpush1.bf16.msra.mxu0 %v3422
        %3488 = vmatprep.subr.bf16.mxu0 0
        %3489 = vmatpush1.bf16.msra.mxu0 %v3423
        %3490 = vmatprep.subr.bf16.mxu0 0
        %3491 = vmatpush1.bf16.msra.mxu0 %v3424
        %3492 = vmatprep.subr.bf16.mxu0 0
        %3493 = vmatpush1.bf16.msra.mxu0 %v3425
        %3494 = vmatprep.subr.bf16.mxu0 0
        %3495 = vmatpush1.bf16.msra.mxu0 %v3426
        %3496 = vmatprep.subr.bf16.mxu0 0
        %3497 = vmatpush1.bf16.msra.mxu0 %v3427
        %3498 = vmatprep.subr.bf16.mxu0 0
        %3499 = vmatpush1.bf16.msra.mxu0 %v3428
        %3500 = vmatprep.subr.bf16.mxu0 0
        %3501 = vmatpush1.bf16.msra.mxu0 %v3429
        %3502 = vmatprep.subr.bf16.mxu0 0
        %3503 = vmatpush1.bf16.msra.mxu0 %v3430
        %3504 = vmatprep.subr.bf16.mxu0 0
        %3505 = vmatpush1.bf16.msra.mxu0 %v3431
        %3506 = vmatprep.subr.bf16.mxu0 0
        %3507 = vmatpush1.bf16.msra.mxu0 %v3432
        %3508 = vmatprep.subr.bf16.mxu0 0
        %3509 = vmatpush1.bf16.msra.mxu0 %v3433
        %3510 = vmatprep.subr.bf16.mxu0 0
        %3511 = vmatpush1.bf16.msra.mxu0 %v3434
        %3512 = vmatprep.subr.bf16.mxu0 0
        %3513 = vmatpush1.bf16.msra.mxu0 %v3435
        %3514 = vmatprep.subr.bf16.mxu0 0
        %3515 = vmatpush1.bf16.msra.mxu0 %v3436
        %3516 = vmatprep.subr.bf16.mxu0 0
        %3517 = vmatpush1.bf16.msra.mxu0 %v3437
        %3518 = vmatprep.mubr.bf16.mxu0 %v3192
        %3519 = vmatmul.mubr.bf16.gmra.mrb[0].mxu0 %v3191
        %v3520 = vpop.f32.mrb[0].mxu0
        %v3521 = vadd.f32 %v3292, %v3520
        %v3522 = vpop.f32.mrb[0].mxu0
        %v3523 = vpop.f32.mrb[0].mxu0
        %v3524 = vadd.f32 %v3292, %v3523
        %v3525 = vpop.f32.mrb[0].mxu0
        %3526 = vmatprep.mubr.bf16.mxu0 %v3196
        %3527 = vmatmul.mubr.bf16.gmra.mrb[0].mxu0 %v3195
        %v3528 = vpop.f32.mrb[0].mxu0
        %v3529 = vadd.f32 %v3292, %v3528
        %v3530 = vpop.f32.mrb[0].mxu0
        %v3531 = vpop.f32.mrb[0].mxu0
        %v3532 = vadd.f32 %v3292, %v3531
        %v3533 = vpop.f32.mrb[0].mxu0
        %3534 = vmatprep.mubr.bf16.mxu0 %v3200
        %3535 = vmatmul.mubr.bf16.gmra.mrb[0].mxu0 %v3199
        %v3536 = vpop.f32.mrb[0].mxu0
        %v3537 = vadd.f32 %v3292, %v3536
        %v3538 = vpop.f32.mrb[0].mxu0
        %v3539 = vpop.f32.mrb[0].mxu0
        %v3540 = vadd.f32 %v3292, %v3539
        %v3541 = vpop.f32.mrb[0].mxu0
        %3542 = vmatprep.mubr.bf16.mxu0 %v3204
        %3543 = vmatmul.mubr.bf16.gmra.mrb[0].mxu0 %v3203
        %v3544 = vpop.f32.mrb[0].mxu0
        %v3545 = vadd.f32 %v3292, %v3544
        %v3546 = vpop.f32.mrb[0].mxu0
        %v3547 = vpop.f32.mrb[0].mxu0
        %v3548 = vadd.f32 %v3292, %v3547
        %v3549 = vpop.f32.mrb[0].mxu0
        %3550 = vmatprep.mubr.bf16.mxu0 %v3208
        %3551 = vmatmul.mubr.bf16.gmra.mrb[0].mxu0 %v3207
        %v3552 = vpop.f32.mrb[0].mxu0
        %v3553 = vadd.f32 %v3292, %v3552
        %v3554 = vpop.f32.mrb[0].mxu0
        %v3555 = vpop.f32.mrb[0].mxu0
        %v3556 = vadd.f32 %v3292, %v3555
        %v3557 = vpop.f32.mrb[0].mxu0
        %3558 = vmatprep.mubr.bf16.mxu0 %v3212
        %3559 = vmatmul.mubr.bf16.gmra.mrb[0].mxu0 %v3211
        %v3560 = vpop.f32.mrb[0].mxu0
        %v3561 = vadd.f32 %v3292, %v3560
        %v3562 = vpop.f32.mrb[0].mxu0
        %v3563 = vpop.f32.mrb[0].mxu0
        %v3564 = vadd.f32 %v3292, %v3563
        %v3565 = vpop.f32.mrb[0].mxu0
        %3566 = vmatprep.mubr.bf16.mxu0 %v3216
        %3567 = vmatmul.mubr.bf16.gmra.mrb[0].mxu0 %v3215
        %v3568 = vpop.f32.mrb[0].mxu0
        %v3569 = vadd.f32 %v3292, %v3568
        %v3570 = vpop.f32.mrb[0].mxu0
        %v3571 = vpop.f32.mrb[0].mxu0
        %v3572 = vadd.f32 %v3292, %v3571
        %v3573 = vpop.f32.mrb[0].mxu0
        %3574 = vmatprep.mubr.bf16.mxu0 %v3220
        %3575 = vmatmul.mubr.bf16.gmra.mrb[0].mxu0 %v3219
        %v3576 = vpop.f32.mrb[0].mxu0
        %v3577 = vadd.f32 %v3292, %v3576
        %v3578 = vpop.f32.mrb[0].mxu0
        %v3579 = vpop.f32.mrb[0].mxu0
        %v3580 = vadd.f32 %v3292, %v3579
        %v3581 = vpop.f32.mrb[0].mxu0
        %3582 = vdwg.mxu0
        %3583 = vmatprep.subr.bf16.mxu0 0
        %3584 = vmatpush1.bf16.msra.mxu0 %v3438
        %3585 = vmatprep.subr.bf16.mxu0 0
        %3586 = vmatpush1.bf16.msra.mxu0 %v3439
        %3587 = vmatprep.subr.bf16.mxu0 0
        %3588 = vmatpush1.bf16.msra.mxu0 %v3440
        %3589 = vmatprep.subr.bf16.mxu0 0
        %3590 = vmatpush1.bf16.msra.mxu0 %v3441
        %3591 = vmatprep.subr.bf16.mxu0 0
        %3592 = vmatpush1.bf16.msra.mxu0 %v3442
        %3593 = vmatprep.subr.bf16.mxu0 0
        %3594 = vmatpush1.bf16.msra.mxu0 %v3443
        %3595 = vmatprep.subr.bf16.mxu0 0
        %3596 = vmatpush1.bf16.msra.mxu0 %v3444
        %3597 = vmatprep.subr.bf16.mxu0 0
        %3598 = vmatpush1.bf16.msra.mxu0 %v3445
        %3599 = vmatprep.subr.bf16.mxu0 0
        %3600 = vmatpush1.bf16.msra.mxu0 %v3446
        %3601 = vmatprep.subr.bf16.mxu0 0
        %3602 = vmatpush1.bf16.msra.mxu0 %v3447
        %3603 = vmatprep.subr.bf16.mxu0 0
        %3604 = vmatpush1.bf16.msra.mxu0 %v3448
        %3605 = vmatprep.subr.bf16.mxu0 0
        %3606 = vmatpush1.bf16.msra.mxu0 %v3449
        %3607 = vmatprep.subr.bf16.mxu0 0
        %3608 = vmatpush1.bf16.msra.mxu0 %v3450
        %3609 = vmatprep.subr.bf16.mxu0 0
        %3610 = vmatpush1.bf16.msra.mxu0 %v3451
        %3611 = vmatprep.subr.bf16.mxu0 0
        %3612 = vmatpush1.bf16.msra.mxu0 %v3452
        %3613 = vmatprep.subr.bf16.mxu0 0
        %3614 = vmatpush1.bf16.msra.mxu0 %v3453
        %3615 = vmatprep.mubr.bf16.mxu0 %v3194
        %3616 = vmatmul.mubr.bf16.gmra.mrb[0].mxu0 %v3193
        %v3617 = vpop.f32.mrb[0].mxu0
        %v3618 = vadd.f32 %v3521, %v3617
        %v3619 = vpop.f32.mrb[0].mxu0
        %v3620 = vpop.f32.mrb[0].mxu0
        %v3621 = vadd.f32 %v3524, %v3620
        %v3622 = vpop.f32.mrb[0].mxu0
        %3623 = vmatprep.mubr.bf16.mxu0 %v3198
        %3624 = vmatmul.mubr.bf16.gmra.mrb[0].mxu0 %v3197
        %v3625 = vpop.f32.mrb[0].mxu0
        %v3626 = vadd.f32 %v3529, %v3625
        %v3627 = vpop.f32.mrb[0].mxu0
        %v3628 = vpop.f32.mrb[0].mxu0
        %v3629 = vadd.f32 %v3532, %v3628
        %v3630 = vpop.f32.mrb[0].mxu0
        %3631 = vmatprep.mubr.bf16.mxu0 %v3202
        %3632 = vmatmul.mubr.bf16.gmra.mrb[0].mxu0 %v3201
        %v3633 = vpop.f32.mrb[0].mxu0
        %v3634 = vadd.f32 %v3537, %v3633
        %v3635 = vpop.f32.mrb[0].mxu0
        %v3636 = vpop.f32.mrb[0].mxu0
        %v3637 = vadd.f32 %v3540, %v3636
        %v3638 = vpop.f32.mrb[0].mxu0
        %3639 = vmatprep.mubr.bf16.mxu0 %v3206
        %3640 = vmatmul.mubr.bf16.gmra.mrb[0].mxu0 %v3205
        %v3641 = vpop.f32.mrb[0].mxu0
        %v3642 = vadd.f32 %v3545, %v3641
        %v3643 = vpop.f32.mrb[0].mxu0
        %v3644 = vpop.f32.mrb[0].mxu0
        %v3645 = vadd.f32 %v3548, %v3644
        %v3646 = vpop.f32.mrb[0].mxu0
        %3647 = vmatprep.mubr.bf16.mxu0 %v3210
        %3648 = vmatmul.mubr.bf16.gmra.mrb[0].mxu0 %v3209
        %v3649 = vpop.f32.mrb[0].mxu0
        %v3650 = vadd.f32 %v3553, %v3649
        %v3651 = vpop.f32.mrb[0].mxu0
        %v3652 = vpop.f32.mrb[0].mxu0
        %v3653 = vadd.f32 %v3556, %v3652
        %v3654 = vpop.f32.mrb[0].mxu0
        %3655 = vmatprep.mubr.bf16.mxu0 %v3214
        %3656 = vmatmul.mubr.bf16.gmra.mrb[0].mxu0 %v3213
        %v3657 = vpop.f32.mrb[0].mxu0
        %v3658 = vadd.f32 %v3561, %v3657
        %v3659 = vpop.f32.mrb[0].mxu0
        %v3660 = vpop.f32.mrb[0].mxu0
        %v3661 = vadd.f32 %v3564, %v3660
        %v3662 = vpop.f32.mrb[0].mxu0
        %3663 = vmatprep.mubr.bf16.mxu0 %v3218
        %3664 = vmatmul.mubr.bf16.gmra.mrb[0].mxu0 %v3217
        %v3665 = vpop.f32.mrb[0].mxu0
        %v3666 = vadd.f32 %v3569, %v3665
        %v3667 = vpop.f32.mrb[0].mxu0
        %v3668 = vpop.f32.mrb[0].mxu0
        %v3669 = vadd.f32 %v3572, %v3668
        %v3670 = vpop.f32.mrb[0].mxu0
        %3671 = vmatprep.mubr.bf16.mxu0 %v3222
        %3672 = vmatmul.mubr.bf16.gmra.mrb[0].mxu0 %v3221
        %v3673 = vpop.f32.mrb[0].mxu0
        %v3674 = vadd.f32 %v3577, %v3673
        %v3675 = vpop.f32.mrb[0].mxu0
        %v3676 = vpop.f32.mrb[0].mxu0
        %v3677 = vadd.f32 %v3580, %v3676
        %v3678 = vpop.f32.mrb[0].mxu0
        %3679 = vdwg.mxu0
        %v3680 = vld [vmem:[%s13] sm:$0x1]
        %v3682 = vlaneseq
        %v3683 = vshrl.u32 %v3682, 7
        %v3684 = vsub.s32 0, %v3683
        %v3685 = vrot.slane %v3680, %v3684
        %v3687 = vmul.f32 %v3618, %v3685
        %v3688 = vmul.f32 %v3621, %v3685
        %v3689 = vmul.f32 %v3626, %v3685
        %v3690 = vmul.f32 %v3629, %v3685
        %v3691 = vmul.f32 %v3634, %v3685
        %v3692 = vmul.f32 %v3637, %v3685
        %v3693 = vmul.f32 %v3642, %v3685
        %v3694 = vmul.f32 %v3645, %v3685
        %v3695 = vmul.f32 %v3650, %v3685
        %v3696 = vmul.f32 %v3653, %v3685
        %v3697 = vmul.f32 %v3658, %v3685
        %v3698 = vmul.f32 %v3661, %v3685
        %v3699 = vmul.f32 %v3666, %v3685
        %v3700 = vmul.f32 %v3669, %v3685
        %v3701 = vmul.f32 %v3674, %v3685
        %v3702 = vmul.f32 %v3677, %v3685
        %v3703 = vadd.f32 %v3687, %v596
        %v3704 = vadd.f32 %v3688, %v597
        %v3705 = vadd.f32 %v3689, %v598
        %v3706 = vadd.f32 %v3690, %v599
        %v3707 = vadd.f32 %v3691, %v600
        %v3708 = vadd.f32 %v3692, %v601
        %v3709 = vadd.f32 %v3693, %v602
        %v3710 = vadd.f32 %v3694, %v603
        %v3711 = vadd.f32 %v3695, %v604
        %v3712 = vadd.f32 %v3696, %v605
        %v3713 = vadd.f32 %v3697, %v606
        %v3714 = vadd.f32 %v3698, %v607
        %v3715 = vadd.f32 %v3699, %v608
        %v3716 = vadd.f32 %v3700, %v609
        %v3717 = vadd.f32 %v3701, %v610
        %v3718 = vadd.f32 %v3702, %v611
        %v3719 = vpack.c.bf16 %v3704, %v3703
        %v3720 = vpack.c.bf16 %v3706, %v3705
        %v3721 = vpack.c.bf16 %v3708, %v3707
        %v3722 = vpack.c.bf16 %v3710, %v3709
        %v3723 = vpack.c.bf16 %v3712, %v3711
        %v3724 = vpack.c.bf16 %v3714, %v3713
        %v3725 = vpack.c.bf16 %v3716, %v3715
        %v3726 = vpack.c.bf16 %v3718, %v3717
        %v3735 = vunpack.c.l.b16 %v3719
        %v3736 = vunpack.c.h.b16 %v3719
        %v3737 = vunpack.c.l.b16 %v3720
        %v3738 = vunpack.c.h.b16 %v3720
        %v3739 = vunpack.c.l.b16 %v3721
        %v3740 = vunpack.c.h.b16 %v3721
        %v3741 = vunpack.c.l.b16 %v3722
        %v3742 = vunpack.c.h.b16 %v3722
        %v3743 = vunpack.c.l.b16 %v3723
        %v3744 = vunpack.c.h.b16 %v3723
        %v3745 = vunpack.c.l.b16 %v3724
        %v3746 = vunpack.c.h.b16 %v3724
        %v3747 = vunpack.c.l.b16 %v3725
        %v3748 = vunpack.c.h.b16 %v3725
        %v3749 = vunpack.c.l.b16 %v3726
        %v3750 = vunpack.c.h.b16 %v3726
        %v3751 = vpack.c.b16 %v3735, %v3735
        %v3752 = vpack.c.b16 %v3736, %v3736
        %v3753 = vpack.c.b16 %v3737, %v3737
        %v3754 = vpack.c.b16 %v3738, %v3738
        %v3755 = vpack.c.b16 %v3739, %v3739
        %v3756 = vpack.c.b16 %v3740, %v3740
        %v3757 = vpack.c.b16 %v3741, %v3741
        %v3758 = vpack.c.b16 %v3742, %v3742
        %v3759 = vpack.c.b16 %v3743, %v3743
        %v3760 = vpack.c.b16 %v3744, %v3744
        %v3761 = vpack.c.b16 %v3745, %v3745
        %v3762 = vpack.c.b16 %v3746, %v3746
        %v3763 = vpack.c.b16 %v3747, %v3747
        %v3764 = vpack.c.b16 %v3748, %v3748
        %v3765 = vpack.c.b16 %v3749, %v3749
        %v3766 = vpack.c.b16 %v3750, %v3750
        %3783 = vst [vmem:[%s536] sm:$0xf] %v3751
        %3784 = vst [vmem:[%s536 + $0x4] sm:$0xf] %v3752
        %3785 = vst [vmem:[%s536 + $0x8] sm:$0xf] %v3753
        %3786 = vst [vmem:[%s536 + $0xc] sm:$0xf] %v3754
        %3787 = vst [vmem:[%s536 + $0x10] sm:$0xf] %v3755
        %3788 = vst [vmem:[%s536 + $0x14] sm:$0xf] %v3756
        %3789 = vst [vmem:[%s536 + $0x18] sm:$0xf] %v3757
        %3790 = vst [vmem:[%s536 + $0x1c] sm:$0xf] %v3758
        %3791 = vst [vmem:[%s536 + $0x20] sm:$0xf] %v3759
        %3792 = vst [vmem:[%s536 + $0x24] sm:$0xf] %v3760
        %3793 = vst [vmem:[%s536 + $0x28] sm:$0xf] %v3761
        %3794 = vst [vmem:[%s536 + $0x2c] sm:$0xf] %v3762
        %3795 = vst [vmem:[%s536 + $0x30] sm:$0xf] %v3763
        %3796 = vst [vmem:[%s536 + $0x34] sm:$0xf] %v3764
        %3797 = vst [vmem:[%s536 + $0x38] sm:$0xf] %v3765
        %3798 = vst [vmem:[%s536 + $0x3c] sm:$0xf] %v3766
        %s3799 = sand.u32 %s335, 1
        %s3800 = scalar_lea.sflag [#allocation6], %s3799
        %s3801 = sand.u32 %s335, 1
        %s3802 = smul.addr %s3801, 64
        %s3803 = scalar_lea.vmem [#allocation13], %s3802
        // Predicated region
        $region119: #{tpu_custom_call.1} parent=71 // pred_check
          %p3804 = pneg %p345
        $region120: #{tpu_custom_call.1} parent=71 // pred_check_branch
          %3806 = sbr.rel (%p3804) target = $region122
        $region121: #{tpu_custom_call.1} parent=71 // pred_region
          %s3807 = smul.u32 8, %s38
          %s3809 = ssub.s32 1024, 1024
          %3810 = vsyncadd %s3800, %s3809
          %s3811 = smul.addr %s3807, 2
          %s3812 = smul.addr %s37, 64
          %s3813 = sadd.s32 %s3811, %s3812
          %s3814 = smul.addr %s3813, 64
          %s3815 = scalar_lea.hbm %s14, %s3814
          %s3816 = sshll.u32 %s3803, 4
          %s3817 = int_to_ptr.vmem [resolvable:$true] %s3816
          %3822 = dma.vmem_to_hbm [thread:$0]  %s3817, 1024, %s3815, %s3800, 64, 64, 4
        $region122: #{tpu_custom_call.1} parent=71 // pred_fallthru
          _
      $region72: #{tpu_custom_call.1} parent=5 // pred_fallthru
        _
      %p3823 = scmp.le.s32.totalorder 2, %s28
      // Predicated region
      $region123: #{tpu_custom_call.1} parent=5 // pred_check
        %p3824 = pneg %p3823
      $region124: #{tpu_custom_call.1} parent=5 // pred_check_branch
        %3826 = sbr.rel (%p3824) target = $region126
      $region125: #{tpu_custom_call.1} parent=5 // pred_region
        %s3827 = ssub.s32 %s28, 2
        // Predicated region
        $region127: #{tpu_custom_call.1} parent=125 // pred_check
          %p3828 = pneg %p351
        $region128: #{tpu_custom_call.1} parent=125 // pred_check_branch
          %3830 = sbr.rel (%p3828) target = $region130
        $region129: #{tpu_custom_call.1} parent=125 // pred_region
          %s3831 = sand.u32 %s336, 1
          %s3832 = scalar_lea.sflag [#allocation6], %s3831
          %s3833 = sand.u32 %s336, 1
          %s3834 = smul.addr %s3833, 64
          %s3835 = scalar_lea.vmem [#allocation13], %s3834
          %3836 = dma.done %s3832, 1024
        $region130: #{tpu_custom_call.1} parent=125 // pred_fallthru
          _
      $region126: #{tpu_custom_call.1} parent=5 // pred_fallthru
        _
    $region6: #{tpu_custom_call.1} parent=1 // loop_footer
      %s32 = sadd.s32 1, %s28
    $region7: #{tpu_custom_call.1} parent=1 // loop_footer_branch
      %27 = sbr.rel target = $region3
    $region8: #{tpu_custom_call.1} parent=1 // loop_exit
      _
    %3837 = vsyncpa [#allocation5], 1
    %s3838 = scalar_lea.sflag [#allocation5], 1
    %3839 = vsyncpa %s3838, 1
    %3840 = vsyncpa [#allocation8], 1
    %3841 = vsyncpa [#allocation11], 1
    %3842 = vsyncpa [#allocation6], 1
    %s3843 = scalar_lea.sflag [#allocation6], 1
    %3844 = vsyncpa %s3843, 1

</llo_original>
